<compile_context>
chip_gen: v7x
topology: tpu7x:2x2x1
jax: 0.10.0
libtpu: 0.0.40
codegen_flags: <defaults>
</compile_context>

<pallas_src>
from functools import partial

import numpy as np
import jax
import jax.numpy as jnp
from jax import lax
from jax.experimental import pallas as pl
from jax.experimental.pallas import tpu as pltpu

# 8 neighbor offsets (dy, dx) in the PyTorch 3x3 kernel channel order:
# weight positions (0,0),(0,1),(0,2),(1,0),(1,2),(2,0),(2,1),(2,2)
_OFFSETS8 = ((-1, -1), (-1, 0), (-1, 1), (0, -1), (0, 1), (1, -1), (1, 0), (1, 1))


def _pamr_kernel(x_ref, mask_ref, wh_ref, wwt_ref, out_ref, *,
                 K, C, H, W, Hm, Wm, dilations, num_iter):
    f32 = jnp.float32

    def recip(v):
        # EUP approximate reciprocal + one Newton-Raphson step (keeps a true
        # divide off the VPU path while staying close to exact).
        r = pl.reciprocal(v, approx=True)
        return r * (2.0 - v * r)

    # ---- replicate-pad clamp masks: small (H,1)/(1,W) broadcast vectors ----
    row = lax.broadcasted_iota(jnp.int32, (H, 1), 0)
    col = lax.broadcasted_iota(jnp.int32, (1, W), 1)
    row_hi, row_lo, col_hi, col_lo = {}, {}, {}, {}
    for d in sorted(set(dilations)):
        row_hi[d], row_lo[d] = (row >= H - d), (row < d)
        col_hi[d], col_lo[d] = (col >= W - d), (col < d)

    def shift_rows(a, dy):
        """b[h, w] = a[clamp(h + dy, 0, H-1), w]  (dy != 0)."""
        rolled = pltpu.roll(a, (-dy) % H, 0)          # rolled[h] = a[(h+dy) % H]
        if dy > 0:
            return jnp.where(row_hi[dy], a[H - 1:H, :], rolled)
        return jnp.where(row_lo[-dy], a[0:1, :], rolled)

    def shift_cols(a, dx):
        """b[h, w] = a[h, clamp(w + dx, 0, W-1)]  (dx != 0)."""
        rolled = pltpu.roll(a, (-dx) % W, 1)          # rolled[:,w] = a[:,(w+dx) % W]
        if dx > 0:
            return jnp.where(col_hi[dx], a[:, W - 1:W], rolled)
        return jnp.where(col_lo[-dx], a[:, 0:1], rolled)

    def window8(a, d):
        """8 neighbor planes of `a` for dilation d, in _OFFSETS8 order.

        Factorized stencil: the two row-shifted planes are built once, then
        only column shifts are applied (8 rolls/selects instead of 12).
        """
        up = shift_rows(a, -d)
        dn = shift_rows(a, d)
        return (shift_cols(up, -d), up, shift_cols(up, d),
                shift_cols(a, -d), shift_cols(a, d),
                shift_cols(dn, -d), dn, shift_cols(dn, d))

    n_dil = len(dilations)
    n_off = 8 * n_dil                      # neighbor channels
    n_win = n_off + n_dil                  # 9*D window entries (incl. centers)
    inv_n = 1.0 / float(n_win)
    inv_nm1 = 1.0 / float(n_win - 1)
    inv_k = 1.0 / float(K)

    # ---- features: cached center-relative neighbor differences + LocalStDev ----
    xv = x_ref[...].astype(f32)            # (1, K, H, W)
    dvs = []                               # dvs[k][i] = x[neighbor_i] - x[center]
    inv_denoms = []                        # 1 / (1e-8 + 0.1 * std_k)
    for k in range(K):
        xk = xv[0, k]
        dv_k = []
        for d in dilations:
            for nb in window8(xk, d):
                dv_k.append(nb - xk)
        dvs.append(dv_k)

        # Unbiased std over the 9*D window (two-pass, translation invariant:
        # the D center taps contribute dv == 0).
        s1 = dv_k[0]
        for dv in dv_k[1:]:
            s1 = s1 + dv
        mean = s1 * inv_n
        cdev = dv_k[0] - mean
        ss = cdev * cdev
        for dv in dv_k[1:]:
            cdev = dv - mean
            ss = ss + cdev * cdev
        ss = ss + (mean * mean) * float(n_dil)          # D center entries
        std = jnp.sqrt(jnp.maximum(ss * inv_nm1, 0.0))
        inv_denoms.append(recip(1e-8 + 0.1 * std))

    # ---- affinity logits: mean_K( -|dv| / denom ), reusing cached dv ----
    logits = []
    for i in range(n_off):
        acc = jnp.abs(dvs[0][i]) * inv_denoms[0]
        for k in range(1, K):
            acc = acc + jnp.abs(dvs[k][i]) * inv_denoms[k]
        logits.append(-(acc * inv_k))      # (H, W)

    # ---- softmax over the 8*D neighbor channels ----
    m = logits[0]
    for l in logits[1:]:
        m = jnp.maximum(m, l)
    exps = [jnp.exp(l - m) for l in logits]
    z = exps[0]
    for e in exps[1:]:
        z = z + e
    inv_z = recip(z)
    probs = [e * inv_z for e in exps]      # 8*D planes of (H, W)

    # ---- bilinear mask upsample (align_corners=True):
    #      batched width pass on the MXU, then per-channel height pass ----
    whm = wh_ref[...].astype(f32)          # (H, Hm)
    wwm = wwt_ref[...].astype(f32)         # (Wm, W)
    mv = mask_ref[...].astype(f32)         # (1, C, Hm, Wm)
    mw = jnp.dot(mv.reshape(C * Hm, Wm), wwm,
                 preferred_element_type=f32)            # (C*Hm, W)
    cur = tuple(
        jnp.dot(whm, mw[c * Hm:(c + 1) * Hm, :], preferred_element_type=f32)
        for c in range(C))                 # C planes of (H, W)

    # ---- iterative neighbor-weighted mask aggregation ----
    def agg(mask_ch):
        new_ch = []
        for c in range(C):
            acc = None
            i = 0
            for d in dilations:
                for nb in window8(mask_ch[c], d):
                    t = nb * probs[i]
                    acc = t if acc is None else acc + t
                    i += 1
            new_ch.append(acc)
        return tuple(new_ch)

    if num_iter == 1:
        cur = agg(cur)
    elif num_iter > 1:
        cur = lax.fori_loop(0, num_iter, lambda _, mc: agg(mc), cur)

    for c in range(C):
        out_ref[0, c, :, :] = cur[c].astype(out_ref.dtype)


def _bilinear_matrix(out_size, in_size):
    """1-D interpolation matrix for F.interpolate(mode='bilinear', align_corners=True)."""
    m = np.zeros((out_size, in_size), np.float32)
    if in_size == 1 or out_size == 1:
        m[:, 0] = 1.0
        return m
    scale = (in_size - 1) / (out_size - 1)
    for i in range(out_size):
        src = i * scale
        i0 = min(int(np.floor(src)), in_size - 1)
        i1 = min(i0 + 1, in_size - 1)
        f = src - i0
        m[i, i0] += 1.0 - f
        m[i, i1] += f
    return m


def pamr_forward(x, mask, *, num_iter=1, dilations=(1,)):
    """PAMR forward. x: (B, K, H, W) features; mask: (B, C, Hm, Wm). Returns (B, C, H, W)."""
    B, K, H, W = x.shape
    Bm, C, Hm, Wm = mask.shape
    assert B == Bm
    dilations = tuple(int(d) for d in dilations)
    assert all(0 < d < min(H, W) for d in dilations)

    wh = jnp.asarray(_bilinear_matrix(H, Hm))        # (H, Hm)
    wwt = jnp.asarray(_bilinear_matrix(W, Wm).T)     # (Wm, W)
    out_dtype = jnp.result_type(x.dtype, mask.dtype)

    kernel = partial(_pamr_kernel, K=K, C=C, H=H, W=W, Hm=Hm, Wm=Wm,
                     dilations=dilations, num_iter=int(num_iter))

    # Inputs are passed in their native dtype (no host-side f32 casts); the
    # kernel casts to f32 internally.
    return pl.pallas_call(
        kernel,
        out_shape=jax.ShapeDtypeStruct((B, C, H, W), out_dtype),
        grid_spec=pltpu.PrefetchScalarGridSpec(
            num_scalar_prefetch=0,
            grid=(B,),
            in_specs=[
                pl.BlockSpec((1, K, H, W), lambda b: (b, 0, 0, 0)),
                pl.BlockSpec((1, C, Hm, Wm), lambda b: (b, 0, 0, 0)),
                pl.BlockSpec((H, Hm), lambda b: (0, 0)),
                pl.BlockSpec((Wm, W), lambda b: (0, 0)),
            ],
            out_specs=pl.BlockSpec((1, C, H, W), lambda b: (b, 0, 0, 0)),
        ),
        compiler_params=pltpu.CompilerParams(
            dimension_semantics=("parallel",),
            vmem_limit_bytes=48 * 1024 * 1024,
        ),
    )(x, mask, wh, wwt)


if __name__ == "__main__":
    key = jax.random.PRNGKey(0)
    kx, km = jax.random.split(key)
    # features x: (B=2, K=4, H=16, W=16); mask: (B=2, C=3, 8, 8) -> upsampled to 16x16
    x = jax.random.normal(kx, (2, 4, 16, 16), jnp.float32)
    mask = jax.random.normal(km, (2, 3, 8, 8), jnp.float32)

    out = pamr_forward(x, mask, num_iter=1, dilations=(1,))
    out = jax.block_until_ready(out)
    assert out.shape == (2, 3, 16, 16)
    assert bool(jnp.all(jnp.isfinite(out)))

    # Sanity check: a constant mask must stay constant (affinity weights sum
    # to 1 after softmax; bilinear upsample of a constant is the constant).
    ones_mask = jnp.ones((2, 3, 8, 8), jnp.float32)
    out_ones = jax.block_until_ready(pamr_forward(x, ones_mask, num_iter=1, dilations=(1,)))
    assert bool(jnp.all(jnp.abs(out_ones - 1.0) < 1e-3))

    print("KERNEL_OK")
</pallas_src>

<mosaic_0001>
module attributes {stable_mosaic.version = 11 : i64} {
  func.func @_pamr_kernel(%arg0: i32, %arg1: memref<1x4x16x16xf32, #tpu.memory_space<vmem>>, %arg2: memref<1x3x8x8xf32, #tpu.memory_space<vmem>>, %arg3: memref<16x8xf32, #tpu.memory_space<vmem>>, %arg4: memref<8x16xf32, #tpu.memory_space<vmem>>, %arg5: memref<1x3x16x16xf32, #tpu.memory_space<vmem>>) attributes {dimension_semantics = [#tpu.dimension_semantics<parallel>], iteration_bounds = array<i64: 2>, scalar_prefetch = 0 : i64, scratch_operands = 0 : i64, tpu.core_type = #tpu.core_type<tc>, window_params = [{transform_indices = @transform_0, window_bounds = array<i64: 1, 4, 16, 16>}, {transform_indices = @transform_1, window_bounds = array<i64: 1, 3, 8, 8>}, {pipeline_mode = #tpu.pipeline_mode<synchronous>, transform_indices = @transform_2, window_bounds = array<i64: 16, 8>}, {pipeline_mode = #tpu.pipeline_mode<synchronous>, transform_indices = @transform_3, window_bounds = array<i64: 8, 16>}, {transform_indices = @transform_4, window_bounds = array<i64: 1, 3, 16, 16>}]} {
    %0 = tpu.iota {dimensions = array<i32: 0>} : vector<16x1xi32>
    %1 = tpu.iota {dimensions = array<i32: 1>} : vector<1x16xi32>
    %c15_i32 = arith.constant 15 : i32
    %2 = vector.broadcast %c15_i32 : i32 to vector<16x1xi32>
    %3 = arith.cmpi sge, %0, %2 : vector<16x1xi32>
    %c1_i32 = arith.constant 1 : i32
    %4 = vector.broadcast %c1_i32 : i32 to vector<16x1xi32>
    %5 = arith.cmpi slt, %0, %4 : vector<16x1xi32>
    %c15_i32_0 = arith.constant 15 : i32
    %6 = vector.broadcast %c15_i32_0 : i32 to vector<1x16xi32>
    %7 = arith.cmpi sge, %1, %6 : vector<1x16xi32>
    %c1_i32_1 = arith.constant 1 : i32
    %8 = vector.broadcast %c1_i32_1 : i32 to vector<1x16xi32>
    %9 = arith.cmpi slt, %1, %8 : vector<1x16xi32>
    %c0 = arith.constant 0 : index
    %c0_2 = arith.constant 0 : index
    %c0_3 = arith.constant 0 : index
    %c0_4 = arith.constant 0 : index
    %10 = vector.load %arg1[%c0, %c0_2, %c0_3, %c0_4] : memref<1x4x16x16xf32, #tpu.memory_space<vmem>>, vector<1x4x16x16xf32>
    %11 = vector.extract_strided_slice %10 {offsets = [0, 0, 0, 0], sizes = [1, 1, 16, 16], strides = [1, 1, 1, 1]} : vector<1x4x16x16xf32> to vector<1x1x16x16xf32>
    %12 = vector.shape_cast %11 : vector<1x1x16x16xf32> to vector<16x16xf32>
    %c1_i32_5 = arith.constant 1 : i32
    %13 = tpu.dynamic_rotate %12 by %c1_i32_5 dim 0 : vector<16x16xf32>, i32 -> vector<16x16xf32>
    %14 = vector.extract_strided_slice %12 {offsets = [0, 0], sizes = [1, 16], strides = [1, 1]} : vector<16x16xf32> to vector<1x16xf32>
    %15 = vector.shape_cast %5 : vector<16x1xi1> to vector<16x1xi1>
    %16 = vector.broadcast %15 : vector<16x1xi1> to vector<16x16xi1>
    %17 = vector.shape_cast %14 : vector<1x16xf32> to vector<1x16xf32>
    %18 = vector.broadcast %17 : vector<1x16xf32> to vector<16x16xf32>
    %19 = arith.select %16, %18, %13 : vector<16x16xi1>, vector<16x16xf32>
    %c15_i32_6 = arith.constant 15 : i32
    %20 = tpu.dynamic_rotate %12 by %c15_i32_6 dim 0 : vector<16x16xf32>, i32 -> vector<16x16xf32>
    %21 = vector.extract_strided_slice %12 {offsets = [15, 0], sizes = [1, 16], strides = [1, 1]} : vector<16x16xf32> to vector<1x16xf32>
    %22 = vector.shape_cast %3 : vector<16x1xi1> to vector<16x1xi1>
    %23 = vector.broadcast %22 : vector<16x1xi1> to vector<16x16xi1>
    %24 = vector.shape_cast %21 : vector<1x16xf32> to vector<1x16xf32>
    %25 = vector.broadcast %24 : vector<1x16xf32> to vector<16x16xf32>
    %26 = arith.select %23, %25, %20 : vector<16x16xi1>, vector<16x16xf32>
    %c1_i32_7 = arith.constant 1 : i32
    %27 = tpu.dynamic_rotate %19 by %c1_i32_7 dim 1 : vector<16x16xf32>, i32 -> vector<16x16xf32>
    %28 = vector.extract_strided_slice %19 {offsets = [0, 0], sizes = [16, 1], strides = [1, 1]} : vector<16x16xf32> to vector<16x1xf32>
    %29 = vector.shape_cast %9 : vector<1x16xi1> to vector<1x16xi1>
    %30 = vector.broadcast %29 : vector<1x16xi1> to vector<16x16xi1>
    %31 = vector.shape_cast %28 : vector<16x1xf32> to vector<16x1xf32>
    %32 = vector.broadcast %31 : vector<16x1xf32> to vector<16x16xf32>
    %33 = arith.select %30, %32, %27 : vector<16x16xi1>, vector<16x16xf32>
    %c15_i32_8 = arith.constant 15 : i32
    %34 = tpu.dynamic_rotate %19 by %c15_i32_8 dim 1 : vector<16x16xf32>, i32 -> vector<16x16xf32>
    %35 = vector.extract_strided_slice %19 {offsets = [0, 15], sizes = [16, 1], strides = [1, 1]} : vector<16x16xf32> to vector<16x1xf32>
    %36 = vector.shape_cast %7 : vector<1x16xi1> to vector<1x16xi1>
    %37 = vector.broadcast %36 : vector<1x16xi1> to vector<16x16xi1>
    %38 = vector.shape_cast %35 : vector<16x1xf32> to vector<16x1xf32>
    %39 = vector.broadcast %38 : vector<16x1xf32> to vector<16x16xf32>
    %40 = arith.select %37, %39, %34 : vector<16x16xi1>, vector<16x16xf32>
    %c1_i32_9 = arith.constant 1 : i32
    %41 = tpu.dynamic_rotate %12 by %c1_i32_9 dim 1 : vector<16x16xf32>, i32 -> vector<16x16xf32>
    %42 = vector.extract_strided_slice %12 {offsets = [0, 0], sizes = [16, 1], strides = [1, 1]} : vector<16x16xf32> to vector<16x1xf32>
    %43 = vector.shape_cast %9 : vector<1x16xi1> to vector<1x16xi1>
    %44 = vector.broadcast %43 : vector<1x16xi1> to vector<16x16xi1>
    %45 = vector.shape_cast %42 : vector<16x1xf32> to vector<16x1xf32>
    %46 = vector.broadcast %45 : vector<16x1xf32> to vector<16x16xf32>
    %47 = arith.select %44, %46, %41 : vector<16x16xi1>, vector<16x16xf32>
    %c15_i32_10 = arith.constant 15 : i32
    %48 = tpu.dynamic_rotate %12 by %c15_i32_10 dim 1 : vector<16x16xf32>, i32 -> vector<16x16xf32>
    %49 = vector.extract_strided_slice %12 {offsets = [0, 15], sizes = [16, 1], strides = [1, 1]} : vector<16x16xf32> to vector<16x1xf32>
    %50 = vector.shape_cast %7 : vector<1x16xi1> to vector<1x16xi1>
    %51 = vector.broadcast %50 : vector<1x16xi1> to vector<16x16xi1>
    %52 = vector.shape_cast %49 : vector<16x1xf32> to vector<16x1xf32>
    %53 = vector.broadcast %52 : vector<16x1xf32> to vector<16x16xf32>
    %54 = arith.select %51, %53, %48 : vector<16x16xi1>, vector<16x16xf32>
    %c1_i32_11 = arith.constant 1 : i32
    %55 = tpu.dynamic_rotate %26 by %c1_i32_11 dim 1 : vector<16x16xf32>, i32 -> vector<16x16xf32>
    %56 = vector.extract_strided_slice %26 {offsets = [0, 0], sizes = [16, 1], strides = [1, 1]} : vector<16x16xf32> to vector<16x1xf32>
    %57 = vector.shape_cast %9 : vector<1x16xi1> to vector<1x16xi1>
    %58 = vector.broadcast %57 : vector<1x16xi1> to vector<16x16xi1>
    %59 = vector.shape_cast %56 : vector<16x1xf32> to vector<16x1xf32>
    %60 = vector.broadcast %59 : vector<16x1xf32> to vector<16x16xf32>
    %61 = arith.select %58, %60, %55 : vector<16x16xi1>, vector<16x16xf32>
    %c15_i32_12 = arith.constant 15 : i32
    %62 = tpu.dynamic_rotate %26 by %c15_i32_12 dim 1 : vector<16x16xf32>, i32 -> vector<16x16xf32>
    %63 = vector.extract_strided_slice %26 {offsets = [0, 15], sizes = [16, 1], strides = [1, 1]} : vector<16x16xf32> to vector<16x1xf32>
    %64 = vector.shape_cast %7 : vector<1x16xi1> to vector<1x16xi1>
    %65 = vector.broadcast %64 : vector<1x16xi1> to vector<16x16xi1>
    %66 = vector.shape_cast %63 : vector<16x1xf32> to vector<16x1xf32>
    %67 = vector.broadcast %66 : vector<16x1xf32> to vector<16x16xf32>
    %68 = arith.select %65, %67, %62 : vector<16x16xi1>, vector<16x16xf32>
    %69 = arith.subf %33, %12 : vector<16x16xf32>
    %70 = arith.subf %19, %12 : vector<16x16xf32>
    %71 = arith.subf %40, %12 : vector<16x16xf32>
    %72 = arith.subf %47, %12 : vector<16x16xf32>
    %73 = arith.subf %54, %12 : vector<16x16xf32>
    %74 = arith.subf %61, %12 : vector<16x16xf32>
    %75 = arith.subf %26, %12 : vector<16x16xf32>
    %76 = arith.subf %68, %12 : vector<16x16xf32>
    %77 = arith.addf %69, %70 : vector<16x16xf32>
    %78 = arith.addf %77, %71 : vector<16x16xf32>
    %79 = arith.addf %78, %72 : vector<16x16xf32>
    %80 = arith.addf %79, %73 : vector<16x16xf32>
    %81 = arith.addf %80, %74 : vector<16x16xf32>
    %82 = arith.addf %81, %75 : vector<16x16xf32>
    %83 = arith.addf %82, %76 : vector<16x16xf32>
    %cst = arith.constant 0.111111112 : f32
    %84 = vector.broadcast %cst : f32 to vector<16x16xf32>
    %85 = arith.mulf %83, %84 : vector<16x16xf32>
    %86 = arith.subf %69, %85 : vector<16x16xf32>
    %87 = arith.mulf %86, %86 : vector<16x16xf32>
    %88 = arith.subf %70, %85 : vector<16x16xf32>
    %89 = arith.mulf %88, %88 : vector<16x16xf32>
    %90 = arith.addf %87, %89 : vector<16x16xf32>
    %91 = arith.subf %71, %85 : vector<16x16xf32>
    %92 = arith.mulf %91, %91 : vector<16x16xf32>
    %93 = arith.addf %90, %92 : vector<16x16xf32>
    %94 = arith.subf %72, %85 : vector<16x16xf32>
    %95 = arith.mulf %94, %94 : vector<16x16xf32>
    %96 = arith.addf %93, %95 : vector<16x16xf32>
    %97 = arith.subf %73, %85 : vector<16x16xf32>
    %98 = arith.mulf %97, %97 : vector<16x16xf32>
    %99 = arith.addf %96, %98 : vector<16x16xf32>
    %100 = arith.subf %74, %85 : vector<16x16xf32>
    %101 = arith.mulf %100, %100 : vector<16x16xf32>
    %102 = arith.addf %99, %101 : vector<16x16xf32>
    %103 = arith.subf %75, %85 : vector<16x16xf32>
    %104 = arith.mulf %103, %103 : vector<16x16xf32>
    %105 = arith.addf %102, %104 : vector<16x16xf32>
    %106 = arith.subf %76, %85 : vector<16x16xf32>
    %107 = arith.mulf %106, %106 : vector<16x16xf32>
    %108 = arith.addf %105, %107 : vector<16x16xf32>
    %109 = arith.mulf %85, %85 : vector<16x16xf32>
    %cst_13 = arith.constant 1.000000e+00 : f32
    %110 = vector.broadcast %cst_13 : f32 to vector<16x16xf32>
    %111 = arith.mulf %109, %110 : vector<16x16xf32>
    %112 = arith.addf %108, %111 : vector<16x16xf32>
    %cst_14 = arith.constant 1.250000e-01 : f32
    %113 = vector.broadcast %cst_14 : f32 to vector<16x16xf32>
    %114 = arith.mulf %112, %113 : vector<16x16xf32>
    %cst_15 = arith.constant 0.000000e+00 : f32
    %115 = vector.broadcast %cst_15 : f32 to vector<16x16xf32>
    %116 = arith.maximumf %114, %115 : vector<16x16xf32>
    %117 = math.sqrt %116 : vector<16x16xf32>
    %cst_16 = arith.constant 1.000000e-01 : f32
    %118 = vector.broadcast %cst_16 : f32 to vector<16x16xf32>
    %119 = arith.mulf %118, %117 : vector<16x16xf32>
    %cst_17 = arith.constant 9.99999993E-9 : f32
    %120 = vector.broadcast %cst_17 : f32 to vector<16x16xf32>
    %121 = arith.addf %120, %119 : vector<16x16xf32>
    %122 = tpu.reciprocal %121 {approx = true} : vector<16x16xf32> -> vector<16x16xf32>
    %123 = arith.mulf %121, %122 : vector<16x16xf32>
    %cst_18 = arith.constant 2.000000e+00 : f32
    %124 = vector.broadcast %cst_18 : f32 to vector<16x16xf32>
    %125 = arith.subf %124, %123 : vector<16x16xf32>
    %126 = arith.mulf %122, %125 : vector<16x16xf32>
    %127 = vector.extract_strided_slice %10 {offsets = [0, 1, 0, 0], sizes = [1, 1, 16, 16], strides = [1, 1, 1, 1]} : vector<1x4x16x16xf32> to vector<1x1x16x16xf32>
    %128 = vector.shape_cast %127 : vector<1x1x16x16xf32> to vector<16x16xf32>
    %c1_i32_19 = arith.constant 1 : i32
    %129 = tpu.dynamic_rotate %128 by %c1_i32_19 dim 0 : vector<16x16xf32>, i32 -> vector<16x16xf32>
    %130 = vector.extract_strided_slice %128 {offsets = [0, 0], sizes = [1, 16], strides = [1, 1]} : vector<16x16xf32> to vector<1x16xf32>
    %131 = vector.shape_cast %5 : vector<16x1xi1> to vector<16x1xi1>
    %132 = vector.broadcast %131 : vector<16x1xi1> to vector<16x16xi1>
    %133 = vector.shape_cast %130 : vector<1x16xf32> to vector<1x16xf32>
    %134 = vector.broadcast %133 : vector<1x16xf32> to vector<16x16xf32>
    %135 = arith.select %132, %134, %129 : vector<16x16xi1>, vector<16x16xf32>
    %c15_i32_20 = arith.constant 15 : i32
    %136 = tpu.dynamic_rotate %128 by %c15_i32_20 dim 0 : vector<16x16xf32>, i32 -> vector<16x16xf32>
    %137 = vector.extract_strided_slice %128 {offsets = [15, 0], sizes = [1, 16], strides = [1, 1]} : vector<16x16xf32> to vector<1x16xf32>
    %138 = vector.shape_cast %3 : vector<16x1xi1> to vector<16x1xi1>
    %139 = vector.broadcast %138 : vector<16x1xi1> to vector<16x16xi1>
    %140 = vector.shape_cast %137 : vector<1x16xf32> to vector<1x16xf32>
    %141 = vector.broadcast %140 : vector<1x16xf32> to vector<16x16xf32>
    %142 = arith.select %139, %141, %136 : vector<16x16xi1>, vector<16x16xf32>
    %c1_i32_21 = arith.constant 1 : i32
    %143 = tpu.dynamic_rotate %135 by %c1_i32_21 dim 1 : vector<16x16xf32>, i32 -> vector<16x16xf32>
    %144 = vector.extract_strided_slice %135 {offsets = [0, 0], sizes = [16, 1], strides = [1, 1]} : vector<16x16xf32> to vector<16x1xf32>
    %145 = vector.shape_cast %9 : vector<1x16xi1> to vector<1x16xi1>
    %146 = vector.broadcast %145 : vector<1x16xi1> to vector<16x16xi1>
    %147 = vector.shape_cast %144 : vector<16x1xf32> to vector<16x1xf32>
    %148 = vector.broadcast %147 : vector<16x1xf32> to vector<16x16xf32>
    %149 = arith.select %146, %148, %143 : vector<16x16xi1>, vector<16x16xf32>
    %c15_i32_22 = arith.constant 15 : i32
    %150 = tpu.dynamic_rotate %135 by %c15_i32_22 dim 1 : vector<16x16xf32>, i32 -> vector<16x16xf32>
    %151 = vector.extract_strided_slice %135 {offsets = [0, 15], sizes = [16, 1], strides = [1, 1]} : vector<16x16xf32> to vector<16x1xf32>
    %152 = vector.shape_cast %7 : vector<1x16xi1> to vector<1x16xi1>
    %153 = vector.broadcast %152 : vector<1x16xi1> to vector<16x16xi1>
    %154 = vector.shape_cast %151 : vector<16x1xf32> to vector<16x1xf32>
    %155 = vector.broadcast %154 : vector<16x1xf32> to vector<16x16xf32>
    %156 = arith.select %153, %155, %150 : vector<16x16xi1>, vector<16x16xf32>
    %c1_i32_23 = arith.constant 1 : i32
    %157 = tpu.dynamic_rotate %128 by %c1_i32_23 dim 1 : vector<16x16xf32>, i32 -> vector<16x16xf32>
    %158 = vector.extract_strided_slice %128 {offsets = [0, 0], sizes = [16, 1], strides = [1, 1]} : vector<16x16xf32> to vector<16x1xf32>
    %159 = vector.shape_cast %9 : vector<1x16xi1> to vector<1x16xi1>
    %160 = vector.broadcast %159 : vector<1x16xi1> to vector<16x16xi1>
    %161 = vector.shape_cast %158 : vector<16x1xf32> to vector<16x1xf32>
    %162 = vector.broadcast %161 : vector<16x1xf32> to vector<16x16xf32>
    %163 = arith.select %160, %162, %157 : vector<16x16xi1>, vector<16x16xf32>
    %c15_i32_24 = arith.constant 15 : i32
    %164 = tpu.dynamic_rotate %128 by %c15_i32_24 dim 1 : vector<16x16xf32>, i32 -> vector<16x16xf32>
    %165 = vector.extract_strided_slice %128 {offsets = [0, 15], sizes = [16, 1], strides = [1, 1]} : vector<16x16xf32> to vector<16x1xf32>
    %166 = vector.shape_cast %7 : vector<1x16xi1> to vector<1x16xi1>
    %167 = vector.broadcast %166 : vector<1x16xi1> to vector<16x16xi1>
    %168 = vector.shape_cast %165 : vector<16x1xf32> to vector<16x1xf32>
    %169 = vector.broadcast %168 : vector<16x1xf32> to vector<16x16xf32>
    %170 = arith.select %167, %169, %164 : vector<16x16xi1>, vector<16x16xf32>
    %c1_i32_25 = arith.constant 1 : i32
    %171 = tpu.dynamic_rotate %142 by %c1_i32_25 dim 1 : vector<16x16xf32>, i32 -> vector<16x16xf32>
    %172 = vector.extract_strided_slice %142 {offsets = [0, 0], sizes = [16, 1], strides = [1, 1]} : vector<16x16xf32> to vector<16x1xf32>
    %173 = vector.shape_cast %9 : vector<1x16xi1> to vector<1x16xi1>
    %174 = vector.broadcast %173 : vector<1x16xi1> to vector<16x16xi1>
    %175 = vector.shape_cast %172 : vector<16x1xf32> to vector<16x1xf32>
    %176 = vector.broadcast %175 : vector<16x1xf32> to vector<16x16xf32>
    %177 = arith.select %174, %176, %171 : vector<16x16xi1>, vector<16x16xf32>
    %c15_i32_26 = arith.constant 15 : i32
    %178 = tpu.dynamic_rotate %142 by %c15_i32_26 dim 1 : vector<16x16xf32>, i32 -> vector<16x16xf32>
    %179 = vector.extract_strided_slice %142 {offsets = [0, 15], sizes = [16, 1], strides = [1, 1]} : vector<16x16xf32> to vector<16x1xf32>
    %180 = vector.shape_cast %7 : vector<1x16xi1> to vector<1x16xi1>
    %181 = vector.broadcast %180 : vector<1x16xi1> to vector<16x16xi1>
    %182 = vector.shape_cast %179 : vector<16x1xf32> to vector<16x1xf32>
    %183 = vector.broadcast %182 : vector<16x1xf32> to vector<16x16xf32>
    %184 = arith.select %181, %183, %178 : vector<16x16xi1>, vector<16x16xf32>
    %185 = arith.subf %149, %128 : vector<16x16xf32>
    %186 = arith.subf %135, %128 : vector<16x16xf32>
    %187 = arith.subf %156, %128 : vector<16x16xf32>
    %188 = arith.subf %163, %128 : vector<16x16xf32>
    %189 = arith.subf %170, %128 : vector<16x16xf32>
    %190 = arith.subf %177, %128 : vector<16x16xf32>
    %191 = arith.subf %142, %128 : vector<16x16xf32>
    %192 = arith.subf %184, %128 : vector<16x16xf32>
    %193 = arith.addf %185, %186 : vector<16x16xf32>
    %194 = arith.addf %193, %187 : vector<16x16xf32>
    %195 = arith.addf %194, %188 : vector<16x16xf32>
    %196 = arith.addf %195, %189 : vector<16x16xf32>
    %197 = arith.addf %196, %190 : vector<16x16xf32>
    %198 = arith.addf %197, %191 : vector<16x16xf32>
    %199 = arith.addf %198, %192 : vector<16x16xf32>
    %cst_27 = arith.constant 0.111111112 : f32
    %200 = vector.broadcast %cst_27 : f32 to vector<16x16xf32>
    %201 = arith.mulf %199, %200 : vector<16x16xf32>
    %202 = arith.subf %185, %201 : vector<16x16xf32>
    %203 = arith.mulf %202, %202 : vector<16x16xf32>
    %204 = arith.subf %186, %201 : vector<16x16xf32>
    %205 = arith.mulf %204, %204 : vector<16x16xf32>
    %206 = arith.addf %203, %205 : vector<16x16xf32>
    %207 = arith.subf %187, %201 : vector<16x16xf32>
    %208 = arith.mulf %207, %207 : vector<16x16xf32>
    %209 = arith.addf %206, %208 : vector<16x16xf32>
    %210 = arith.subf %188, %201 : vector<16x16xf32>
    %211 = arith.mulf %210, %210 : vector<16x16xf32>
    %212 = arith.addf %209, %211 : vector<16x16xf32>
    %213 = arith.subf %189, %201 : vector<16x16xf32>
    %214 = arith.mulf %213, %213 : vector<16x16xf32>
    %215 = arith.addf %212, %214 : vector<16x16xf32>
    %216 = arith.subf %190, %201 : vector<16x16xf32>
    %217 = arith.mulf %216, %216 : vector<16x16xf32>
    %218 = arith.addf %215, %217 : vector<16x16xf32>
    %219 = arith.subf %191, %201 : vector<16x16xf32>
    %220 = arith.mulf %219, %219 : vector<16x16xf32>
    %221 = arith.addf %218, %220 : vector<16x16xf32>
    %222 = arith.subf %192, %201 : vector<16x16xf32>
    %223 = arith.mulf %222, %222 : vector<16x16xf32>
    %224 = arith.addf %221, %223 : vector<16x16xf32>
    %225 = arith.mulf %201, %201 : vector<16x16xf32>
    %cst_28 = arith.constant 1.000000e+00 : f32
    %226 = vector.broadcast %cst_28 : f32 to vector<16x16xf32>
    %227 = arith.mulf %225, %226 : vector<16x16xf32>
    %228 = arith.addf %224, %227 : vector<16x16xf32>
    %cst_29 = arith.constant 1.250000e-01 : f32
    %229 = vector.broadcast %cst_29 : f32 to vector<16x16xf32>
    %230 = arith.mulf %228, %229 : vector<16x16xf32>
    %cst_30 = arith.constant 0.000000e+00 : f32
    %231 = vector.broadcast %cst_30 : f32 to vector<16x16xf32>
    %232 = arith.maximumf %230, %231 : vector<16x16xf32>
    %233 = math.sqrt %232 : vector<16x16xf32>
    %cst_31 = arith.constant 1.000000e-01 : f32
    %234 = vector.broadcast %cst_31 : f32 to vector<16x16xf32>
    %235 = arith.mulf %234, %233 : vector<16x16xf32>
    %cst_32 = arith.constant 9.99999993E-9 : f32
    %236 = vector.broadcast %cst_32 : f32 to vector<16x16xf32>
    %237 = arith.addf %236, %235 : vector<16x16xf32>
    %238 = tpu.reciprocal %237 {approx = true} : vector<16x16xf32> -> vector<16x16xf32>
    %239 = arith.mulf %237, %238 : vector<16x16xf32>
    %cst_33 = arith.constant 2.000000e+00 : f32
    %240 = vector.broadcast %cst_33 : f32 to vector<16x16xf32>
    %241 = arith.subf %240, %239 : vector<16x16xf32>
    %242 = arith.mulf %238, %241 : vector<16x16xf32>
    %243 = vector.extract_strided_slice %10 {offsets = [0, 2, 0, 0], sizes = [1, 1, 16, 16], strides = [1, 1, 1, 1]} : vector<1x4x16x16xf32> to vector<1x1x16x16xf32>
    %244 = vector.shape_cast %243 : vector<1x1x16x16xf32> to vector<16x16xf32>
    %c1_i32_34 = arith.constant 1 : i32
    %245 = tpu.dynamic_rotate %244 by %c1_i32_34 dim 0 : vector<16x16xf32>, i32 -> vector<16x16xf32>
    %246 = vector.extract_strided_slice %244 {offsets = [0, 0], sizes = [1, 16], strides = [1, 1]} : vector<16x16xf32> to vector<1x16xf32>
    %247 = vector.shape_cast %5 : vector<16x1xi1> to vector<16x1xi1>
    %248 = vector.broadcast %247 : vector<16x1xi1> to vector<16x16xi1>
    %249 = vector.shape_cast %246 : vector<1x16xf32> to vector<1x16xf32>
    %250 = vector.broadcast %249 : vector<1x16xf32> to vector<16x16xf32>
    %251 = arith.select %248, %250, %245 : vector<16x16xi1>, vector<16x16xf32>
    %c15_i32_35 = arith.constant 15 : i32
    %252 = tpu.dynamic_rotate %244 by %c15_i32_35 dim 0 : vector<16x16xf32>, i32 -> vector<16x16xf32>
    %253 = vector.extract_strided_slice %244 {offsets = [15, 0], sizes = [1, 16], strides = [1, 1]} : vector<16x16xf32> to vector<1x16xf32>
    %254 = vector.shape_cast %3 : vector<16x1xi1> to vector<16x1xi1>
    %255 = vector.broadcast %254 : vector<16x1xi1> to vector<16x16xi1>
    %256 = vector.shape_cast %253 : vector<1x16xf32> to vector<1x16xf32>
    %257 = vector.broadcast %256 : vector<1x16xf32> to vector<16x16xf32>
    %258 = arith.select %255, %257, %252 : vector<16x16xi1>, vector<16x16xf32>
    %c1_i32_36 = arith.constant 1 : i32
    %259 = tpu.dynamic_rotate %251 by %c1_i32_36 dim 1 : vector<16x16xf32>, i32 -> vector<16x16xf32>
    %260 = vector.extract_strided_slice %251 {offsets = [0, 0], sizes = [16, 1], strides = [1, 1]} : vector<16x16xf32> to vector<16x1xf32>
    %261 = vector.shape_cast %9 : vector<1x16xi1> to vector<1x16xi1>
    %262 = vector.broadcast %261 : vector<1x16xi1> to vector<16x16xi1>
    %263 = vector.shape_cast %260 : vector<16x1xf32> to vector<16x1xf32>
    %264 = vector.broadcast %263 : vector<16x1xf32> to vector<16x16xf32>
    %265 = arith.select %262, %264, %259 : vector<16x16xi1>, vector<16x16xf32>
    %c15_i32_37 = arith.constant 15 : i32
    %266 = tpu.dynamic_rotate %251 by %c15_i32_37 dim 1 : vector<16x16xf32>, i32 -> vector<16x16xf32>
    %267 = vector.extract_strided_slice %251 {offsets = [0, 15], sizes = [16, 1], strides = [1, 1]} : vector<16x16xf32> to vector<16x1xf32>
    %268 = vector.shape_cast %7 : vector<1x16xi1> to vector<1x16xi1>
    %269 = vector.broadcast %268 : vector<1x16xi1> to vector<16x16xi1>
    %270 = vector.shape_cast %267 : vector<16x1xf32> to vector<16x1xf32>
    %271 = vector.broadcast %270 : vector<16x1xf32> to vector<16x16xf32>
    %272 = arith.select %269, %271, %266 : vector<16x16xi1>, vector<16x16xf32>
    %c1_i32_38 = arith.constant 1 : i32
    %273 = tpu.dynamic_rotate %244 by %c1_i32_38 dim 1 : vector<16x16xf32>, i32 -> vector<16x16xf32>
    %274 = vector.extract_strided_slice %244 {offsets = [0, 0], sizes = [16, 1], strides = [1, 1]} : vector<16x16xf32> to vector<16x1xf32>
    %275 = vector.shape_cast %9 : vector<1x16xi1> to vector<1x16xi1>
    %276 = vector.broadcast %275 : vector<1x16xi1> to vector<16x16xi1>
    %277 = vector.shape_cast %274 : vector<16x1xf32> to vector<16x1xf32>
    %278 = vector.broadcast %277 : vector<16x1xf32> to vector<16x16xf32>
    %279 = arith.select %276, %278, %273 : vector<16x16xi1>, vector<16x16xf32>
    %c15_i32_39 = arith.constant 15 : i32
    %280 = tpu.dynamic_rotate %244 by %c15_i32_39 dim 1 : vector<16x16xf32>, i32 -> vector<16x16xf32>
    %281 = vector.extract_strided_slice %244 {offsets = [0, 15], sizes = [16, 1], strides = [1, 1]} : vector<16x16xf32> to vector<16x1xf32>
    %282 = vector.shape_cast %7 : vector<1x16xi1> to vector<1x16xi1>
    %283 = vector.broadcast %282 : vector<1x16xi1> to vector<16x16xi1>
    %284 = vector.shape_cast %281 : vector<16x1xf32> to vector<16x1xf32>
    %285 = vector.broadcast %284 : vector<16x1xf32> to vector<16x16xf32>
    %286 = arith.select %283, %285, %280 : vector<16x16xi1>, vector<16x16xf32>
    %c1_i32_40 = arith.constant 1 : i32
    %287 = tpu.dynamic_rotate %258 by %c1_i32_40 dim 1 : vector<16x16xf32>, i32 -> vector<16x16xf32>
    %288 = vector.extract_strided_slice %258 {offsets = [0, 0], sizes = [16, 1], strides = [1, 1]} : vector<16x16xf32> to vector<16x1xf32>
    %289 = vector.shape_cast %9 : vector<1x16xi1> to vector<1x16xi1>
    %290 = vector.broadcast %289 : vector<1x16xi1> to vector<16x16xi1>
    %291 = vector.shape_cast %288 : vector<16x1xf32> to vector<16x1xf32>
    %292 = vector.broadcast %291 : vector<16x1xf32> to vector<16x16xf32>
    %293 = arith.select %290, %292, %287 : vector<16x16xi1>, vector<16x16xf32>
    %c15_i32_41 = arith.constant 15 : i32
    %294 = tpu.dynamic_rotate %258 by %c15_i32_41 dim 1 : vector<16x16xf32>, i32 -> vector<16x16xf32>
    %295 = vector.extract_strided_slice %258 {offsets = [0, 15], sizes = [16, 1], strides = [1, 1]} : vector<16x16xf32> to vector<16x1xf32>
    %296 = vector.shape_cast %7 : vector<1x16xi1> to vector<1x16xi1>
    %297 = vector.broadcast %296 : vector<1x16xi1> to vector<16x16xi1>
    %298 = vector.shape_cast %295 : vector<16x1xf32> to vector<16x1xf32>
    %299 = vector.broadcast %298 : vector<16x1xf32> to vector<16x16xf32>
    %300 = arith.select %297, %299, %294 : vector<16x16xi1>, vector<16x16xf32>
    %301 = arith.subf %265, %244 : vector<16x16xf32>
    %302 = arith.subf %251, %244 : vector<16x16xf32>
    %303 = arith.subf %272, %244 : vector<16x16xf32>
    %304 = arith.subf %279, %244 : vector<16x16xf32>
    %305 = arith.subf %286, %244 : vector<16x16xf32>
    %306 = arith.subf %293, %244 : vector<16x16xf32>
    %307 = arith.subf %258, %244 : vector<16x16xf32>
    %308 = arith.subf %300, %244 : vector<16x16xf32>
    %309 = arith.addf %301, %302 : vector<16x16xf32>
    %310 = arith.addf %309, %303 : vector<16x16xf32>
    %311 = arith.addf %310, %304 : vector<16x16xf32>
    %312 = arith.addf %311, %305 : vector<16x16xf32>
    %313 = arith.addf %312, %306 : vector<16x16xf32>
    %314 = arith.addf %313, %307 : vector<16x16xf32>
    %315 = arith.addf %314, %308 : vector<16x16xf32>
    %cst_42 = arith.constant 0.111111112 : f32
    %316 = vector.broadcast %cst_42 : f32 to vector<16x16xf32>
    %317 = arith.mulf %315, %316 : vector<16x16xf32>
    %318 = arith.subf %301, %317 : vector<16x16xf32>
    %319 = arith.mulf %318, %318 : vector<16x16xf32>
    %320 = arith.subf %302, %317 : vector<16x16xf32>
    %321 = arith.mulf %320, %320 : vector<16x16xf32>
    %322 = arith.addf %319, %321 : vector<16x16xf32>
    %323 = arith.subf %303, %317 : vector<16x16xf32>
    %324 = arith.mulf %323, %323 : vector<16x16xf32>
    %325 = arith.addf %322, %324 : vector<16x16xf32>
    %326 = arith.subf %304, %317 : vector<16x16xf32>
    %327 = arith.mulf %326, %326 : vector<16x16xf32>
    %328 = arith.addf %325, %327 : vector<16x16xf32>
    %329 = arith.subf %305, %317 : vector<16x16xf32>
    %330 = arith.mulf %329, %329 : vector<16x16xf32>
    %331 = arith.addf %328, %330 : vector<16x16xf32>
    %332 = arith.subf %306, %317 : vector<16x16xf32>
    %333 = arith.mulf %332, %332 : vector<16x16xf32>
    %334 = arith.addf %331, %333 : vector<16x16xf32>
    %335 = arith.subf %307, %317 : vector<16x16xf32>
    %336 = arith.mulf %335, %335 : vector<16x16xf32>
    %337 = arith.addf %334, %336 : vector<16x16xf32>
    %338 = arith.subf %308, %317 : vector<16x16xf32>
    %339 = arith.mulf %338, %338 : vector<16x16xf32>
    %340 = arith.addf %337, %339 : vector<16x16xf32>
    %341 = arith.mulf %317, %317 : vector<16x16xf32>
    %cst_43 = arith.constant 1.000000e+00 : f32
    %342 = vector.broadcast %cst_43 : f32 to vector<16x16xf32>
    %343 = arith.mulf %341, %342 : vector<16x16xf32>
    %344 = arith.addf %340, %343 : vector<16x16xf32>
    %cst_44 = arith.constant 1.250000e-01 : f32
    %345 = vector.broadcast %cst_44 : f32 to vector<16x16xf32>
    %346 = arith.mulf %344, %345 : vector<16x16xf32>
    %cst_45 = arith.constant 0.000000e+00 : f32
    %347 = vector.broadcast %cst_45 : f32 to vector<16x16xf32>
    %348 = arith.maximumf %346, %347 : vector<16x16xf32>
    %349 = math.sqrt %348 : vector<16x16xf32>
    %cst_46 = arith.constant 1.000000e-01 : f32
    %350 = vector.broadcast %cst_46 : f32 to vector<16x16xf32>
    %351 = arith.mulf %350, %349 : vector<16x16xf32>
    %cst_47 = arith.constant 9.99999993E-9 : f32
    %352 = vector.broadcast %cst_47 : f32 to vector<16x16xf32>
    %353 = arith.addf %352, %351 : vector<16x16xf32>
    %354 = tpu.reciprocal %353 {approx = true} : vector<16x16xf32> -> vector<16x16xf32>
    %355 = arith.mulf %353, %354 : vector<16x16xf32>
    %cst_48 = arith.constant 2.000000e+00 : f32
    %356 = vector.broadcast %cst_48 : f32 to vector<16x16xf32>
    %357 = arith.subf %356, %355 : vector<16x16xf32>
    %358 = arith.mulf %354, %357 : vector<16x16xf32>
    %359 = vector.extract_strided_slice %10 {offsets = [0, 3, 0, 0], sizes = [1, 1, 16, 16], strides = [1, 1, 1, 1]} : vector<1x4x16x16xf32> to vector<1x1x16x16xf32>
    %360 = vector.shape_cast %359 : vector<1x1x16x16xf32> to vector<16x16xf32>
    %c1_i32_49 = arith.constant 1 : i32
    %361 = tpu.dynamic_rotate %360 by %c1_i32_49 dim 0 : vector<16x16xf32>, i32 -> vector<16x16xf32>
    %362 = vector.extract_strided_slice %360 {offsets = [0, 0], sizes = [1, 16], strides = [1, 1]} : vector<16x16xf32> to vector<1x16xf32>
    %363 = vector.shape_cast %5 : vector<16x1xi1> to vector<16x1xi1>
    %364 = vector.broadcast %363 : vector<16x1xi1> to vector<16x16xi1>
    %365 = vector.shape_cast %362 : vector<1x16xf32> to vector<1x16xf32>
    %366 = vector.broadcast %365 : vector<1x16xf32> to vector<16x16xf32>
    %367 = arith.select %364, %366, %361 : vector<16x16xi1>, vector<16x16xf32>
    %c15_i32_50 = arith.constant 15 : i32
    %368 = tpu.dynamic_rotate %360 by %c15_i32_50 dim 0 : vector<16x16xf32>, i32 -> vector<16x16xf32>
    %369 = vector.extract_strided_slice %360 {offsets = [15, 0], sizes = [1, 16], strides = [1, 1]} : vector<16x16xf32> to vector<1x16xf32>
    %370 = vector.shape_cast %3 : vector<16x1xi1> to vector<16x1xi1>
    %371 = vector.broadcast %370 : vector<16x1xi1> to vector<16x16xi1>
    %372 = vector.shape_cast %369 : vector<1x16xf32> to vector<1x16xf32>
    %373 = vector.broadcast %372 : vector<1x16xf32> to vector<16x16xf32>
    %374 = arith.select %371, %373, %368 : vector<16x16xi1>, vector<16x16xf32>
    %c1_i32_51 = arith.constant 1 : i32
    %375 = tpu.dynamic_rotate %367 by %c1_i32_51 dim 1 : vector<16x16xf32>, i32 -> vector<16x16xf32>
    %376 = vector.extract_strided_slice %367 {offsets = [0, 0], sizes = [16, 1], strides = [1, 1]} : vector<16x16xf32> to vector<16x1xf32>
    %377 = vector.shape_cast %9 : vector<1x16xi1> to vector<1x16xi1>
    %378 = vector.broadcast %377 : vector<1x16xi1> to vector<16x16xi1>
    %379 = vector.shape_cast %376 : vector<16x1xf32> to vector<16x1xf32>
    %380 = vector.broadcast %379 : vector<16x1xf32> to vector<16x16xf32>
    %381 = arith.select %378, %380, %375 : vector<16x16xi1>, vector<16x16xf32>
    %c15_i32_52 = arith.constant 15 : i32
    %382 = tpu.dynamic_rotate %367 by %c15_i32_52 dim 1 : vector<16x16xf32>, i32 -> vector<16x16xf32>
    %383 = vector.extract_strided_slice %367 {offsets = [0, 15], sizes = [16, 1], strides = [1, 1]} : vector<16x16xf32> to vector<16x1xf32>
    %384 = vector.shape_cast %7 : vector<1x16xi1> to vector<1x16xi1>
    %385 = vector.broadcast %384 : vector<1x16xi1> to vector<16x16xi1>
    %386 = vector.shape_cast %383 : vector<16x1xf32> to vector<16x1xf32>
    %387 = vector.broadcast %386 : vector<16x1xf32> to vector<16x16xf32>
    %388 = arith.select %385, %387, %382 : vector<16x16xi1>, vector<16x16xf32>
    %c1_i32_53 = arith.constant 1 : i32
    %389 = tpu.dynamic_rotate %360 by %c1_i32_53 dim 1 : vector<16x16xf32>, i32 -> vector<16x16xf32>
    %390 = vector.extract_strided_slice %360 {offsets = [0, 0], sizes = [16, 1], strides = [1, 1]} : vector<16x16xf32> to vector<16x1xf32>
    %391 = vector.shape_cast %9 : vector<1x16xi1> to vector<1x16xi1>
    %392 = vector.broadcast %391 : vector<1x16xi1> to vector<16x16xi1>
    %393 = vector.shape_cast %390 : vector<16x1xf32> to vector<16x1xf32>
    %394 = vector.broadcast %393 : vector<16x1xf32> to vector<16x16xf32>
    %395 = arith.select %392, %394, %389 : vector<16x16xi1>, vector<16x16xf32>
    %c15_i32_54 = arith.constant 15 : i32
    %396 = tpu.dynamic_rotate %360 by %c15_i32_54 dim 1 : vector<16x16xf32>, i32 -> vector<16x16xf32>
    %397 = vector.extract_strided_slice %360 {offsets = [0, 15], sizes = [16, 1], strides = [1, 1]} : vector<16x16xf32> to vector<16x1xf32>
    %398 = vector.shape_cast %7 : vector<1x16xi1> to vector<1x16xi1>
    %399 = vector.broadcast %398 : vector<1x16xi1> to vector<16x16xi1>
    %400 = vector.shape_cast %397 : vector<16x1xf32> to vector<16x1xf32>
    %401 = vector.broadcast %400 : vector<16x1xf32> to vector<16x16xf32>
    %402 = arith.select %399, %401, %396 : vector<16x16xi1>, vector<16x16xf32>
    %c1_i32_55 = arith.constant 1 : i32
    %403 = tpu.dynamic_rotate %374 by %c1_i32_55 dim 1 : vector<16x16xf32>, i32 -> vector<16x16xf32>
    %404 = vector.extract_strided_slice %374 {offsets = [0, 0], sizes = [16, 1], strides = [1, 1]} : vector<16x16xf32> to vector<16x1xf32>
    %405 = vector.shape_cast %9 : vector<1x16xi1> to vector<1x16xi1>
    %406 = vector.broadcast %405 : vector<1x16xi1> to vector<16x16xi1>
    %407 = vector.shape_cast %404 : vector<16x1xf32> to vector<16x1xf32>
    %408 = vector.broadcast %407 : vector<16x1xf32> to vector<16x16xf32>
    %409 = arith.select %406, %408, %403 : vector<16x16xi1>, vector<16x16xf32>
    %c15_i32_56 = arith.constant 15 : i32
    %410 = tpu.dynamic_rotate %374 by %c15_i32_56 dim 1 : vector<16x16xf32>, i32 -> vector<16x16xf32>
    %411 = vector.extract_strided_slice %374 {offsets = [0, 15], sizes = [16, 1], strides = [1, 1]} : vector<16x16xf32> to vector<16x1xf32>
    %412 = vector.shape_cast %7 : vector<1x16xi1> to vector<1x16xi1>
    %413 = vector.broadcast %412 : vector<1x16xi1> to vector<16x16xi1>
    %414 = vector.shape_cast %411 : vector<16x1xf32> to vector<16x1xf32>
    %415 = vector.broadcast %414 : vector<16x1xf32> to vector<16x16xf32>
    %416 = arith.select %413, %415, %410 : vector<16x16xi1>, vector<16x16xf32>
    %417 = arith.subf %381, %360 : vector<16x16xf32>
    %418 = arith.subf %367, %360 : vector<16x16xf32>
    %419 = arith.subf %388, %360 : vector<16x16xf32>
    %420 = arith.subf %395, %360 : vector<16x16xf32>
    %421 = arith.subf %402, %360 : vector<16x16xf32>
    %422 = arith.subf %409, %360 : vector<16x16xf32>
    %423 = arith.subf %374, %360 : vector<16x16xf32>
    %424 = arith.subf %416, %360 : vector<16x16xf32>
    %425 = arith.addf %417, %418 : vector<16x16xf32>
    %426 = arith.addf %425, %419 : vector<16x16xf32>
    %427 = arith.addf %426, %420 : vector<16x16xf32>
    %428 = arith.addf %427, %421 : vector<16x16xf32>
    %429 = arith.addf %428, %422 : vector<16x16xf32>
    %430 = arith.addf %429, %423 : vector<16x16xf32>
    %431 = arith.addf %430, %424 : vector<16x16xf32>
    %cst_57 = arith.constant 0.111111112 : f32
    %432 = vector.broadcast %cst_57 : f32 to vector<16x16xf32>
    %433 = arith.mulf %431, %432 : vector<16x16xf32>
    %434 = arith.subf %417, %433 : vector<16x16xf32>
    %435 = arith.mulf %434, %434 : vector<16x16xf32>
    %436 = arith.subf %418, %433 : vector<16x16xf32>
    %437 = arith.mulf %436, %436 : vector<16x16xf32>
    %438 = arith.addf %435, %437 : vector<16x16xf32>
    %439 = arith.subf %419, %433 : vector<16x16xf32>
    %440 = arith.mulf %439, %439 : vector<16x16xf32>
    %441 = arith.addf %438, %440 : vector<16x16xf32>
    %442 = arith.subf %420, %433 : vector<16x16xf32>
    %443 = arith.mulf %442, %442 : vector<16x16xf32>
    %444 = arith.addf %441, %443 : vector<16x16xf32>
    %445 = arith.subf %421, %433 : vector<16x16xf32>
    %446 = arith.mulf %445, %445 : vector<16x16xf32>
    %447 = arith.addf %444, %446 : vector<16x16xf32>
    %448 = arith.subf %422, %433 : vector<16x16xf32>
    %449 = arith.mulf %448, %448 : vector<16x16xf32>
    %450 = arith.addf %447, %449 : vector<16x16xf32>
    %451 = arith.subf %423, %433 : vector<16x16xf32>
    %452 = arith.mulf %451, %451 : vector<16x16xf32>
    %453 = arith.addf %450, %452 : vector<16x16xf32>
    %454 = arith.subf %424, %433 : vector<16x16xf32>
    %455 = arith.mulf %454, %454 : vector<16x16xf32>
    %456 = arith.addf %453, %455 : vector<16x16xf32>
    %457 = arith.mulf %433, %433 : vector<16x16xf32>
    %cst_58 = arith.constant 1.000000e+00 : f32
    %458 = vector.broadcast %cst_58 : f32 to vector<16x16xf32>
    %459 = arith.mulf %457, %458 : vector<16x16xf32>
    %460 = arith.addf %456, %459 : vector<16x16xf32>
    %cst_59 = arith.constant 1.250000e-01 : f32
    %461 = vector.broadcast %cst_59 : f32 to vector<16x16xf32>
    %462 = arith.mulf %460, %461 : vector<16x16xf32>
    %cst_60 = arith.constant 0.000000e+00 : f32
    %463 = vector.broadcast %cst_60 : f32 to vector<16x16xf32>
    %464 = arith.maximumf %462, %463 : vector<16x16xf32>
    %465 = math.sqrt %464 : vector<16x16xf32>
    %cst_61 = arith.constant 1.000000e-01 : f32
    %466 = vector.broadcast %cst_61 : f32 to vector<16x16xf32>
    %467 = arith.mulf %466, %465 : vector<16x16xf32>
    %cst_62 = arith.constant 9.99999993E-9 : f32
    %468 = vector.broadcast %cst_62 : f32 to vector<16x16xf32>
    %469 = arith.addf %468, %467 : vector<16x16xf32>
    %470 = tpu.reciprocal %469 {approx = true} : vector<16x16xf32> -> vector<16x16xf32>
    %471 = arith.mulf %469, %470 : vector<16x16xf32>
    %cst_63 = arith.constant 2.000000e+00 : f32
    %472 = vector.broadcast %cst_63 : f32 to vector<16x16xf32>
    %473 = arith.subf %472, %471 : vector<16x16xf32>
    %474 = arith.mulf %470, %473 : vector<16x16xf32>
    %475 = math.absf %69 : vector<16x16xf32>
    %476 = arith.mulf %475, %126 : vector<16x16xf32>
    %477 = math.absf %185 : vector<16x16xf32>
    %478 = arith.mulf %477, %242 : vector<16x16xf32>
    %479 = arith.addf %476, %478 : vector<16x16xf32>
    %480 = math.absf %301 : vector<16x16xf32>
    %481 = arith.mulf %480, %358 : vector<16x16xf32>
    %482 = arith.addf %479, %481 : vector<16x16xf32>
    %483 = math.absf %417 : vector<16x16xf32>
    %484 = arith.mulf %483, %474 : vector<16x16xf32>
    %485 = arith.addf %482, %484 : vector<16x16xf32>
    %cst_64 = arith.constant 2.500000e-01 : f32
    %486 = vector.broadcast %cst_64 : f32 to vector<16x16xf32>
    %487 = arith.mulf %485, %486 : vector<16x16xf32>
    %cst_65 = arith.constant 0.000000e+00 : f32
    %488 = vector.broadcast %cst_65 : f32 to vector<16x16xf32>
    %489 = arith.subf %488, %487 : vector<16x16xf32>
    %490 = math.absf %70 : vector<16x16xf32>
    %491 = arith.mulf %490, %126 : vector<16x16xf32>
    %492 = math.absf %186 : vector<16x16xf32>
    %493 = arith.mulf %492, %242 : vector<16x16xf32>
    %494 = arith.addf %491, %493 : vector<16x16xf32>
    %495 = math.absf %302 : vector<16x16xf32>
    %496 = arith.mulf %495, %358 : vector<16x16xf32>
    %497 = arith.addf %494, %496 : vector<16x16xf32>
    %498 = math.absf %418 : vector<16x16xf32>
    %499 = arith.mulf %498, %474 : vector<16x16xf32>
    %500 = arith.addf %497, %499 : vector<16x16xf32>
    %cst_66 = arith.constant 2.500000e-01 : f32
    %501 = vector.broadcast %cst_66 : f32 to vector<16x16xf32>
    %502 = arith.mulf %500, %501 : vector<16x16xf32>
    %cst_67 = arith.constant 0.000000e+00 : f32
    %503 = vector.broadcast %cst_67 : f32 to vector<16x16xf32>
    %504 = arith.subf %503, %502 : vector<16x16xf32>
    %505 = math.absf %71 : vector<16x16xf32>
    %506 = arith.mulf %505, %126 : vector<16x16xf32>
    %507 = math.absf %187 : vector<16x16xf32>
    %508 = arith.mulf %507, %242 : vector<16x16xf32>
    %509 = arith.addf %506, %508 : vector<16x16xf32>
    %510 = math.absf %303 : vector<16x16xf32>
    %511 = arith.mulf %510, %358 : vector<16x16xf32>
    %512 = arith.addf %509, %511 : vector<16x16xf32>
    %513 = math.absf %419 : vector<16x16xf32>
    %514 = arith.mulf %513, %474 : vector<16x16xf32>
    %515 = arith.addf %512, %514 : vector<16x16xf32>
    %cst_68 = arith.constant 2.500000e-01 : f32
    %516 = vector.broadcast %cst_68 : f32 to vector<16x16xf32>
    %517 = arith.mulf %515, %516 : vector<16x16xf32>
    %cst_69 = arith.constant 0.000000e+00 : f32
    %518 = vector.broadcast %cst_69 : f32 to vector<16x16xf32>
    %519 = arith.subf %518, %517 : vector<16x16xf32>
    %520 = math.absf %72 : vector<16x16xf32>
    %521 = arith.mulf %520, %126 : vector<16x16xf32>
    %522 = math.absf %188 : vector<16x16xf32>
    %523 = arith.mulf %522, %242 : vector<16x16xf32>
    %524 = arith.addf %521, %523 : vector<16x16xf32>
    %525 = math.absf %304 : vector<16x16xf32>
    %526 = arith.mulf %525, %358 : vector<16x16xf32>
    %527 = arith.addf %524, %526 : vector<16x16xf32>
    %528 = math.absf %420 : vector<16x16xf32>
    %529 = arith.mulf %528, %474 : vector<16x16xf32>
    %530 = arith.addf %527, %529 : vector<16x16xf32>
    %cst_70 = arith.constant 2.500000e-01 : f32
    %531 = vector.broadcast %cst_70 : f32 to vector<16x16xf32>
    %532 = arith.mulf %530, %531 : vector<16x16xf32>
    %cst_71 = arith.constant 0.000000e+00 : f32
    %533 = vector.broadcast %cst_71 : f32 to vector<16x16xf32>
    %534 = arith.subf %533, %532 : vector<16x16xf32>
    %535 = math.absf %73 : vector<16x16xf32>
    %536 = arith.mulf %535, %126 : vector<16x16xf32>
    %537 = math.absf %189 : vector<16x16xf32>
    %538 = arith.mulf %537, %242 : vector<16x16xf32>
    %539 = arith.addf %536, %538 : vector<16x16xf32>
    %540 = math.absf %305 : vector<16x16xf32>
    %541 = arith.mulf %540, %358 : vector<16x16xf32>
    %542 = arith.addf %539, %541 : vector<16x16xf32>
    %543 = math.absf %421 : vector<16x16xf32>
    %544 = arith.mulf %543, %474 : vector<16x16xf32>
    %545 = arith.addf %542, %544 : vector<16x16xf32>
    %cst_72 = arith.constant 2.500000e-01 : f32
    %546 = vector.broadcast %cst_72 : f32 to vector<16x16xf32>
    %547 = arith.mulf %545, %546 : vector<16x16xf32>
    %cst_73 = arith.constant 0.000000e+00 : f32
    %548 = vector.broadcast %cst_73 : f32 to vector<16x16xf32>
    %549 = arith.subf %548, %547 : vector<16x16xf32>
    %550 = math.absf %74 : vector<16x16xf32>
    %551 = arith.mulf %550, %126 : vector<16x16xf32>
    %552 = math.absf %190 : vector<16x16xf32>
    %553 = arith.mulf %552, %242 : vector<16x16xf32>
    %554 = arith.addf %551, %553 : vector<16x16xf32>
    %555 = math.absf %306 : vector<16x16xf32>
    %556 = arith.mulf %555, %358 : vector<16x16xf32>
    %557 = arith.addf %554, %556 : vector<16x16xf32>
    %558 = math.absf %422 : vector<16x16xf32>
    %559 = arith.mulf %558, %474 : vector<16x16xf32>
    %560 = arith.addf %557, %559 : vector<16x16xf32>
    %cst_74 = arith.constant 2.500000e-01 : f32
    %561 = vector.broadcast %cst_74 : f32 to vector<16x16xf32>
    %562 = arith.mulf %560, %561 : vector<16x16xf32>
    %cst_75 = arith.constant 0.000000e+00 : f32
    %563 = vector.broadcast %cst_75 : f32 to vector<16x16xf32>
    %564 = arith.subf %563, %562 : vector<16x16xf32>
    %565 = math.absf %75 : vector<16x16xf32>
    %566 = arith.mulf %565, %126 : vector<16x16xf32>
    %567 = math.absf %191 : vector<16x16xf32>
    %568 = arith.mulf %567, %242 : vector<16x16xf32>
    %569 = arith.addf %566, %568 : vector<16x16xf32>
    %570 = math.absf %307 : vector<16x16xf32>
    %571 = arith.mulf %570, %358 : vector<16x16xf32>
    %572 = arith.addf %569, %571 : vector<16x16xf32>
    %573 = math.absf %423 : vector<16x16xf32>
    %574 = arith.mulf %573, %474 : vector<16x16xf32>
    %575 = arith.addf %572, %574 : vector<16x16xf32>
    %cst_76 = arith.constant 2.500000e-01 : f32
    %576 = vector.broadcast %cst_76 : f32 to vector<16x16xf32>
    %577 = arith.mulf %575, %576 : vector<16x16xf32>
    %cst_77 = arith.constant 0.000000e+00 : f32
    %578 = vector.broadcast %cst_77 : f32 to vector<16x16xf32>
    %579 = arith.subf %578, %577 : vector<16x16xf32>
    %580 = math.absf %76 : vector<16x16xf32>
    %581 = arith.mulf %580, %126 : vector<16x16xf32>
    %582 = math.absf %192 : vector<16x16xf32>
    %583 = arith.mulf %582, %242 : vector<16x16xf32>
    %584 = arith.addf %581, %583 : vector<16x16xf32>
    %585 = math.absf %308 : vector<16x16xf32>
    %586 = arith.mulf %585, %358 : vector<16x16xf32>
    %587 = arith.addf %584, %586 : vector<16x16xf32>
    %588 = math.absf %424 : vector<16x16xf32>
    %589 = arith.mulf %588, %474 : vector<16x16xf32>
    %590 = arith.addf %587, %589 : vector<16x16xf32>
    %cst_78 = arith.constant 2.500000e-01 : f32
    %591 = vector.broadcast %cst_78 : f32 to vector<16x16xf32>
    %592 = arith.mulf %590, %591 : vector<16x16xf32>
    %cst_79 = arith.constant 0.000000e+00 : f32
    %593 = vector.broadcast %cst_79 : f32 to vector<16x16xf32>
    %594 = arith.subf %593, %592 : vector<16x16xf32>
    %595 = arith.maximumf %489, %504 : vector<16x16xf32>
    %596 = arith.maximumf %595, %519 : vector<16x16xf32>
    %597 = arith.maximumf %596, %534 : vector<16x16xf32>
    %598 = arith.maximumf %597, %549 : vector<16x16xf32>
    %599 = arith.maximumf %598, %564 : vector<16x16xf32>
    %600 = arith.maximumf %599, %579 : vector<16x16xf32>
    %601 = arith.maximumf %600, %594 : vector<16x16xf32>
    %602 = arith.subf %489, %601 : vector<16x16xf32>
    %603 = math.exp %602 : vector<16x16xf32>
    %604 = arith.subf %504, %601 : vector<16x16xf32>
    %605 = math.exp %604 : vector<16x16xf32>
    %606 = arith.subf %519, %601 : vector<16x16xf32>
    %607 = math.exp %606 : vector<16x16xf32>
    %608 = arith.subf %534, %601 : vector<16x16xf32>
    %609 = math.exp %608 : vector<16x16xf32>
    %610 = arith.subf %549, %601 : vector<16x16xf32>
    %611 = math.exp %610 : vector<16x16xf32>
    %612 = arith.subf %564, %601 : vector<16x16xf32>
    %613 = math.exp %612 : vector<16x16xf32>
    %614 = arith.subf %579, %601 : vector<16x16xf32>
    %615 = math.exp %614 : vector<16x16xf32>
    %616 = arith.subf %594, %601 : vector<16x16xf32>
    %617 = math.exp %616 : vector<16x16xf32>
    %618 = arith.addf %603, %605 : vector<16x16xf32>
    %619 = arith.addf %618, %607 : vector<16x16xf32>
    %620 = arith.addf %619, %609 : vector<16x16xf32>
    %621 = arith.addf %620, %611 : vector<16x16xf32>
    %622 = arith.addf %621, %613 : vector<16x16xf32>
    %623 = arith.addf %622, %615 : vector<16x16xf32>
    %624 = arith.addf %623, %617 : vector<16x16xf32>
    %625 = tpu.reciprocal %624 {approx = true} : vector<16x16xf32> -> vector<16x16xf32>
    %626 = arith.mulf %624, %625 : vector<16x16xf32>
    %cst_80 = arith.constant 2.000000e+00 : f32
    %627 = vector.broadcast %cst_80 : f32 to vector<16x16xf32>
    %628 = arith.subf %627, %626 : vector<16x16xf32>
    %629 = arith.mulf %625, %628 : vector<16x16xf32>
    %630 = arith.mulf %603, %629 : vector<16x16xf32>
    %631 = arith.mulf %605, %629 : vector<16x16xf32>
    %632 = arith.mulf %607, %629 : vector<16x16xf32>
    %633 = arith.mulf %609, %629 : vector<16x16xf32>
    %634 = arith.mulf %611, %629 : vector<16x16xf32>
    %635 = arith.mulf %613, %629 : vector<16x16xf32>
    %636 = arith.mulf %615, %629 : vector<16x16xf32>
    %637 = arith.mulf %617, %629 : vector<16x16xf32>
    %c0_81 = arith.constant 0 : index
    %c0_82 = arith.constant 0 : index
    %638 = vector.load %arg3[%c0_81, %c0_82] : memref<16x8xf32, #tpu.memory_space<vmem>>, vector<16x8xf32>
    %c0_83 = arith.constant 0 : index
    %c0_84 = arith.constant 0 : index
    %639 = vector.load %arg4[%c0_83, %c0_84] : memref<8x16xf32, #tpu.memory_space<vmem>>, vector<8x16xf32>
    %c0_85 = arith.constant 0 : index
    %c0_86 = arith.constant 0 : index
    %c0_87 = arith.constant 0 : index
    %c0_88 = arith.constant 0 : index
    %640 = vector.load %arg2[%c0_85, %c0_86, %c0_87, %c0_88] : memref<1x3x8x8xf32, #tpu.memory_space<vmem>>, vector<1x3x8x8xf32>
    %641 = vector.shape_cast %640 : vector<1x3x8x8xf32> to vector<24x8xf32>
    %cst_89 = arith.constant dense<0.000000e+00> : vector<24x16xf32>
    %642 = tpu.matmul %641, %639, %cst_89 {dimension_numbers = #tpu.dot_dimension_numbers<[1], [0], [0], [1], [0, 0, 1, 1], [], []>} : vector<24x8xf32>, vector<8x16xf32>, vector<24x16xf32> -> vector<24x16xf32>
    %643 = vector.extract_strided_slice %642 {offsets = [0, 0], sizes = [8, 16], strides = [1, 1]} : vector<24x16xf32> to vector<8x16xf32>
    %cst_90 = arith.constant dense<0.000000e+00> : vector<16x16xf32>
    %644 = tpu.matmul %638, %643, %cst_90 {dimension_numbers = #tpu.dot_dimension_numbers<[1], [0], [0], [1], [0, 0, 1, 1], [], []>} : vector<16x8xf32>, vector<8x16xf32>, vector<16x16xf32> -> vector<16x16xf32>
    %645 = vector.extract_strided_slice %642 {offsets = [8, 0], sizes = [8, 16], strides = [1, 1]} : vector<24x16xf32> to vector<8x16xf32>
    %cst_91 = arith.constant dense<0.000000e+00> : vector<16x16xf32>
    %646 = tpu.matmul %638, %645, %cst_91 {dimension_numbers = #tpu.dot_dimension_numbers<[1], [0], [0], [1], [0, 0, 1, 1], [], []>} : vector<16x8xf32>, vector<8x16xf32>, vector<16x16xf32> -> vector<16x16xf32>
    %647 = vector.extract_strided_slice %642 {offsets = [16, 0], sizes = [8, 16], strides = [1, 1]} : vector<24x16xf32> to vector<8x16xf32>
    %cst_92 = arith.constant dense<0.000000e+00> : vector<16x16xf32>
    %648 = tpu.matmul %638, %647, %cst_92 {dimension_numbers = #tpu.dot_dimension_numbers<[1], [0], [0], [1], [0, 0, 1, 1], [], []>} : vector<16x8xf32>, vector<8x16xf32>, vector<16x16xf32> -> vector<16x16xf32>
    %c1_i32_93 = arith.constant 1 : i32
    %649 = tpu.dynamic_rotate %644 by %c1_i32_93 dim 0 : vector<16x16xf32>, i32 -> vector<16x16xf32>
    %650 = vector.extract_strided_slice %644 {offsets = [0, 0], sizes = [1, 16], strides = [1, 1]} : vector<16x16xf32> to vector<1x16xf32>
    %651 = vector.shape_cast %5 : vector<16x1xi1> to vector<16x1xi1>
    %652 = vector.broadcast %651 : vector<16x1xi1> to vector<16x16xi1>
    %653 = vector.shape_cast %650 : vector<1x16xf32> to vector<1x16xf32>
    %654 = vector.broadcast %653 : vector<1x16xf32> to vector<16x16xf32>
    %655 = arith.select %652, %654, %649 : vector<16x16xi1>, vector<16x16xf32>
    %c15_i32_94 = arith.constant 15 : i32
    %656 = tpu.dynamic_rotate %644 by %c15_i32_94 dim 0 : vector<16x16xf32>, i32 -> vector<16x16xf32>
    %657 = vector.extract_strided_slice %644 {offsets = [15, 0], sizes = [1, 16], strides = [1, 1]} : vector<16x16xf32> to vector<1x16xf32>
    %658 = vector.shape_cast %3 : vector<16x1xi1> to vector<16x1xi1>
    %659 = vector.broadcast %658 : vector<16x1xi1> to vector<16x16xi1>
    %660 = vector.shape_cast %657 : vector<1x16xf32> to vector<1x16xf32>
    %661 = vector.broadcast %660 : vector<1x16xf32> to vector<16x16xf32>
    %662 = arith.select %659, %661, %656 : vector<16x16xi1>, vector<16x16xf32>
    %c1_i32_95 = arith.constant 1 : i32
    %663 = tpu.dynamic_rotate %655 by %c1_i32_95 dim 1 : vector<16x16xf32>, i32 -> vector<16x16xf32>
    %664 = vector.extract_strided_slice %655 {offsets = [0, 0], sizes = [16, 1], strides = [1, 1]} : vector<16x16xf32> to vector<16x1xf32>
    %665 = vector.shape_cast %9 : vector<1x16xi1> to vector<1x16xi1>
    %666 = vector.broadcast %665 : vector<1x16xi1> to vector<16x16xi1>
    %667 = vector.shape_cast %664 : vector<16x1xf32> to vector<16x1xf32>
    %668 = vector.broadcast %667 : vector<16x1xf32> to vector<16x16xf32>
    %669 = arith.select %666, %668, %663 : vector<16x16xi1>, vector<16x16xf32>
    %c15_i32_96 = arith.constant 15 : i32
    %670 = tpu.dynamic_rotate %655 by %c15_i32_96 dim 1 : vector<16x16xf32>, i32 -> vector<16x16xf32>
    %671 = vector.extract_strided_slice %655 {offsets = [0, 15], sizes = [16, 1], strides = [1, 1]} : vector<16x16xf32> to vector<16x1xf32>
    %672 = vector.shape_cast %7 : vector<1x16xi1> to vector<1x16xi1>
    %673 = vector.broadcast %672 : vector<1x16xi1> to vector<16x16xi1>
    %674 = vector.shape_cast %671 : vector<16x1xf32> to vector<16x1xf32>
    %675 = vector.broadcast %674 : vector<16x1xf32> to vector<16x16xf32>
    %676 = arith.select %673, %675, %670 : vector<16x16xi1>, vector<16x16xf32>
    %c1_i32_97 = arith.constant 1 : i32
    %677 = tpu.dynamic_rotate %644 by %c1_i32_97 dim 1 : vector<16x16xf32>, i32 -> vector<16x16xf32>
    %678 = vector.extract_strided_slice %644 {offsets = [0, 0], sizes = [16, 1], strides = [1, 1]} : vector<16x16xf32> to vector<16x1xf32>
    %679 = vector.shape_cast %9 : vector<1x16xi1> to vector<1x16xi1>
    %680 = vector.broadcast %679 : vector<1x16xi1> to vector<16x16xi1>
    %681 = vector.shape_cast %678 : vector<16x1xf32> to vector<16x1xf32>
    %682 = vector.broadcast %681 : vector<16x1xf32> to vector<16x16xf32>
    %683 = arith.select %680, %682, %677 : vector<16x16xi1>, vector<16x16xf32>
    %c15_i32_98 = arith.constant 15 : i32
    %684 = tpu.dynamic_rotate %644 by %c15_i32_98 dim 1 : vector<16x16xf32>, i32 -> vector<16x16xf32>
    %685 = vector.extract_strided_slice %644 {offsets = [0, 15], sizes = [16, 1], strides = [1, 1]} : vector<16x16xf32> to vector<16x1xf32>
    %686 = vector.shape_cast %7 : vector<1x16xi1> to vector<1x16xi1>
    %687 = vector.broadcast %686 : vector<1x16xi1> to vector<16x16xi1>
    %688 = vector.shape_cast %685 : vector<16x1xf32> to vector<16x1xf32>
    %689 = vector.broadcast %688 : vector<16x1xf32> to vector<16x16xf32>
    %690 = arith.select %687, %689, %684 : vector<16x16xi1>, vector<16x16xf32>
    %c1_i32_99 = arith.constant 1 : i32
    %691 = tpu.dynamic_rotate %662 by %c1_i32_99 dim 1 : vector<16x16xf32>, i32 -> vector<16x16xf32>
    %692 = vector.extract_strided_slice %662 {offsets = [0, 0], sizes = [16, 1], strides = [1, 1]} : vector<16x16xf32> to vector<16x1xf32>
    %693 = vector.shape_cast %9 : vector<1x16xi1> to vector<1x16xi1>
    %694 = vector.broadcast %693 : vector<1x16xi1> to vector<16x16xi1>
    %695 = vector.shape_cast %692 : vector<16x1xf32> to vector<16x1xf32>
    %696 = vector.broadcast %695 : vector<16x1xf32> to vector<16x16xf32>
    %697 = arith.select %694, %696, %691 : vector<16x16xi1>, vector<16x16xf32>
    %c15_i32_100 = arith.constant 15 : i32
    %698 = tpu.dynamic_rotate %662 by %c15_i32_100 dim 1 : vector<16x16xf32>, i32 -> vector<16x16xf32>
    %699 = vector.extract_strided_slice %662 {offsets = [0, 15], sizes = [16, 1], strides = [1, 1]} : vector<16x16xf32> to vector<16x1xf32>
    %700 = vector.shape_cast %7 : vector<1x16xi1> to vector<1x16xi1>
    %701 = vector.broadcast %700 : vector<1x16xi1> to vector<16x16xi1>
    %702 = vector.shape_cast %699 : vector<16x1xf32> to vector<16x1xf32>
    %703 = vector.broadcast %702 : vector<16x1xf32> to vector<16x16xf32>
    %704 = arith.select %701, %703, %698 : vector<16x16xi1>, vector<16x16xf32>
    %705 = arith.mulf %669, %630 : vector<16x16xf32>
    %706 = arith.mulf %655, %631 : vector<16x16xf32>
    %707 = arith.addf %705, %706 : vector<16x16xf32>
    %708 = arith.mulf %676, %632 : vector<16x16xf32>
    %709 = arith.addf %707, %708 : vector<16x16xf32>
    %710 = arith.mulf %683, %633 : vector<16x16xf32>
    %711 = arith.addf %709, %710 : vector<16x16xf32>
    %712 = arith.mulf %690, %634 : vector<16x16xf32>
    %713 = arith.addf %711, %712 : vector<16x16xf32>
    %714 = arith.mulf %697, %635 : vector<16x16xf32>
    %715 = arith.addf %713, %714 : vector<16x16xf32>
    %716 = arith.mulf %662, %636 : vector<16x16xf32>
    %717 = arith.addf %715, %716 : vector<16x16xf32>
    %718 = arith.mulf %704, %637 : vector<16x16xf32>
    %719 = arith.addf %717, %718 : vector<16x16xf32>
    %c1_i32_101 = arith.constant 1 : i32
    %720 = tpu.dynamic_rotate %646 by %c1_i32_101 dim 0 : vector<16x16xf32>, i32 -> vector<16x16xf32>
    %721 = vector.extract_strided_slice %646 {offsets = [0, 0], sizes = [1, 16], strides = [1, 1]} : vector<16x16xf32> to vector<1x16xf32>
    %722 = vector.shape_cast %5 : vector<16x1xi1> to vector<16x1xi1>
    %723 = vector.broadcast %722 : vector<16x1xi1> to vector<16x16xi1>
    %724 = vector.shape_cast %721 : vector<1x16xf32> to vector<1x16xf32>
    %725 = vector.broadcast %724 : vector<1x16xf32> to vector<16x16xf32>
    %726 = arith.select %723, %725, %720 : vector<16x16xi1>, vector<16x16xf32>
    %c15_i32_102 = arith.constant 15 : i32
    %727 = tpu.dynamic_rotate %646 by %c15_i32_102 dim 0 : vector<16x16xf32>, i32 -> vector<16x16xf32>
    %728 = vector.extract_strided_slice %646 {offsets = [15, 0], sizes = [1, 16], strides = [1, 1]} : vector<16x16xf32> to vector<1x16xf32>
    %729 = vector.shape_cast %3 : vector<16x1xi1> to vector<16x1xi1>
    %730 = vector.broadcast %729 : vector<16x1xi1> to vector<16x16xi1>
    %731 = vector.shape_cast %728 : vector<1x16xf32> to vector<1x16xf32>
    %732 = vector.broadcast %731 : vector<1x16xf32> to vector<16x16xf32>
    %733 = arith.select %730, %732, %727 : vector<16x16xi1>, vector<16x16xf32>
    %c1_i32_103 = arith.constant 1 : i32
    %734 = tpu.dynamic_rotate %726 by %c1_i32_103 dim 1 : vector<16x16xf32>, i32 -> vector<16x16xf32>
    %735 = vector.extract_strided_slice %726 {offsets = [0, 0], sizes = [16, 1], strides = [1, 1]} : vector<16x16xf32> to vector<16x1xf32>
    %736 = vector.shape_cast %9 : vector<1x16xi1> to vector<1x16xi1>
    %737 = vector.broadcast %736 : vector<1x16xi1> to vector<16x16xi1>
    %738 = vector.shape_cast %735 : vector<16x1xf32> to vector<16x1xf32>
    %739 = vector.broadcast %738 : vector<16x1xf32> to vector<16x16xf32>
    %740 = arith.select %737, %739, %734 : vector<16x16xi1>, vector<16x16xf32>
    %c15_i32_104 = arith.constant 15 : i32
    %741 = tpu.dynamic_rotate %726 by %c15_i32_104 dim 1 : vector<16x16xf32>, i32 -> vector<16x16xf32>
    %742 = vector.extract_strided_slice %726 {offsets = [0, 15], sizes = [16, 1], strides = [1, 1]} : vector<16x16xf32> to vector<16x1xf32>
    %743 = vector.shape_cast %7 : vector<1x16xi1> to vector<1x16xi1>
    %744 = vector.broadcast %743 : vector<1x16xi1> to vector<16x16xi1>
    %745 = vector.shape_cast %742 : vector<16x1xf32> to vector<16x1xf32>
    %746 = vector.broadcast %745 : vector<16x1xf32> to vector<16x16xf32>
    %747 = arith.select %744, %746, %741 : vector<16x16xi1>, vector<16x16xf32>
    %c1_i32_105 = arith.constant 1 : i32
    %748 = tpu.dynamic_rotate %646 by %c1_i32_105 dim 1 : vector<16x16xf32>, i32 -> vector<16x16xf32>
    %749 = vector.extract_strided_slice %646 {offsets = [0, 0], sizes = [16, 1], strides = [1, 1]} : vector<16x16xf32> to vector<16x1xf32>
    %750 = vector.shape_cast %9 : vector<1x16xi1> to vector<1x16xi1>
    %751 = vector.broadcast %750 : vector<1x16xi1> to vector<16x16xi1>
    %752 = vector.shape_cast %749 : vector<16x1xf32> to vector<16x1xf32>
    %753 = vector.broadcast %752 : vector<16x1xf32> to vector<16x16xf32>
    %754 = arith.select %751, %753, %748 : vector<16x16xi1>, vector<16x16xf32>
    %c15_i32_106 = arith.constant 15 : i32
    %755 = tpu.dynamic_rotate %646 by %c15_i32_106 dim 1 : vector<16x16xf32>, i32 -> vector<16x16xf32>
    %756 = vector.extract_strided_slice %646 {offsets = [0, 15], sizes = [16, 1], strides = [1, 1]} : vector<16x16xf32> to vector<16x1xf32>
    %757 = vector.shape_cast %7 : vector<1x16xi1> to vector<1x16xi1>
    %758 = vector.broadcast %757 : vector<1x16xi1> to vector<16x16xi1>
    %759 = vector.shape_cast %756 : vector<16x1xf32> to vector<16x1xf32>
    %760 = vector.broadcast %759 : vector<16x1xf32> to vector<16x16xf32>
    %761 = arith.select %758, %760, %755 : vector<16x16xi1>, vector<16x16xf32>
    %c1_i32_107 = arith.constant 1 : i32
    %762 = tpu.dynamic_rotate %733 by %c1_i32_107 dim 1 : vector<16x16xf32>, i32 -> vector<16x16xf32>
    %763 = vector.extract_strided_slice %733 {offsets = [0, 0], sizes = [16, 1], strides = [1, 1]} : vector<16x16xf32> to vector<16x1xf32>
    %764 = vector.shape_cast %9 : vector<1x16xi1> to vector<1x16xi1>
    %765 = vector.broadcast %764 : vector<1x16xi1> to vector<16x16xi1>
    %766 = vector.shape_cast %763 : vector<16x1xf32> to vector<16x1xf32>
    %767 = vector.broadcast %766 : vector<16x1xf32> to vector<16x16xf32>
    %768 = arith.select %765, %767, %762 : vector<16x16xi1>, vector<16x16xf32>
    %c15_i32_108 = arith.constant 15 : i32
    %769 = tpu.dynamic_rotate %733 by %c15_i32_108 dim 1 : vector<16x16xf32>, i32 -> vector<16x16xf32>
    %770 = vector.extract_strided_slice %733 {offsets = [0, 15], sizes = [16, 1], strides = [1, 1]} : vector<16x16xf32> to vector<16x1xf32>
    %771 = vector.shape_cast %7 : vector<1x16xi1> to vector<1x16xi1>
    %772 = vector.broadcast %771 : vector<1x16xi1> to vector<16x16xi1>
    %773 = vector.shape_cast %770 : vector<16x1xf32> to vector<16x1xf32>
    %774 = vector.broadcast %773 : vector<16x1xf32> to vector<16x16xf32>
    %775 = arith.select %772, %774, %769 : vector<16x16xi1>, vector<16x16xf32>
    %776 = arith.mulf %740, %630 : vector<16x16xf32>
    %777 = arith.mulf %726, %631 : vector<16x16xf32>
    %778 = arith.addf %776, %777 : vector<16x16xf32>
    %779 = arith.mulf %747, %632 : vector<16x16xf32>
    %780 = arith.addf %778, %779 : vector<16x16xf32>
    %781 = arith.mulf %754, %633 : vector<16x16xf32>
    %782 = arith.addf %780, %781 : vector<16x16xf32>
    %783 = arith.mulf %761, %634 : vector<16x16xf32>
    %784 = arith.addf %782, %783 : vector<16x16xf32>
    %785 = arith.mulf %768, %635 : vector<16x16xf32>
    %786 = arith.addf %784, %785 : vector<16x16xf32>
    %787 = arith.mulf %733, %636 : vector<16x16xf32>
    %788 = arith.addf %786, %787 : vector<16x16xf32>
    %789 = arith.mulf %775, %637 : vector<16x16xf32>
    %790 = arith.addf %788, %789 : vector<16x16xf32>
    %c1_i32_109 = arith.constant 1 : i32
    %791 = tpu.dynamic_rotate %648 by %c1_i32_109 dim 0 : vector<16x16xf32>, i32 -> vector<16x16xf32>
    %792 = vector.extract_strided_slice %648 {offsets = [0, 0], sizes = [1, 16], strides = [1, 1]} : vector<16x16xf32> to vector<1x16xf32>
    %793 = vector.shape_cast %5 : vector<16x1xi1> to vector<16x1xi1>
    %794 = vector.broadcast %793 : vector<16x1xi1> to vector<16x16xi1>
    %795 = vector.shape_cast %792 : vector<1x16xf32> to vector<1x16xf32>
    %796 = vector.broadcast %795 : vector<1x16xf32> to vector<16x16xf32>
    %797 = arith.select %794, %796, %791 : vector<16x16xi1>, vector<16x16xf32>
    %c15_i32_110 = arith.constant 15 : i32
    %798 = tpu.dynamic_rotate %648 by %c15_i32_110 dim 0 : vector<16x16xf32>, i32 -> vector<16x16xf32>
    %799 = vector.extract_strided_slice %648 {offsets = [15, 0], sizes = [1, 16], strides = [1, 1]} : vector<16x16xf32> to vector<1x16xf32>
    %800 = vector.shape_cast %3 : vector<16x1xi1> to vector<16x1xi1>
    %801 = vector.broadcast %800 : vector<16x1xi1> to vector<16x16xi1>
    %802 = vector.shape_cast %799 : vector<1x16xf32> to vector<1x16xf32>
    %803 = vector.broadcast %802 : vector<1x16xf32> to vector<16x16xf32>
    %804 = arith.select %801, %803, %798 : vector<16x16xi1>, vector<16x16xf32>
    %c1_i32_111 = arith.constant 1 : i32
    %805 = tpu.dynamic_rotate %797 by %c1_i32_111 dim 1 : vector<16x16xf32>, i32 -> vector<16x16xf32>
    %806 = vector.extract_strided_slice %797 {offsets = [0, 0], sizes = [16, 1], strides = [1, 1]} : vector<16x16xf32> to vector<16x1xf32>
    %807 = vector.shape_cast %9 : vector<1x16xi1> to vector<1x16xi1>
    %808 = vector.broadcast %807 : vector<1x16xi1> to vector<16x16xi1>
    %809 = vector.shape_cast %806 : vector<16x1xf32> to vector<16x1xf32>
    %810 = vector.broadcast %809 : vector<16x1xf32> to vector<16x16xf32>
    %811 = arith.select %808, %810, %805 : vector<16x16xi1>, vector<16x16xf32>
    %c15_i32_112 = arith.constant 15 : i32
    %812 = tpu.dynamic_rotate %797 by %c15_i32_112 dim 1 : vector<16x16xf32>, i32 -> vector<16x16xf32>
    %813 = vector.extract_strided_slice %797 {offsets = [0, 15], sizes = [16, 1], strides = [1, 1]} : vector<16x16xf32> to vector<16x1xf32>
    %814 = vector.shape_cast %7 : vector<1x16xi1> to vector<1x16xi1>
    %815 = vector.broadcast %814 : vector<1x16xi1> to vector<16x16xi1>
    %816 = vector.shape_cast %813 : vector<16x1xf32> to vector<16x1xf32>
    %817 = vector.broadcast %816 : vector<16x1xf32> to vector<16x16xf32>
    %818 = arith.select %815, %817, %812 : vector<16x16xi1>, vector<16x16xf32>
    %c1_i32_113 = arith.constant 1 : i32
    %819 = tpu.dynamic_rotate %648 by %c1_i32_113 dim 1 : vector<16x16xf32>, i32 -> vector<16x16xf32>
    %820 = vector.extract_strided_slice %648 {offsets = [0, 0], sizes = [16, 1], strides = [1, 1]} : vector<16x16xf32> to vector<16x1xf32>
    %821 = vector.shape_cast %9 : vector<1x16xi1> to vector<1x16xi1>
    %822 = vector.broadcast %821 : vector<1x16xi1> to vector<16x16xi1>
    %823 = vector.shape_cast %820 : vector<16x1xf32> to vector<16x1xf32>
    %824 = vector.broadcast %823 : vector<16x1xf32> to vector<16x16xf32>
    %825 = arith.select %822, %824, %819 : vector<16x16xi1>, vector<16x16xf32>
    %c15_i32_114 = arith.constant 15 : i32
    %826 = tpu.dynamic_rotate %648 by %c15_i32_114 dim 1 : vector<16x16xf32>, i32 -> vector<16x16xf32>
    %827 = vector.extract_strided_slice %648 {offsets = [0, 15], sizes = [16, 1], strides = [1, 1]} : vector<16x16xf32> to vector<16x1xf32>
    %828 = vector.shape_cast %7 : vector<1x16xi1> to vector<1x16xi1>
    %829 = vector.broadcast %828 : vector<1x16xi1> to vector<16x16xi1>
    %830 = vector.shape_cast %827 : vector<16x1xf32> to vector<16x1xf32>
    %831 = vector.broadcast %830 : vector<16x1xf32> to vector<16x16xf32>
    %832 = arith.select %829, %831, %826 : vector<16x16xi1>, vector<16x16xf32>
    %c1_i32_115 = arith.constant 1 : i32
    %833 = tpu.dynamic_rotate %804 by %c1_i32_115 dim 1 : vector<16x16xf32>, i32 -> vector<16x16xf32>
    %834 = vector.extract_strided_slice %804 {offsets = [0, 0], sizes = [16, 1], strides = [1, 1]} : vector<16x16xf32> to vector<16x1xf32>
    %835 = vector.shape_cast %9 : vector<1x16xi1> to vector<1x16xi1>
    %836 = vector.broadcast %835 : vector<1x16xi1> to vector<16x16xi1>
    %837 = vector.shape_cast %834 : vector<16x1xf32> to vector<16x1xf32>
    %838 = vector.broadcast %837 : vector<16x1xf32> to vector<16x16xf32>
    %839 = arith.select %836, %838, %833 : vector<16x16xi1>, vector<16x16xf32>
    %c15_i32_116 = arith.constant 15 : i32
    %840 = tpu.dynamic_rotate %804 by %c15_i32_116 dim 1 : vector<16x16xf32>, i32 -> vector<16x16xf32>
    %841 = vector.extract_strided_slice %804 {offsets = [0, 15], sizes = [16, 1], strides = [1, 1]} : vector<16x16xf32> to vector<16x1xf32>
    %842 = vector.shape_cast %7 : vector<1x16xi1> to vector<1x16xi1>
    %843 = vector.broadcast %842 : vector<1x16xi1> to vector<16x16xi1>
    %844 = vector.shape_cast %841 : vector<16x1xf32> to vector<16x1xf32>
    %845 = vector.broadcast %844 : vector<16x1xf32> to vector<16x16xf32>
    %846 = arith.select %843, %845, %840 : vector<16x16xi1>, vector<16x16xf32>
    %847 = arith.mulf %811, %630 : vector<16x16xf32>
    %848 = arith.mulf %797, %631 : vector<16x16xf32>
    %849 = arith.addf %847, %848 : vector<16x16xf32>
    %850 = arith.mulf %818, %632 : vector<16x16xf32>
    %851 = arith.addf %849, %850 : vector<16x16xf32>
    %852 = arith.mulf %825, %633 : vector<16x16xf32>
    %853 = arith.addf %851, %852 : vector<16x16xf32>
    %854 = arith.mulf %832, %634 : vector<16x16xf32>
    %855 = arith.addf %853, %854 : vector<16x16xf32>
    %856 = arith.mulf %839, %635 : vector<16x16xf32>
    %857 = arith.addf %855, %856 : vector<16x16xf32>
    %858 = arith.mulf %804, %636 : vector<16x16xf32>
    %859 = arith.addf %857, %858 : vector<16x16xf32>
    %860 = arith.mulf %846, %637 : vector<16x16xf32>
    %861 = arith.addf %859, %860 : vector<16x16xf32>
    %c0_117 = arith.constant 0 : index
    %c0_118 = arith.constant 0 : index
    %c0_119 = arith.constant 0 : index
    %c0_120 = arith.constant 0 : index
    %862 = vector.load %arg5[%c0_117, %c0_118, %c0_119, %c0_120] : memref<1x3x16x16xf32, #tpu.memory_space<vmem>>, vector<1x1x16x16xf32>
    %863 = vector.shape_cast %862 : vector<1x1x16x16xf32> to vector<16x16xf32>
    %864 = vector.shape_cast %719 : vector<16x16xf32> to vector<1x1x16x16xf32>
    tpu.vector_store %arg5[%c0_117, %c0_118, %c0_119, %c0_120], %864 {strides = array<i32>} : memref<1x3x16x16xf32, #tpu.memory_space<vmem>>, vector<1x1x16x16xf32>,
    %c0_121 = arith.constant 0 : index
    %c1 = arith.constant 1 : index
    %c0_122 = arith.constant 0 : index
    %c0_123 = arith.constant 0 : index
    %865 = vector.load %arg5[%c0_121, %c1, %c0_122, %c0_123] : memref<1x3x16x16xf32, #tpu.memory_space<vmem>>, vector<1x1x16x16xf32>
    %866 = vector.shape_cast %865 : vector<1x1x16x16xf32> to vector<16x16xf32>
    %867 = vector.shape_cast %790 : vector<16x16xf32> to vector<1x1x16x16xf32>
    tpu.vector_store %arg5[%c0_121, %c1, %c0_122, %c0_123], %867 {strides = array<i32>} : memref<1x3x16x16xf32, #tpu.memory_space<vmem>>, vector<1x1x16x16xf32>,
    %c0_124 = arith.constant 0 : index
    %c2 = arith.constant 2 : index
    %c0_125 = arith.constant 0 : index
    %c0_126 = arith.constant 0 : index
    %868 = vector.load %arg5[%c0_124, %c2, %c0_125, %c0_126] : memref<1x3x16x16xf32, #tpu.memory_space<vmem>>, vector<1x1x16x16xf32>
    %869 = vector.shape_cast %868 : vector<1x1x16x16xf32> to vector<16x16xf32>
    %870 = vector.shape_cast %861 : vector<16x16xf32> to vector<1x1x16x16xf32>
    tpu.vector_store %arg5[%c0_124, %c2, %c0_125, %c0_126], %870 {strides = array<i32>} : memref<1x3x16x16xf32, #tpu.memory_space<vmem>>, vector<1x1x16x16xf32>,
    return
  }
  func.func @transform_0(%arg0: i32) -> (i32, i32, i32, i32) {
    %c0_i32 = arith.constant 0 : i32
    %c0_i32_0 = arith.constant 0 : i32
    %c0_i32_1 = arith.constant 0 : i32
    %c0_i32_2 = arith.constant 0 : i32
    return %arg0, %c0_i32, %c0_i32_0, %c0_i32_1 : i32, i32, i32, i32
  }
  func.func @transform_1(%arg0: i32) -> (i32, i32, i32, i32) {
    %c0_i32 = arith.constant 0 : i32
    %c0_i32_0 = arith.constant 0 : i32
    %c0_i32_1 = arith.constant 0 : i32
    %c0_i32_2 = arith.constant 0 : i32
    return %arg0, %c0_i32, %c0_i32_0, %c0_i32_1 : i32, i32, i32, i32
  }
  func.func @transform_2(%arg0: i32) -> (i32, i32) {
    %c0_i32 = arith.constant 0 : i32
    %c0_i32_0 = arith.constant 0 : i32
    %c0_i32_1 = arith.constant 0 : i32
    return %c0_i32, %c0_i32_0 : i32, i32
  }
  func.func @transform_3(%arg0: i32) -> (i32, i32) {
    %c0_i32 = arith.constant 0 : i32
    %c0_i32_0 = arith.constant 0 : i32
    %c0_i32_1 = arith.constant 0 : i32
    return %c0_i32, %c0_i32_0 : i32, i32
  }
  func.func @transform_4(%arg0: i32) -> (i32, i32, i32, i32) {
    %c0_i32 = arith.constant 0 : i32
    %c0_i32_0 = arith.constant 0 : i32
    %c0_i32_1 = arith.constant 0 : i32
    %c0_i32_2 = arith.constant 0 : i32
    return %arg0, %c0_i32, %c0_i32_0, %c0_i32_1 : i32, i32, i32, i32
  }
}

</mosaic_0001>

<llo_original>
// kernel: tpu_custom_call.1
$region0: #{tpu_custom_call.1}
  #allocation0 [shape = 'u32[]', space=smem, size = 0x4, offset = 0x4, fixed_abs, tag = 'smem constant byte address 0x4 - core index']
  #allocation1 [shape = 'u32[144,128]{1,0:T(1,128)}', space=vmem, size = 0x12000, scoped, tag = 'internal scratch']
  %s0 = inlined_call_operand.hbm [shape: f32[2,4,16,16], index: 0, kind: input, shape index: {}]
  %s1 = inlined_call_operand.hbm [shape: f32[2,3,8,8], index: 1, kind: input, shape index: {}]
  %s2 = inlined_call_operand.vmem [shape: f32[16,8], index: 2, kind: input, shape index: {}]
  %s3 = inlined_call_operand.vmem [shape: f32[8,16], index: 3, kind: input, shape index: {}]
  %s4 = inlined_call_operand.hbm [shape: f32[2,3,16,16], index: 4, kind: output, shape index: {}]
  %s5 = sld [smem:[#allocation0]]
  $region57: #{tpu_custom_call.1} parent=0
    _
  %s7 = ssub.s32 1, %s5
  %s8 = scalar_select 0, %s7, %s5
  $region1: #{tpu_custom_call.1} parent=0
    #allocation2 [shape = 'u8[65536]{0}', space=vmem, size = 0x10000, scoped, tag = 'input window, operand 0']
    #allocation3 [shape = 's32[2]{0}', space=sflag, size = 0x8, scoped, tag = 'scoped memory for tpu_custom_call.1']
    #allocation4 [shape = 's32[2]{0}', space=sflag, size = 0x8, scoped, tag = 'scoped memory for tpu_custom_call.1']
    #allocation5 [shape = 'u8[24576]{0}', space=vmem, size = 0x6000, scoped, tag = 'input window, operand 1']
    #allocation6 [shape = 's32[2]{0}', space=sflag, size = 0x8, scoped, tag = 'scoped memory for tpu_custom_call.1']
    #allocation7 [shape = 'u8[49152]{0}', space=vmem, size = 0xc000, scoped, tag = 'output window, operand 0']
    %9 = vsyncpa [#allocation3], 0
    %s10 = scalar_lea.sflag [#allocation3], 1
    %11 = vsyncpa %s10, 0
    %12 = vsyncpa [#allocation6], 0
    %s13 = scalar_lea.sflag [#allocation6], 1
    %14 = vsyncpa %s13, 0
    %15 = vsyncpa [#allocation4], 0
    %s16 = scalar_lea.sflag [#allocation4], 1
    %17 = vsyncpa %s16, 0
    loop: start=0, step=1, limit=4
    $region2: #{tpu_custom_call.1} parent=1 // loop_pre_header
      _
    $region3: #{tpu_custom_call.1} parent=1 // loop_header
      %s19 = sphi 0, %s23
      %p20 = scmp.ge.s32.totalorder %s19, 4
      %s29 = sphi 0, %s31
      %s32 = sphi 0, %s29
      %s33 = sphi 0, %s32
      %s49 = sphi 0, %s33
      %s55 = sphi 0, %s57
      %s58 = sphi 0, %s55
      %s59 = sphi 0, %s58
      %s75 = sphi 0, %s59
      %s79 = sphi 0, %s79
      %s81 = sphi 0, %s79
      %s82 = sphi 0, %s81
      %s96 = sphi 0, %s82
      %s100 = sphi 0, %s100
      %s102 = sphi 0, %s100
      %s103 = sphi 0, %s102
      %s117 = sphi 0, %s103
      %s123 = sphi 0, %s125
      %s126 = sphi 0, %s123
      %s127 = sphi 0, %s126
      %s143 = sphi 0, %s127
    $region4: #{tpu_custom_call.1} parent=1 // loop_header_branch
      %22 = sbr.rel (%p20) target = $region8
    $region5: #{tpu_custom_call.1} parent=1 // loop_body
      %s24 = ssub.s32 %s19, 1
      %s25 = ssub.s32 %s19, 2
      %s26 = sadd.s32 %s19, 1
      %s27 = ssub.s32 %s19, %s26
      %p28 = scmp.eq.s32.totalorder %s27, 0
      %s30 = sadd.s32 %s29, 1
      %s31 = scalar_select %p28, %s29, %s30
      %p34 = pneg %p28
      %p35 = scmp.eq.s32.totalorder %s19, 1
      %p36 = por %p34, %p35
      %p37 = scmp.ne.s32.totalorder %s29, %s32
      %p38 = scmp.eq.s32.totalorder %s19, 0
      %p39 = por %p37, %p38
      %p40 = scmp.ne.s32.totalorder %s29, %s32
      %p41 = scmp.eq.s32.totalorder %s24, 1
      %p42 = por %p40, %p41
      %p43 = scmp.ne.s32.totalorder %s32, %s33
      %p44 = scmp.eq.s32.totalorder %s24, 0
      %p45 = por %p43, %p44
      %p46 = scmp.ne.s32.totalorder %s32, %s33
      %p47 = scmp.eq.s32.totalorder %s25, 1
      %p48 = por %p46, %p47
      %p50 = scmp.ne.s32.totalorder %s33, %s49
      %p51 = scmp.eq.s32.totalorder %s25, 0
      %p52 = por %p50, %p51
      %s53 = ssub.s32 %s19, %s26
      %p54 = scmp.eq.s32.totalorder %s53, 0
      %s56 = sadd.s32 %s55, 1
      %s57 = scalar_select %p54, %s55, %s56
      %p60 = pneg %p54
      %p61 = scmp.eq.s32.totalorder %s19, 1
      %p62 = por %p60, %p61
      %p63 = scmp.ne.s32.totalorder %s55, %s58
      %p64 = scmp.eq.s32.totalorder %s19, 0
      %p65 = por %p63, %p64
      %p66 = scmp.ne.s32.totalorder %s55, %s58
      %p67 = scmp.eq.s32.totalorder %s24, 1
      %p68 = por %p66, %p67
      %p69 = scmp.ne.s32.totalorder %s58, %s59
      %p70 = scmp.eq.s32.totalorder %s24, 0
      %p71 = por %p69, %p70
      %p72 = scmp.ne.s32.totalorder %s58, %s59
      %p73 = scmp.eq.s32.totalorder %s25, 1
      %p74 = por %p72, %p73
      %p76 = scmp.ne.s32.totalorder %s59, %s75
      %p77 = scmp.eq.s32.totalorder %s25, 0
      %p78 = por %p76, %p77
      %s80 = sadd.s32 %s79, 1
      %p83 = scmp.eq.s32.totalorder %s19, 1
      %p84 = scmp.ne.s32.totalorder %s79, %s81
      %p85 = scmp.eq.s32.totalorder %s19, 0
      %p86 = por %p84, %p85
      %p87 = scmp.ne.s32.totalorder %s79, %s81
      %p88 = scmp.eq.s32.totalorder %s24, 1
      %p89 = por %p87, %p88
      %p90 = scmp.ne.s32.totalorder %s81, %s82
      %p91 = scmp.eq.s32.totalorder %s24, 0
      %p92 = por %p90, %p91
      %p93 = scmp.ne.s32.totalorder %s81, %s82
      %p94 = scmp.eq.s32.totalorder %s25, 1
      %p95 = por %p93, %p94
      %p97 = scmp.ne.s32.totalorder %s82, %s96
      %p98 = scmp.eq.s32.totalorder %s25, 0
      %p99 = por %p97, %p98
      %s101 = sadd.s32 %s100, 1
      %p104 = scmp.eq.s32.totalorder %s19, 1
      %p105 = scmp.ne.s32.totalorder %s100, %s102
      %p106 = scmp.eq.s32.totalorder %s19, 0
      %p107 = por %p105, %p106
      %p108 = scmp.ne.s32.totalorder %s100, %s102
      %p109 = scmp.eq.s32.totalorder %s24, 1
      %p110 = por %p108, %p109
      %p111 = scmp.ne.s32.totalorder %s102, %s103
      %p112 = scmp.eq.s32.totalorder %s24, 0
      %p113 = por %p111, %p112
      %p114 = scmp.ne.s32.totalorder %s102, %s103
      %p115 = scmp.eq.s32.totalorder %s25, 1
      %p116 = por %p114, %p115
      %p118 = scmp.ne.s32.totalorder %s103, %s117
      %p119 = scmp.eq.s32.totalorder %s25, 0
      %p120 = por %p118, %p119
      %s121 = ssub.s32 %s19, %s26
      %p122 = scmp.eq.s32.totalorder %s121, 0
      %s124 = sadd.s32 %s123, 1
      %s125 = scalar_select %p122, %s123, %s124
      %p128 = pneg %p122
      %p129 = scmp.eq.s32.totalorder %s19, 1
      %p130 = por %p128, %p129
      %p131 = scmp.ne.s32.totalorder %s123, %s126
      %p132 = scmp.eq.s32.totalorder %s19, 0
      %p133 = por %p131, %p132
      %p134 = scmp.ne.s32.totalorder %s123, %s126
      %p135 = scmp.eq.s32.totalorder %s24, 1
      %p136 = por %p134, %p135
      %p137 = scmp.ne.s32.totalorder %s126, %s127
      %p138 = scmp.eq.s32.totalorder %s24, 0
      %p139 = por %p137, %p138
      %p140 = scmp.ne.s32.totalorder %s126, %s127
      %p141 = scmp.eq.s32.totalorder %s25, 1
      %p142 = por %p140, %p141
      %p144 = scmp.ne.s32.totalorder %s127, %s143
      %p145 = scmp.eq.s32.totalorder %s25, 0
      %p146 = por %p144, %p145
      %p147 = scmp.le.s32.totalorder 1, %s19
      %p148 = scmp.lt.s32.totalorder %s19, 3
      %p149 = pnand %p147, %p148
      %p150 = pneg %p149
      // Predicated region
      $region9: #{tpu_custom_call.1} parent=5 // pred_check
        _
      $region10: #{tpu_custom_call.1} parent=5 // pred_check_branch
        %152 = sbr.rel (%p149) target = $region12
      $region11: #{tpu_custom_call.1} parent=5 // pred_region
        %s153 = ssub.s32 %s19, 1
        // Predicated region
        $region13: #{tpu_custom_call.1} parent=11 // pred_check
          %p154 = pneg %p92
        $region14: #{tpu_custom_call.1} parent=11 // pred_check_branch
          %156 = sbr.rel (%p154) target = $region16
        $region15: #{tpu_custom_call.1} parent=11 // pred_region
          _
        $region16: #{tpu_custom_call.1} parent=11 // pred_fallthru
          _
        // Predicated region
        $region17: #{tpu_custom_call.1} parent=11 // pred_check
          %p157 = pneg %p113
        $region18: #{tpu_custom_call.1} parent=11 // pred_check_branch
          %159 = sbr.rel (%p157) target = $region20
        $region19: #{tpu_custom_call.1} parent=11 // pred_region
          _
        $region20: #{tpu_custom_call.1} parent=11 // pred_fallthru
          _
      $region12: #{tpu_custom_call.1} parent=5 // pred_fallthru
        _
      %p160 = scmp.lt.s32.totalorder %s19, 2
      // Predicated region
      $region21: #{tpu_custom_call.1} parent=5 // pred_check
        %p161 = pneg %p160
      $region22: #{tpu_custom_call.1} parent=5 // pred_check_branch
        %163 = sbr.rel (%p161) target = $region24
      $region23: #{tpu_custom_call.1} parent=5 // pred_region
        // Predicated region
        $region25: #{tpu_custom_call.1} parent=23 // pred_check
          %p164 = pneg %p39
        $region26: #{tpu_custom_call.1} parent=23 // pred_check_branch
          %166 = sbr.rel (%p164) target = $region28
        $region27: #{tpu_custom_call.1} parent=23 // pred_region
          %s167 = sand.u32 %s29, 1
          %s168 = scalar_lea.sflag [#allocation3], %s167
          %s169 = sand.u32 %s29, 1
          %s170 = smul.addr %s169, 64
          %s171 = scalar_lea.vmem [#allocation2], %s170
          %s173 = ssub.s32 1024, 1024
          %174 = vsyncadd %s168, %s173
          %s175 = smul.addr %s19, 8
          %s176 = smul.addr %s175, 128
          %s177 = scalar_lea.hbm %s0, %s176
          %s178 = sshll.u32 %s171, 4
          %s179 = int_to_ptr.vmem [resolvable:$true] %s178
          %184 = dma.hbm_to_vmem [thread:$0]  %s177, 1024, %s179, %s168, 128, 128, 8
        $region28: #{tpu_custom_call.1} parent=23 // pred_fallthru
          _
        // Predicated region
        $region29: #{tpu_custom_call.1} parent=23 // pred_check
          %p185 = pneg %p65
        $region30: #{tpu_custom_call.1} parent=23 // pred_check_branch
          %187 = sbr.rel (%p185) target = $region32
        $region31: #{tpu_custom_call.1} parent=23 // pred_region
          %s188 = sand.u32 %s55, 1
          %s189 = scalar_lea.sflag [#allocation6], %s188
          %s190 = sand.u32 %s55, 1
          %s191 = smul.addr %s190, 24
          %s192 = scalar_lea.vmem [#allocation5], %s191
          %s194 = ssub.s32 384, 384
          %195 = vsyncadd %s189, %s194
          %s196 = smul.addr %s19, 3
          %s197 = smul.addr %s196, 128
          %s198 = scalar_lea.hbm %s1, %s197
          %s199 = sshll.u32 %s192, 4
          %s200 = int_to_ptr.vmem [resolvable:$true] %s199
          %205 = dma.hbm_to_vmem [thread:$0]  %s198, 384, %s200, %s189, 128, 128, 8
        $region32: #{tpu_custom_call.1} parent=23 // pred_fallthru
          _
      $region24: #{tpu_custom_call.1} parent=5 // pred_fallthru
        _
      %p206 = scmp.le.s32.totalorder 1, %s19
      %p207 = scmp.lt.s32.totalorder %s19, 3
      %p208 = pnand %p206, %p207
      %p209 = pneg %p208
      // Predicated region
      $region33: #{tpu_custom_call.1} parent=5 // pred_check
        _
      $region34: #{tpu_custom_call.1} parent=5 // pred_check_branch
        %211 = sbr.rel (%p208) target = $region36
      $region35: #{tpu_custom_call.1} parent=5 // pred_region
        %s212 = ssub.s32 %s19, 1
        %s213 = sand.u32 %s32, 1
        %s214 = scalar_lea.sflag [#allocation3], %s213
        %s215 = sand.u32 %s32, 1
        %s216 = smul.addr %s215, 64
        %s217 = scalar_lea.vmem [#allocation2], %s216
        // Predicated region
        $region37: #{tpu_custom_call.1} parent=35 // pred_check
          %p218 = pneg %p45
        $region38: #{tpu_custom_call.1} parent=35 // pred_check_branch
          %220 = sbr.rel (%p218) target = $region40
        $region39: #{tpu_custom_call.1} parent=35 // pred_region
          %221 = dma.done %s214, 1024
        $region40: #{tpu_custom_call.1} parent=35 // pred_fallthru
          _
        %s222 = sand.u32 %s58, 1
        %s223 = scalar_lea.sflag [#allocation6], %s222
        %s224 = sand.u32 %s58, 1
        %s225 = smul.addr %s224, 24
        %s226 = scalar_lea.vmem [#allocation5], %s225
        // Predicated region
        $region41: #{tpu_custom_call.1} parent=35 // pred_check
          %p227 = pneg %p71
        $region42: #{tpu_custom_call.1} parent=35 // pred_check_branch
          %229 = sbr.rel (%p227) target = $region44
        $region43: #{tpu_custom_call.1} parent=35 // pred_region
          %230 = dma.done %s223, 384
        $region44: #{tpu_custom_call.1} parent=35 // pred_fallthru
          _
        %s231 = sand.u32 %s32, 1
        %s232 = scalar_lea.sflag [#allocation3], %s231
        %s233 = sand.u32 %s32, 1
        %s234 = smul.addr %s233, 64
        %s235 = scalar_lea.vmem [#allocation2], %s234
        %p236 = pneg %p45
        %p237 = pneg %p42
        %s238 = sand.u32 %s58, 1
        %s239 = scalar_lea.sflag [#allocation6], %s238
        %s240 = sand.u32 %s58, 1
        %s241 = smul.addr %s240, 24
        %s242 = scalar_lea.vmem [#allocation5], %s241
        %p243 = pneg %p71
        %p244 = pneg %p68
        %p245 = pneg %p92
        %p246 = pneg %p89
        %p247 = pneg %p113
        %p248 = pneg %p110
        %p249 = pneg %p139
        %p250 = pneg %p136
        %s251 = sand.u32 %s126, 1
        %s252 = scalar_lea.sflag [#allocation4], %s251
        %s253 = sand.u32 %s126, 1
        %s254 = smul.addr %s253, 48
        %s255 = scalar_lea.vmem [#allocation7], %s254
        %v256 = vlaneseq
        %v257 = vshrl.u32 %v256, 7
        %v258 = vadd.s32 %v257, 8
        %v259 = vlaneseq
        %v260 = vand.u32 %v259, 127
        %vm261 = vcmp.ge.s32.totalorder %v257, 15
        %vm262 = vcmp.ge.s32.totalorder %v258, 15
        %vm263 = vcmp.lt.s32.totalorder %v257, 1
        %vm264 = vcmp.lt.s32.totalorder %v258, 1
        %vm265 = vcmp.ge.s32.totalorder %v260, 15
        %vm266 = vcmp.lt.s32.totalorder %v260, 1
        %v267 = vld [vmem:[%s217] sm:$0xff]
        %v268 = vld [vmem:[%s217 + $0x8] sm:$0xff]
        %v269 = vld [vmem:[%s217 + $0x10] sm:$0xff]
        %v270 = vld [vmem:[%s217 + $0x18] sm:$0xff]
        %v271 = vld [vmem:[%s217 + $0x20] sm:$0xff]
        %v272 = vld [vmem:[%s217 + $0x28] sm:$0xff]
        %v273 = vld [vmem:[%s217 + $0x30] sm:$0xff]
        %v274 = vld [vmem:[%s217 + $0x38] sm:$0xff]
        %v275 = vrot.slane %v267, 7
        %v276 = vrot.slane %v268, 7
        %v277 = vsel %vm263, %v275, %v276
        %v278 = vsel %vm263, %v276, %v275
        %v279 = vsel %vm263, 1, 0
        %v280 = vsel %vm264, 1, 0
        %vm281 = vcmp.eq.s32.totalorder %v279, 1
        %vm282 = vcmp.eq.s32.totalorder %v280, 1
        %v283 = vlaneseq
        %v284 = vshrl.u32 %v283, 7
        %v285 = vsub.s32 0, %v284
        %v286 = vrot.slane %v267, %v285
        %v287 = vsel %vm281, %v286, %v278
        %v288 = vsel %vm282, %v286, %v277
        %v289 = vrot.slane %v267, 1
        %v290 = vrot.slane %v268, 1
        %vm291 = vcmp.lt.s32.totalorder %v257, 7
        %v292 = vsel %vm291, %v289, %v290
        %v293 = vsel %vm291, %v290, %v289
        %v294 = vsel %vm261, 1, 0
        %v295 = vsel %vm262, 1, 0
        %vm296 = vcmp.eq.s32.totalorder %v294, 1
        %vm297 = vcmp.eq.s32.totalorder %v295, 1
        %v298 = vlaneseq
        %v299 = vshrl.u32 %v298, 7
        %v300 = vsub.s32 7, %v299
        %v301 = vrot.slane %v268, %v300
        %v302 = vsel %vm296, %v301, %v292
        %v303 = vsel %vm297, %v301, %v293
        %vm304 = vcmask 1047680
        %305 = vrot.lane.b32.xlu0 %v287, 16
        %v306 = vpop.permute.xlu0 %305
        %v307 = vsel %vm304, %v306, %v287
        %308 = vrot.lane.b32.xlu0 %v288, 16
        %v309 = vpop.permute.xlu0 %308
        %v310 = vsel %vm304, %v309, %v288
        %311 = vrot.lane.b32.xlu0 %v307, 16
        %v312 = vpop.permute.xlu0 %311
        %313 = vrot.lane.b32.xlu0 %v310, 16
        %v314 = vpop.permute.xlu0 %313
        %v315 = vsel %vm304, %v312, %v287
        %v316 = vsel %vm304, %v314, %v288
        %v317 = vsel %vm266, 1, 0
        %vm318 = vcmp.eq.s32.totalorder %v317, 1
        %320 = vset.pattern.permute.xlu0 0
        %321 = vperm.xlu0 %320, %v287
        %v322 = vpop.permute.xlu0 %321
        %325 = vset.pattern.permute.xlu0 0
        %326 = vperm.xlu0 %325, %v288
        %v327 = vpop.permute.xlu0 %326
        %331 = vrot.lane.b32.xlu0 %v315, 113
        %v332 = vpop.permute.xlu0 %331
        %333 = vrot.lane.b32.xlu0 %v316, 113
        %v334 = vpop.permute.xlu0 %333
        %v337 = vsel %vm318, %v322, %v332
        %v338 = vsel %vm318, %v327, %v334
        %v339 = vsel %vm265, 1, 0
        %vm340 = vcmp.eq.s32.totalorder %v339, 1
        %341 = vset.pattern.permute.xlu0 15
        %342 = vperm.xlu0 %341, %v287
        %v343 = vpop.permute.xlu0 %342
        %345 = vset.pattern.permute.xlu0 15
        %346 = vperm.xlu0 %345, %v288
        %v347 = vpop.permute.xlu0 %346
        %349 = vrot.lane.b32.xlu0 %v315, 127
        %v350 = vpop.permute.xlu0 %349
        %351 = vrot.lane.b32.xlu0 %v316, 127
        %v352 = vpop.permute.xlu0 %351
        %v355 = vsel %vm340, %v343, %v350
        %v356 = vsel %vm340, %v347, %v352
        %357 = vrot.lane.b32.xlu0 %v267, 16
        %v358 = vpop.permute.xlu0 %357
        %v359 = vsel %vm304, %v358, %v267
        %360 = vrot.lane.b32.xlu0 %v268, 16
        %v361 = vpop.permute.xlu0 %360
        %v362 = vsel %vm304, %v361, %v268
        %363 = vrot.lane.b32.xlu0 %v359, 16
        %v364 = vpop.permute.xlu0 %363
        %365 = vrot.lane.b32.xlu0 %v362, 16
        %v366 = vpop.permute.xlu0 %365
        %v367 = vsel %vm304, %v364, %v267
        %v368 = vsel %vm304, %v366, %v268
        %370 = vset.pattern.permute.xlu0 0
        %371 = vperm.xlu0 %370, %v267
        %v372 = vpop.permute.xlu0 %371
        %375 = vset.pattern.permute.xlu0 0
        %376 = vperm.xlu0 %375, %v268
        %v377 = vpop.permute.xlu0 %376
        %381 = vrot.lane.b32.xlu0 %v367, 113
        %v382 = vpop.permute.xlu0 %381
        %383 = vrot.lane.b32.xlu0 %v368, 113
        %v384 = vpop.permute.xlu0 %383
        %v387 = vsel %vm318, %v372, %v382
        %v388 = vsel %vm318, %v377, %v384
        %389 = vset.pattern.permute.xlu0 15
        %390 = vperm.xlu0 %389, %v267
        %v391 = vpop.permute.xlu0 %390
        %393 = vset.pattern.permute.xlu0 15
        %394 = vperm.xlu0 %393, %v268
        %v395 = vpop.permute.xlu0 %394
        %397 = vrot.lane.b32.xlu0 %v367, 127
        %v398 = vpop.permute.xlu0 %397
        %399 = vrot.lane.b32.xlu0 %v368, 127
        %v400 = vpop.permute.xlu0 %399
        %v403 = vsel %vm340, %v391, %v398
        %v404 = vsel %vm340, %v395, %v400
        %405 = vrot.lane.b32.xlu0 %v302, 16
        %v406 = vpop.permute.xlu0 %405
        %v407 = vsel %vm304, %v406, %v302
        %408 = vrot.lane.b32.xlu0 %v303, 16
        %v409 = vpop.permute.xlu0 %408
        %v410 = vsel %vm304, %v409, %v303
        %411 = vrot.lane.b32.xlu0 %v407, 16
        %v412 = vpop.permute.xlu0 %411
        %413 = vrot.lane.b32.xlu0 %v410, 16
        %v414 = vpop.permute.xlu0 %413
        %v415 = vsel %vm304, %v412, %v302
        %v416 = vsel %vm304, %v414, %v303
        %418 = vset.pattern.permute.xlu0 0
        %419 = vperm.xlu0 %418, %v302
        %v420 = vpop.permute.xlu0 %419
        %423 = vset.pattern.permute.xlu0 0
        %424 = vperm.xlu0 %423, %v303
        %v425 = vpop.permute.xlu0 %424
        %429 = vrot.lane.b32.xlu0 %v415, 113
        %v430 = vpop.permute.xlu0 %429
        %431 = vrot.lane.b32.xlu0 %v416, 113
        %v432 = vpop.permute.xlu0 %431
        %v435 = vsel %vm318, %v420, %v430
        %v436 = vsel %vm318, %v425, %v432
        %437 = vset.pattern.permute.xlu0 15
        %438 = vperm.xlu0 %437, %v302
        %v439 = vpop.permute.xlu0 %438
        %441 = vset.pattern.permute.xlu0 15
        %442 = vperm.xlu0 %441, %v303
        %v443 = vpop.permute.xlu0 %442
        %445 = vrot.lane.b32.xlu0 %v415, 127
        %v446 = vpop.permute.xlu0 %445
        %447 = vrot.lane.b32.xlu0 %v416, 127
        %v448 = vpop.permute.xlu0 %447
        %v451 = vsel %vm340, %v439, %v446
        %v452 = vsel %vm340, %v443, %v448
        %v453 = vsub.f32 %v337, %v267
        %v454 = vsub.f32 %v338, %v268
        %v455 = vsub.f32 %v287, %v267
        %v456 = vsub.f32 %v288, %v268
        %v457 = vsub.f32 %v355, %v267
        %v458 = vsub.f32 %v356, %v268
        %v459 = vsub.f32 %v387, %v267
        %v460 = vsub.f32 %v388, %v268
        %v461 = vsub.f32 %v403, %v267
        %v462 = vsub.f32 %v404, %v268
        %v463 = vsub.f32 %v435, %v267
        %v464 = vsub.f32 %v436, %v268
        %v465 = vsub.f32 %v302, %v267
        %v466 = vsub.f32 %v303, %v268
        %v467 = vsub.f32 %v451, %v267
        %v468 = vsub.f32 %v452, %v268
        %v469 = vadd.f32 %v453, %v455
        %v470 = vadd.f32 %v454, %v456
        %v471 = vadd.f32 %v469, %v457
        %v472 = vadd.f32 %v470, %v458
        %v473 = vadd.f32 %v471, %v459
        %v474 = vadd.f32 %v472, %v460
        %v475 = vadd.f32 %v473, %v461
        %v476 = vadd.f32 %v474, %v462
        %v477 = vadd.f32 %v475, %v463
        %v478 = vadd.f32 %v476, %v464
        %v479 = vadd.f32 %v477, %v465
        %v480 = vadd.f32 %v478, %v466
        %v481 = vadd.f32 %v479, %v467
        %v482 = vadd.f32 %v480, %v468
        %v483 = vmul.f32 %v481, 0.11111111
        %v484 = vmul.f32 %v482, 0.11111111
        %v485 = vsub.f32 %v453, %v483
        %v486 = vsub.f32 %v454, %v484
        %v487 = vmul.f32 %v485, %v485
        %v488 = vmul.f32 %v486, %v486
        %v489 = vsub.f32 %v455, %v483
        %v490 = vsub.f32 %v456, %v484
        %v491 = vmul.f32 %v489, %v489
        %v492 = vmul.f32 %v490, %v490
        %v493 = vadd.f32 %v487, %v491
        %v494 = vadd.f32 %v488, %v492
        %v495 = vsub.f32 %v457, %v483
        %v496 = vsub.f32 %v458, %v484
        %v497 = vmul.f32 %v495, %v495
        %v498 = vmul.f32 %v496, %v496
        %v499 = vadd.f32 %v493, %v497
        %v500 = vadd.f32 %v494, %v498
        %v501 = vsub.f32 %v459, %v483
        %v502 = vsub.f32 %v460, %v484
        %v503 = vmul.f32 %v501, %v501
        %v504 = vmul.f32 %v502, %v502
        %v505 = vadd.f32 %v499, %v503
        %v506 = vadd.f32 %v500, %v504
        %v507 = vsub.f32 %v461, %v483
        %v508 = vsub.f32 %v462, %v484
        %v509 = vmul.f32 %v507, %v507
        %v510 = vmul.f32 %v508, %v508
        %v511 = vadd.f32 %v505, %v509
        %v512 = vadd.f32 %v506, %v510
        %v513 = vsub.f32 %v463, %v483
        %v514 = vsub.f32 %v464, %v484
        %v515 = vmul.f32 %v513, %v513
        %v516 = vmul.f32 %v514, %v514
        %v517 = vadd.f32 %v511, %v515
        %v518 = vadd.f32 %v512, %v516
        %v519 = vsub.f32 %v465, %v483
        %v520 = vsub.f32 %v466, %v484
        %v521 = vmul.f32 %v519, %v519
        %v522 = vmul.f32 %v520, %v520
        %v523 = vadd.f32 %v517, %v521
        %v524 = vadd.f32 %v518, %v522
        %v525 = vsub.f32 %v467, %v483
        %v526 = vsub.f32 %v468, %v484
        %v527 = vmul.f32 %v525, %v525
        %v528 = vmul.f32 %v526, %v526
        %v529 = vadd.f32 %v523, %v527
        %v530 = vadd.f32 %v524, %v528
        %v531 = vmul.f32 %v483, %v483
        %v532 = vmul.f32 %v484, %v484
        %v533 = vadd.f32 %v529, %v531
        %v534 = vadd.f32 %v530, %v532
        %v535 = vmul.f32 %v533, 0.125
        %v536 = vmul.f32 %v534, 0.125
        %v537 = vmax.f32 %v535, 0.0
        %v538 = vmax.f32 %v536, 0.0
        %v539 = vrsqrt.pop %v537
        %v540 = vmul.f32 %v537, %v539
        %vm541 = vcmp.eq.f32.partialorder %v537, inf
        %v542 = vsel %vm541, %v537, %v540
        %vm543 = vcmp.eq.f32.partialorder %v537, 0.0
        %v544 = vand.u32 %v537, 2147483648
        %v545 = vsel %vm543, %v544, %v542
        %v546 = vrsqrt.pop %v538
        %v547 = vmul.f32 %v538, %v546
        %vm548 = vcmp.eq.f32.partialorder %v538, inf
        %v549 = vsel %vm548, %v538, %v547
        %vm550 = vcmp.eq.f32.partialorder %v538, 0.0
        %v551 = vand.u32 %v538, 2147483648
        %v552 = vsel %vm550, %v551, %v549
        %v553 = vmul.f32 %v545, 0.1
        %v554 = vmul.f32 %v552, 0.1
        %v555 = vadd.f32 %v553, 1e-08
        %v556 = vadd.f32 %v554, 1e-08
        %v557 = vrcp.pop %v555
        %v558 = vrcp.pop %v556
        %v559 = vmul.f32 %v555, %v557
        %v560 = vmul.f32 %v556, %v558
        %v561 = vsub.f32 2.0, %v559
        %v562 = vsub.f32 2.0, %v560
        %v563 = vmul.f32 %v557, %v561
        %v564 = vmul.f32 %v558, %v562
        %v565 = vrot.slane %v269, 7
        %v566 = vrot.slane %v270, 7
        %v567 = vsel %vm263, %v565, %v566
        %v568 = vsel %vm263, %v566, %v565
        %v569 = vlaneseq
        %v570 = vshrl.u32 %v569, 7
        %v571 = vsub.s32 0, %v570
        %v572 = vrot.slane %v269, %v571
        %v573 = vsel %vm281, %v572, %v568
        %v574 = vsel %vm282, %v572, %v567
        %v575 = vrot.slane %v269, 1
        %v576 = vrot.slane %v270, 1
        %v577 = vsel %vm291, %v575, %v576
        %v578 = vsel %vm291, %v576, %v575
        %v579 = vlaneseq
        %v580 = vshrl.u32 %v579, 7
        %v581 = vsub.s32 7, %v580
        %v582 = vrot.slane %v270, %v581
        %v583 = vsel %vm296, %v582, %v577
        %v584 = vsel %vm297, %v582, %v578
        %585 = vrot.lane.b32.xlu0 %v573, 16
        %v586 = vpop.permute.xlu0 %585
        %v587 = vsel %vm304, %v586, %v573
        %588 = vrot.lane.b32.xlu0 %v574, 16
        %v589 = vpop.permute.xlu0 %588
        %v590 = vsel %vm304, %v589, %v574
        %591 = vrot.lane.b32.xlu0 %v587, 16
        %v592 = vpop.permute.xlu0 %591
        %593 = vrot.lane.b32.xlu0 %v590, 16
        %v594 = vpop.permute.xlu0 %593
        %v595 = vsel %vm304, %v592, %v573
        %v596 = vsel %vm304, %v594, %v574
        %598 = vset.pattern.permute.xlu0 0
        %599 = vperm.xlu0 %598, %v573
        %v600 = vpop.permute.xlu0 %599
        %603 = vset.pattern.permute.xlu0 0
        %604 = vperm.xlu0 %603, %v574
        %v605 = vpop.permute.xlu0 %604
        %609 = vrot.lane.b32.xlu0 %v595, 113
        %v610 = vpop.permute.xlu0 %609
        %611 = vrot.lane.b32.xlu0 %v596, 113
        %v612 = vpop.permute.xlu0 %611
        %v615 = vsel %vm318, %v600, %v610
        %v616 = vsel %vm318, %v605, %v612
        %617 = vset.pattern.permute.xlu0 15
        %618 = vperm.xlu0 %617, %v573
        %v619 = vpop.permute.xlu0 %618
        %621 = vset.pattern.permute.xlu0 15
        %622 = vperm.xlu0 %621, %v574
        %v623 = vpop.permute.xlu0 %622
        %625 = vrot.lane.b32.xlu0 %v595, 127
        %v626 = vpop.permute.xlu0 %625
        %627 = vrot.lane.b32.xlu0 %v596, 127
        %v628 = vpop.permute.xlu0 %627
        %v631 = vsel %vm340, %v619, %v626
        %v632 = vsel %vm340, %v623, %v628
        %633 = vrot.lane.b32.xlu0 %v269, 16
        %v634 = vpop.permute.xlu0 %633
        %v635 = vsel %vm304, %v634, %v269
        %636 = vrot.lane.b32.xlu0 %v270, 16
        %v637 = vpop.permute.xlu0 %636
        %v638 = vsel %vm304, %v637, %v270
        %639 = vrot.lane.b32.xlu0 %v635, 16
        %v640 = vpop.permute.xlu0 %639
        %641 = vrot.lane.b32.xlu0 %v638, 16
        %v642 = vpop.permute.xlu0 %641
        %v643 = vsel %vm304, %v640, %v269
        %v644 = vsel %vm304, %v642, %v270
        %646 = vset.pattern.permute.xlu0 0
        %647 = vperm.xlu0 %646, %v269
        %v648 = vpop.permute.xlu0 %647
        %651 = vset.pattern.permute.xlu0 0
        %652 = vperm.xlu0 %651, %v270
        %v653 = vpop.permute.xlu0 %652
        %657 = vrot.lane.b32.xlu0 %v643, 113
        %v658 = vpop.permute.xlu0 %657
        %659 = vrot.lane.b32.xlu0 %v644, 113
        %v660 = vpop.permute.xlu0 %659
        %v663 = vsel %vm318, %v648, %v658
        %v664 = vsel %vm318, %v653, %v660
        %665 = vset.pattern.permute.xlu0 15
        %666 = vperm.xlu0 %665, %v269
        %v667 = vpop.permute.xlu0 %666
        %669 = vset.pattern.permute.xlu0 15
        %670 = vperm.xlu0 %669, %v270
        %v671 = vpop.permute.xlu0 %670
        %673 = vrot.lane.b32.xlu0 %v643, 127
        %v674 = vpop.permute.xlu0 %673
        %675 = vrot.lane.b32.xlu0 %v644, 127
        %v676 = vpop.permute.xlu0 %675
        %v679 = vsel %vm340, %v667, %v674
        %v680 = vsel %vm340, %v671, %v676
        %681 = vrot.lane.b32.xlu0 %v583, 16
        %v682 = vpop.permute.xlu0 %681
        %v683 = vsel %vm304, %v682, %v583
        %684 = vrot.lane.b32.xlu0 %v584, 16
        %v685 = vpop.permute.xlu0 %684
        %v686 = vsel %vm304, %v685, %v584
        %687 = vrot.lane.b32.xlu0 %v683, 16
        %v688 = vpop.permute.xlu0 %687
        %689 = vrot.lane.b32.xlu0 %v686, 16
        %v690 = vpop.permute.xlu0 %689
        %v691 = vsel %vm304, %v688, %v583
        %v692 = vsel %vm304, %v690, %v584
        %694 = vset.pattern.permute.xlu0 0
        %695 = vperm.xlu0 %694, %v583
        %v696 = vpop.permute.xlu0 %695
        %699 = vset.pattern.permute.xlu0 0
        %700 = vperm.xlu0 %699, %v584
        %v701 = vpop.permute.xlu0 %700
        %705 = vrot.lane.b32.xlu0 %v691, 113
        %v706 = vpop.permute.xlu0 %705
        %707 = vrot.lane.b32.xlu0 %v692, 113
        %v708 = vpop.permute.xlu0 %707
        %v711 = vsel %vm318, %v696, %v706
        %v712 = vsel %vm318, %v701, %v708
        %713 = vset.pattern.permute.xlu0 15
        %714 = vperm.xlu0 %713, %v583
        %v715 = vpop.permute.xlu0 %714
        %717 = vset.pattern.permute.xlu0 15
        %718 = vperm.xlu0 %717, %v584
        %v719 = vpop.permute.xlu0 %718
        %721 = vrot.lane.b32.xlu0 %v691, 127
        %v722 = vpop.permute.xlu0 %721
        %723 = vrot.lane.b32.xlu0 %v692, 127
        %v724 = vpop.permute.xlu0 %723
        %v727 = vsel %vm340, %v715, %v722
        %v728 = vsel %vm340, %v719, %v724
        %v729 = vsub.f32 %v615, %v269
        %v730 = vsub.f32 %v616, %v270
        %v731 = vsub.f32 %v573, %v269
        %v732 = vsub.f32 %v574, %v270
        %v733 = vsub.f32 %v631, %v269
        %v734 = vsub.f32 %v632, %v270
        %v735 = vsub.f32 %v663, %v269
        %v736 = vsub.f32 %v664, %v270
        %v737 = vsub.f32 %v679, %v269
        %v738 = vsub.f32 %v680, %v270
        %v739 = vsub.f32 %v711, %v269
        %v740 = vsub.f32 %v712, %v270
        %v741 = vsub.f32 %v583, %v269
        %v742 = vsub.f32 %v584, %v270
        %v743 = vsub.f32 %v727, %v269
        %v744 = vsub.f32 %v728, %v270
        %v745 = vadd.f32 %v729, %v731
        %v746 = vadd.f32 %v730, %v732
        %v747 = vadd.f32 %v745, %v733
        %v748 = vadd.f32 %v746, %v734
        %v749 = vadd.f32 %v747, %v735
        %v750 = vadd.f32 %v748, %v736
        %v751 = vadd.f32 %v749, %v737
        %v752 = vadd.f32 %v750, %v738
        %v753 = vadd.f32 %v751, %v739
        %v754 = vadd.f32 %v752, %v740
        %v755 = vadd.f32 %v753, %v741
        %v756 = vadd.f32 %v754, %v742
        %v757 = vadd.f32 %v755, %v743
        %v758 = vadd.f32 %v756, %v744
        %v759 = vmul.f32 %v757, 0.11111111
        %v760 = vmul.f32 %v758, 0.11111111
        %v761 = vsub.f32 %v729, %v759
        %v762 = vsub.f32 %v730, %v760
        %v763 = vmul.f32 %v761, %v761
        %v764 = vmul.f32 %v762, %v762
        %v765 = vsub.f32 %v731, %v759
        %v766 = vsub.f32 %v732, %v760
        %v767 = vmul.f32 %v765, %v765
        %v768 = vmul.f32 %v766, %v766
        %v769 = vadd.f32 %v763, %v767
        %v770 = vadd.f32 %v764, %v768
        %v771 = vsub.f32 %v733, %v759
        %v772 = vsub.f32 %v734, %v760
        %v773 = vmul.f32 %v771, %v771
        %v774 = vmul.f32 %v772, %v772
        %v775 = vadd.f32 %v769, %v773
        %v776 = vadd.f32 %v770, %v774
        %v777 = vsub.f32 %v735, %v759
        %v778 = vsub.f32 %v736, %v760
        %v779 = vmul.f32 %v777, %v777
        %v780 = vmul.f32 %v778, %v778
        %v781 = vadd.f32 %v775, %v779
        %v782 = vadd.f32 %v776, %v780
        %v783 = vsub.f32 %v737, %v759
        %v784 = vsub.f32 %v738, %v760
        %v785 = vmul.f32 %v783, %v783
        %v786 = vmul.f32 %v784, %v784
        %v787 = vadd.f32 %v781, %v785
        %v788 = vadd.f32 %v782, %v786
        %v789 = vsub.f32 %v739, %v759
        %v790 = vsub.f32 %v740, %v760
        %v791 = vmul.f32 %v789, %v789
        %v792 = vmul.f32 %v790, %v790
        %v793 = vadd.f32 %v787, %v791
        %v794 = vadd.f32 %v788, %v792
        %v795 = vsub.f32 %v741, %v759
        %v796 = vsub.f32 %v742, %v760
        %v797 = vmul.f32 %v795, %v795
        %v798 = vmul.f32 %v796, %v796
        %v799 = vadd.f32 %v793, %v797
        %v800 = vadd.f32 %v794, %v798
        %v801 = vsub.f32 %v743, %v759
        %v802 = vsub.f32 %v744, %v760
        %v803 = vmul.f32 %v801, %v801
        %v804 = vmul.f32 %v802, %v802
        %v805 = vadd.f32 %v799, %v803
        %v806 = vadd.f32 %v800, %v804
        %v807 = vmul.f32 %v759, %v759
        %v808 = vmul.f32 %v760, %v760
        %v809 = vadd.f32 %v805, %v807
        %v810 = vadd.f32 %v806, %v808
        %v811 = vmul.f32 %v809, 0.125
        %v812 = vmul.f32 %v810, 0.125
        %v813 = vmax.f32 %v811, 0.0
        %v814 = vmax.f32 %v812, 0.0
        %v815 = vrsqrt.pop %v813
        %v816 = vmul.f32 %v813, %v815
        %vm817 = vcmp.eq.f32.partialorder %v813, inf
        %v818 = vsel %vm817, %v813, %v816
        %vm819 = vcmp.eq.f32.partialorder %v813, 0.0
        %v820 = vand.u32 %v813, 2147483648
        %v821 = vsel %vm819, %v820, %v818
        %v822 = vrsqrt.pop %v814
        %v823 = vmul.f32 %v814, %v822
        %vm824 = vcmp.eq.f32.partialorder %v814, inf
        %v825 = vsel %vm824, %v814, %v823
        %vm826 = vcmp.eq.f32.partialorder %v814, 0.0
        %v827 = vand.u32 %v814, 2147483648
        %v828 = vsel %vm826, %v827, %v825
        %v829 = vmul.f32 %v821, 0.1
        %v830 = vmul.f32 %v828, 0.1
        %v831 = vadd.f32 %v829, 1e-08
        %v832 = vadd.f32 %v830, 1e-08
        %v833 = vrcp.pop %v831
        %v834 = vrcp.pop %v832
        %v835 = vmul.f32 %v831, %v833
        %v836 = vmul.f32 %v832, %v834
        %v837 = vsub.f32 2.0, %v835
        %v838 = vsub.f32 2.0, %v836
        %v839 = vmul.f32 %v833, %v837
        %v840 = vmul.f32 %v834, %v838
        %v841 = vrot.slane %v271, 7
        %v842 = vrot.slane %v272, 7
        %v843 = vsel %vm263, %v841, %v842
        %v844 = vsel %vm263, %v842, %v841
        %v845 = vlaneseq
        %v846 = vshrl.u32 %v845, 7
        %v847 = vsub.s32 0, %v846
        %v848 = vrot.slane %v271, %v847
        %v849 = vsel %vm281, %v848, %v844
        %v850 = vsel %vm282, %v848, %v843
        %v851 = vrot.slane %v271, 1
        %v852 = vrot.slane %v272, 1
        %v853 = vsel %vm291, %v851, %v852
        %v854 = vsel %vm291, %v852, %v851
        %v855 = vlaneseq
        %v856 = vshrl.u32 %v855, 7
        %v857 = vsub.s32 7, %v856
        %v858 = vrot.slane %v272, %v857
        %v859 = vsel %vm296, %v858, %v853
        %v860 = vsel %vm297, %v858, %v854
        %861 = vrot.lane.b32.xlu0 %v849, 16
        %v862 = vpop.permute.xlu0 %861
        %v863 = vsel %vm304, %v862, %v849
        %864 = vrot.lane.b32.xlu0 %v850, 16
        %v865 = vpop.permute.xlu0 %864
        %v866 = vsel %vm304, %v865, %v850
        %867 = vrot.lane.b32.xlu0 %v863, 16
        %v868 = vpop.permute.xlu0 %867
        %869 = vrot.lane.b32.xlu0 %v866, 16
        %v870 = vpop.permute.xlu0 %869
        %v871 = vsel %vm304, %v868, %v849
        %v872 = vsel %vm304, %v870, %v850
        %874 = vset.pattern.permute.xlu0 0
        %875 = vperm.xlu0 %874, %v849
        %v876 = vpop.permute.xlu0 %875
        %879 = vset.pattern.permute.xlu0 0
        %880 = vperm.xlu0 %879, %v850
        %v881 = vpop.permute.xlu0 %880
        %885 = vrot.lane.b32.xlu0 %v871, 113
        %v886 = vpop.permute.xlu0 %885
        %887 = vrot.lane.b32.xlu0 %v872, 113
        %v888 = vpop.permute.xlu0 %887
        %v891 = vsel %vm318, %v876, %v886
        %v892 = vsel %vm318, %v881, %v888
        %893 = vset.pattern.permute.xlu0 15
        %894 = vperm.xlu0 %893, %v849
        %v895 = vpop.permute.xlu0 %894
        %897 = vset.pattern.permute.xlu0 15
        %898 = vperm.xlu0 %897, %v850
        %v899 = vpop.permute.xlu0 %898
        %901 = vrot.lane.b32.xlu0 %v871, 127
        %v902 = vpop.permute.xlu0 %901
        %903 = vrot.lane.b32.xlu0 %v872, 127
        %v904 = vpop.permute.xlu0 %903
        %v907 = vsel %vm340, %v895, %v902
        %v908 = vsel %vm340, %v899, %v904
        %909 = vrot.lane.b32.xlu0 %v271, 16
        %v910 = vpop.permute.xlu0 %909
        %v911 = vsel %vm304, %v910, %v271
        %912 = vrot.lane.b32.xlu0 %v272, 16
        %v913 = vpop.permute.xlu0 %912
        %v914 = vsel %vm304, %v913, %v272
        %915 = vrot.lane.b32.xlu0 %v911, 16
        %v916 = vpop.permute.xlu0 %915
        %917 = vrot.lane.b32.xlu0 %v914, 16
        %v918 = vpop.permute.xlu0 %917
        %v919 = vsel %vm304, %v916, %v271
        %v920 = vsel %vm304, %v918, %v272
        %922 = vset.pattern.permute.xlu0 0
        %923 = vperm.xlu0 %922, %v271
        %v924 = vpop.permute.xlu0 %923
        %927 = vset.pattern.permute.xlu0 0
        %928 = vperm.xlu0 %927, %v272
        %v929 = vpop.permute.xlu0 %928
        %933 = vrot.lane.b32.xlu0 %v919, 113
        %v934 = vpop.permute.xlu0 %933
        %935 = vrot.lane.b32.xlu0 %v920, 113
        %v936 = vpop.permute.xlu0 %935
        %v939 = vsel %vm318, %v924, %v934
        %v940 = vsel %vm318, %v929, %v936
        %941 = vset.pattern.permute.xlu0 15
        %942 = vperm.xlu0 %941, %v271
        %v943 = vpop.permute.xlu0 %942
        %945 = vset.pattern.permute.xlu0 15
        %946 = vperm.xlu0 %945, %v272
        %v947 = vpop.permute.xlu0 %946
        %949 = vrot.lane.b32.xlu0 %v919, 127
        %v950 = vpop.permute.xlu0 %949
        %951 = vrot.lane.b32.xlu0 %v920, 127
        %v952 = vpop.permute.xlu0 %951
        %v955 = vsel %vm340, %v943, %v950
        %v956 = vsel %vm340, %v947, %v952
        %957 = vrot.lane.b32.xlu0 %v859, 16
        %v958 = vpop.permute.xlu0 %957
        %v959 = vsel %vm304, %v958, %v859
        %960 = vrot.lane.b32.xlu0 %v860, 16
        %v961 = vpop.permute.xlu0 %960
        %v962 = vsel %vm304, %v961, %v860
        %963 = vrot.lane.b32.xlu0 %v959, 16
        %v964 = vpop.permute.xlu0 %963
        %965 = vrot.lane.b32.xlu0 %v962, 16
        %v966 = vpop.permute.xlu0 %965
        %v967 = vsel %vm304, %v964, %v859
        %v968 = vsel %vm304, %v966, %v860
        %970 = vset.pattern.permute.xlu0 0
        %971 = vperm.xlu0 %970, %v859
        %v972 = vpop.permute.xlu0 %971
        %975 = vset.pattern.permute.xlu0 0
        %976 = vperm.xlu0 %975, %v860
        %v977 = vpop.permute.xlu0 %976
        %981 = vrot.lane.b32.xlu0 %v967, 113
        %v982 = vpop.permute.xlu0 %981
        %983 = vrot.lane.b32.xlu0 %v968, 113
        %v984 = vpop.permute.xlu0 %983
        %v987 = vsel %vm318, %v972, %v982
        %v988 = vsel %vm318, %v977, %v984
        %989 = vset.pattern.permute.xlu0 15
        %990 = vperm.xlu0 %989, %v859
        %v991 = vpop.permute.xlu0 %990
        %993 = vset.pattern.permute.xlu0 15
        %994 = vperm.xlu0 %993, %v860
        %v995 = vpop.permute.xlu0 %994
        %997 = vrot.lane.b32.xlu0 %v967, 127
        %v998 = vpop.permute.xlu0 %997
        %999 = vrot.lane.b32.xlu0 %v968, 127
        %v1000 = vpop.permute.xlu0 %999
        %v1003 = vsel %vm340, %v991, %v998
        %v1004 = vsel %vm340, %v995, %v1000
        %v1005 = vsub.f32 %v891, %v271
        %v1006 = vsub.f32 %v892, %v272
        %v1007 = vsub.f32 %v849, %v271
        %v1008 = vsub.f32 %v850, %v272
        %v1009 = vsub.f32 %v907, %v271
        %v1010 = vsub.f32 %v908, %v272
        %v1011 = vsub.f32 %v939, %v271
        %v1012 = vsub.f32 %v940, %v272
        %v1013 = vsub.f32 %v955, %v271
        %v1014 = vsub.f32 %v956, %v272
        %v1015 = vsub.f32 %v987, %v271
        %v1016 = vsub.f32 %v988, %v272
        %v1017 = vsub.f32 %v859, %v271
        %v1018 = vsub.f32 %v860, %v272
        %v1019 = vsub.f32 %v1003, %v271
        %v1020 = vsub.f32 %v1004, %v272
        %v1021 = vadd.f32 %v1005, %v1007
        %v1022 = vadd.f32 %v1006, %v1008
        %v1023 = vadd.f32 %v1021, %v1009
        %v1024 = vadd.f32 %v1022, %v1010
        %v1025 = vadd.f32 %v1023, %v1011
        %v1026 = vadd.f32 %v1024, %v1012
        %v1027 = vadd.f32 %v1025, %v1013
        %v1028 = vadd.f32 %v1026, %v1014
        %v1029 = vadd.f32 %v1027, %v1015
        %v1030 = vadd.f32 %v1028, %v1016
        %v1031 = vadd.f32 %v1029, %v1017
        %v1032 = vadd.f32 %v1030, %v1018
        %v1033 = vadd.f32 %v1031, %v1019
        %v1034 = vadd.f32 %v1032, %v1020
        %v1035 = vmul.f32 %v1033, 0.11111111
        %v1036 = vmul.f32 %v1034, 0.11111111
        %v1037 = vsub.f32 %v1005, %v1035
        %v1038 = vsub.f32 %v1006, %v1036
        %v1039 = vmul.f32 %v1037, %v1037
        %v1040 = vmul.f32 %v1038, %v1038
        %v1041 = vsub.f32 %v1007, %v1035
        %v1042 = vsub.f32 %v1008, %v1036
        %v1043 = vmul.f32 %v1041, %v1041
        %v1044 = vmul.f32 %v1042, %v1042
        %v1045 = vadd.f32 %v1039, %v1043
        %v1046 = vadd.f32 %v1040, %v1044
        %v1047 = vsub.f32 %v1009, %v1035
        %v1048 = vsub.f32 %v1010, %v1036
        %v1049 = vmul.f32 %v1047, %v1047
        %v1050 = vmul.f32 %v1048, %v1048
        %v1051 = vadd.f32 %v1045, %v1049
        %v1052 = vadd.f32 %v1046, %v1050
        %v1053 = vsub.f32 %v1011, %v1035
        %v1054 = vsub.f32 %v1012, %v1036
        %v1055 = vmul.f32 %v1053, %v1053
        %v1056 = vmul.f32 %v1054, %v1054
        %v1057 = vadd.f32 %v1051, %v1055
        %v1058 = vadd.f32 %v1052, %v1056
        %v1059 = vsub.f32 %v1013, %v1035
        %v1060 = vsub.f32 %v1014, %v1036
        %v1061 = vmul.f32 %v1059, %v1059
        %v1062 = vmul.f32 %v1060, %v1060
        %v1063 = vadd.f32 %v1057, %v1061
        %v1064 = vadd.f32 %v1058, %v1062
        %v1065 = vsub.f32 %v1015, %v1035
        %v1066 = vsub.f32 %v1016, %v1036
        %v1067 = vmul.f32 %v1065, %v1065
        %v1068 = vmul.f32 %v1066, %v1066
        %v1069 = vadd.f32 %v1063, %v1067
        %v1070 = vadd.f32 %v1064, %v1068
        %v1071 = vsub.f32 %v1017, %v1035
        %v1072 = vsub.f32 %v1018, %v1036
        %v1073 = vmul.f32 %v1071, %v1071
        %v1074 = vmul.f32 %v1072, %v1072
        %v1075 = vadd.f32 %v1069, %v1073
        %v1076 = vadd.f32 %v1070, %v1074
        %v1077 = vsub.f32 %v1019, %v1035
        %v1078 = vsub.f32 %v1020, %v1036
        %v1079 = vmul.f32 %v1077, %v1077
        %v1080 = vmul.f32 %v1078, %v1078
        %v1081 = vadd.f32 %v1075, %v1079
        %v1082 = vadd.f32 %v1076, %v1080
        %v1083 = vmul.f32 %v1035, %v1035
        %v1084 = vmul.f32 %v1036, %v1036
        %v1085 = vadd.f32 %v1081, %v1083
        %v1086 = vadd.f32 %v1082, %v1084
        %v1087 = vmul.f32 %v1085, 0.125
        %v1088 = vmul.f32 %v1086, 0.125
        %v1089 = vmax.f32 %v1087, 0.0
        %v1090 = vmax.f32 %v1088, 0.0
        %v1091 = vrsqrt.pop %v1089
        %v1092 = vmul.f32 %v1089, %v1091
        %vm1093 = vcmp.eq.f32.partialorder %v1089, inf
        %v1094 = vsel %vm1093, %v1089, %v1092
        %vm1095 = vcmp.eq.f32.partialorder %v1089, 0.0
        %v1096 = vand.u32 %v1089, 2147483648
        %v1097 = vsel %vm1095, %v1096, %v1094
        %v1098 = vrsqrt.pop %v1090
        %v1099 = vmul.f32 %v1090, %v1098
        %vm1100 = vcmp.eq.f32.partialorder %v1090, inf
        %v1101 = vsel %vm1100, %v1090, %v1099
        %vm1102 = vcmp.eq.f32.partialorder %v1090, 0.0
        %v1103 = vand.u32 %v1090, 2147483648
        %v1104 = vsel %vm1102, %v1103, %v1101
        %v1105 = vmul.f32 %v1097, 0.1
        %v1106 = vmul.f32 %v1104, 0.1
        %v1107 = vadd.f32 %v1105, 1e-08
        %v1108 = vadd.f32 %v1106, 1e-08
        %v1109 = vrcp.pop %v1107
        %v1110 = vrcp.pop %v1108
        %v1111 = vmul.f32 %v1107, %v1109
        %v1112 = vmul.f32 %v1108, %v1110
        %v1113 = vsub.f32 2.0, %v1111
        %v1114 = vsub.f32 2.0, %v1112
        %v1115 = vmul.f32 %v1109, %v1113
        %v1116 = vmul.f32 %v1110, %v1114
        %v1117 = vrot.slane %v273, 7
        %v1118 = vrot.slane %v274, 7
        %v1119 = vsel %vm263, %v1117, %v1118
        %v1120 = vsel %vm263, %v1118, %v1117
        %v1121 = vlaneseq
        %v1122 = vshrl.u32 %v1121, 7
        %v1123 = vsub.s32 0, %v1122
        %v1124 = vrot.slane %v273, %v1123
        %v1125 = vsel %vm281, %v1124, %v1120
        %v1126 = vsel %vm282, %v1124, %v1119
        %v1127 = vrot.slane %v273, 1
        %v1128 = vrot.slane %v274, 1
        %v1129 = vsel %vm291, %v1127, %v1128
        %v1130 = vsel %vm291, %v1128, %v1127
        %v1131 = vlaneseq
        %v1132 = vshrl.u32 %v1131, 7
        %v1133 = vsub.s32 7, %v1132
        %v1134 = vrot.slane %v274, %v1133
        %v1135 = vsel %vm296, %v1134, %v1129
        %v1136 = vsel %vm297, %v1134, %v1130
        %1137 = vrot.lane.b32.xlu0 %v1125, 16
        %v1138 = vpop.permute.xlu0 %1137
        %v1139 = vsel %vm304, %v1138, %v1125
        %1140 = vrot.lane.b32.xlu0 %v1126, 16
        %v1141 = vpop.permute.xlu0 %1140
        %v1142 = vsel %vm304, %v1141, %v1126
        %1143 = vrot.lane.b32.xlu0 %v1139, 16
        %v1144 = vpop.permute.xlu0 %1143
        %1145 = vrot.lane.b32.xlu0 %v1142, 16
        %v1146 = vpop.permute.xlu0 %1145
        %v1147 = vsel %vm304, %v1144, %v1125
        %v1148 = vsel %vm304, %v1146, %v1126
        %1150 = vset.pattern.permute.xlu0 0
        %1151 = vperm.xlu0 %1150, %v1125
        %v1152 = vpop.permute.xlu0 %1151
        %1155 = vset.pattern.permute.xlu0 0
        %1156 = vperm.xlu0 %1155, %v1126
        %v1157 = vpop.permute.xlu0 %1156
        %1161 = vrot.lane.b32.xlu0 %v1147, 113
        %v1162 = vpop.permute.xlu0 %1161
        %1163 = vrot.lane.b32.xlu0 %v1148, 113
        %v1164 = vpop.permute.xlu0 %1163
        %v1167 = vsel %vm318, %v1152, %v1162
        %v1168 = vsel %vm318, %v1157, %v1164
        %1169 = vset.pattern.permute.xlu0 15
        %1170 = vperm.xlu0 %1169, %v1125
        %v1171 = vpop.permute.xlu0 %1170
        %1173 = vset.pattern.permute.xlu0 15
        %1174 = vperm.xlu0 %1173, %v1126
        %v1175 = vpop.permute.xlu0 %1174
        %1177 = vrot.lane.b32.xlu0 %v1147, 127
        %v1178 = vpop.permute.xlu0 %1177
        %1179 = vrot.lane.b32.xlu0 %v1148, 127
        %v1180 = vpop.permute.xlu0 %1179
        %v1183 = vsel %vm340, %v1171, %v1178
        %v1184 = vsel %vm340, %v1175, %v1180
        %1185 = vrot.lane.b32.xlu0 %v273, 16
        %v1186 = vpop.permute.xlu0 %1185
        %v1187 = vsel %vm304, %v1186, %v273
        %1188 = vrot.lane.b32.xlu0 %v274, 16
        %v1189 = vpop.permute.xlu0 %1188
        %v1190 = vsel %vm304, %v1189, %v274
        %1191 = vrot.lane.b32.xlu0 %v1187, 16
        %v1192 = vpop.permute.xlu0 %1191
        %1193 = vrot.lane.b32.xlu0 %v1190, 16
        %v1194 = vpop.permute.xlu0 %1193
        %v1195 = vsel %vm304, %v1192, %v273
        %v1196 = vsel %vm304, %v1194, %v274
        %1198 = vset.pattern.permute.xlu0 0
        %1199 = vperm.xlu0 %1198, %v273
        %v1200 = vpop.permute.xlu0 %1199
        %1203 = vset.pattern.permute.xlu0 0
        %1204 = vperm.xlu0 %1203, %v274
        %v1205 = vpop.permute.xlu0 %1204
        %1209 = vrot.lane.b32.xlu0 %v1195, 113
        %v1210 = vpop.permute.xlu0 %1209
        %1211 = vrot.lane.b32.xlu0 %v1196, 113
        %v1212 = vpop.permute.xlu0 %1211
        %v1215 = vsel %vm318, %v1200, %v1210
        %v1216 = vsel %vm318, %v1205, %v1212
        %1217 = vset.pattern.permute.xlu0 15
        %1218 = vperm.xlu0 %1217, %v273
        %v1219 = vpop.permute.xlu0 %1218
        %1221 = vset.pattern.permute.xlu0 15
        %1222 = vperm.xlu0 %1221, %v274
        %v1223 = vpop.permute.xlu0 %1222
        %1225 = vrot.lane.b32.xlu0 %v1195, 127
        %v1226 = vpop.permute.xlu0 %1225
        %1227 = vrot.lane.b32.xlu0 %v1196, 127
        %v1228 = vpop.permute.xlu0 %1227
        %v1231 = vsel %vm340, %v1219, %v1226
        %v1232 = vsel %vm340, %v1223, %v1228
        %1233 = vrot.lane.b32.xlu0 %v1135, 16
        %v1234 = vpop.permute.xlu0 %1233
        %v1235 = vsel %vm304, %v1234, %v1135
        %1236 = vrot.lane.b32.xlu0 %v1136, 16
        %v1237 = vpop.permute.xlu0 %1236
        %v1238 = vsel %vm304, %v1237, %v1136
        %1239 = vrot.lane.b32.xlu0 %v1235, 16
        %v1240 = vpop.permute.xlu0 %1239
        %1241 = vrot.lane.b32.xlu0 %v1238, 16
        %v1242 = vpop.permute.xlu0 %1241
        %v1243 = vsel %vm304, %v1240, %v1135
        %v1244 = vsel %vm304, %v1242, %v1136
        %1246 = vset.pattern.permute.xlu0 0
        %1247 = vperm.xlu0 %1246, %v1135
        %v1248 = vpop.permute.xlu0 %1247
        %1251 = vset.pattern.permute.xlu0 0
        %1252 = vperm.xlu0 %1251, %v1136
        %v1253 = vpop.permute.xlu0 %1252
        %1257 = vrot.lane.b32.xlu0 %v1243, 113
        %v1258 = vpop.permute.xlu0 %1257
        %1259 = vrot.lane.b32.xlu0 %v1244, 113
        %v1260 = vpop.permute.xlu0 %1259
        %v1263 = vsel %vm318, %v1248, %v1258
        %v1264 = vsel %vm318, %v1253, %v1260
        %1265 = vset.pattern.permute.xlu0 15
        %1266 = vperm.xlu0 %1265, %v1135
        %v1267 = vpop.permute.xlu0 %1266
        %1269 = vset.pattern.permute.xlu0 15
        %1270 = vperm.xlu0 %1269, %v1136
        %v1271 = vpop.permute.xlu0 %1270
        %1273 = vrot.lane.b32.xlu0 %v1243, 127
        %v1274 = vpop.permute.xlu0 %1273
        %1275 = vrot.lane.b32.xlu0 %v1244, 127
        %v1276 = vpop.permute.xlu0 %1275
        %v1279 = vsel %vm340, %v1267, %v1274
        %v1280 = vsel %vm340, %v1271, %v1276
        %v1281 = vsub.f32 %v1167, %v273
        %v1282 = vsub.f32 %v1168, %v274
        %v1283 = vsub.f32 %v1125, %v273
        %v1284 = vsub.f32 %v1126, %v274
        %v1285 = vsub.f32 %v1183, %v273
        %v1286 = vsub.f32 %v1184, %v274
        %v1287 = vsub.f32 %v1215, %v273
        %v1288 = vsub.f32 %v1216, %v274
        %v1289 = vsub.f32 %v1231, %v273
        %v1290 = vsub.f32 %v1232, %v274
        %v1291 = vsub.f32 %v1263, %v273
        %v1292 = vsub.f32 %v1264, %v274
        %v1293 = vsub.f32 %v1135, %v273
        %v1294 = vsub.f32 %v1136, %v274
        %v1295 = vsub.f32 %v1279, %v273
        %v1296 = vsub.f32 %v1280, %v274
        %v1297 = vadd.f32 %v1281, %v1283
        %v1298 = vadd.f32 %v1282, %v1284
        %v1299 = vadd.f32 %v1297, %v1285
        %v1300 = vadd.f32 %v1298, %v1286
        %v1301 = vadd.f32 %v1299, %v1287
        %v1302 = vadd.f32 %v1300, %v1288
        %v1303 = vadd.f32 %v1301, %v1289
        %v1304 = vadd.f32 %v1302, %v1290
        %v1305 = vadd.f32 %v1303, %v1291
        %v1306 = vadd.f32 %v1304, %v1292
        %v1307 = vadd.f32 %v1305, %v1293
        %v1308 = vadd.f32 %v1306, %v1294
        %v1309 = vadd.f32 %v1307, %v1295
        %v1310 = vadd.f32 %v1308, %v1296
        %v1311 = vmul.f32 %v1309, 0.11111111
        %v1312 = vmul.f32 %v1310, 0.11111111
        %v1313 = vsub.f32 %v1281, %v1311
        %v1314 = vsub.f32 %v1282, %v1312
        %v1315 = vmul.f32 %v1313, %v1313
        %v1316 = vmul.f32 %v1314, %v1314
        %v1317 = vsub.f32 %v1283, %v1311
        %v1318 = vsub.f32 %v1284, %v1312
        %v1319 = vmul.f32 %v1317, %v1317
        %v1320 = vmul.f32 %v1318, %v1318
        %v1321 = vadd.f32 %v1315, %v1319
        %v1322 = vadd.f32 %v1316, %v1320
        %v1323 = vsub.f32 %v1285, %v1311
        %v1324 = vsub.f32 %v1286, %v1312
        %v1325 = vmul.f32 %v1323, %v1323
        %v1326 = vmul.f32 %v1324, %v1324
        %v1327 = vadd.f32 %v1321, %v1325
        %v1328 = vadd.f32 %v1322, %v1326
        %v1329 = vsub.f32 %v1287, %v1311
        %v1330 = vsub.f32 %v1288, %v1312
        %v1331 = vmul.f32 %v1329, %v1329
        %v1332 = vmul.f32 %v1330, %v1330
        %v1333 = vadd.f32 %v1327, %v1331
        %v1334 = vadd.f32 %v1328, %v1332
        %v1335 = vsub.f32 %v1289, %v1311
        %v1336 = vsub.f32 %v1290, %v1312
        %v1337 = vmul.f32 %v1335, %v1335
        %v1338 = vmul.f32 %v1336, %v1336
        %v1339 = vadd.f32 %v1333, %v1337
        %v1340 = vadd.f32 %v1334, %v1338
        %v1341 = vsub.f32 %v1291, %v1311
        %v1342 = vsub.f32 %v1292, %v1312
        %v1343 = vmul.f32 %v1341, %v1341
        %v1344 = vmul.f32 %v1342, %v1342
        %v1345 = vadd.f32 %v1339, %v1343
        %v1346 = vadd.f32 %v1340, %v1344
        %v1347 = vsub.f32 %v1293, %v1311
        %v1348 = vsub.f32 %v1294, %v1312
        %v1349 = vmul.f32 %v1347, %v1347
        %v1350 = vmul.f32 %v1348, %v1348
        %v1351 = vadd.f32 %v1345, %v1349
        %v1352 = vadd.f32 %v1346, %v1350
        %v1353 = vsub.f32 %v1295, %v1311
        %v1354 = vsub.f32 %v1296, %v1312
        %v1355 = vmul.f32 %v1353, %v1353
        %v1356 = vmul.f32 %v1354, %v1354
        %v1357 = vadd.f32 %v1351, %v1355
        %v1358 = vadd.f32 %v1352, %v1356
        %v1359 = vmul.f32 %v1311, %v1311
        %v1360 = vmul.f32 %v1312, %v1312
        %v1361 = vadd.f32 %v1357, %v1359
        %v1362 = vadd.f32 %v1358, %v1360
        %v1363 = vmul.f32 %v1361, 0.125
        %v1364 = vmul.f32 %v1362, 0.125
        %v1365 = vmax.f32 %v1363, 0.0
        %v1366 = vmax.f32 %v1364, 0.0
        %v1367 = vrsqrt.pop %v1365
        %v1368 = vmul.f32 %v1365, %v1367
        %vm1369 = vcmp.eq.f32.partialorder %v1365, inf
        %v1370 = vsel %vm1369, %v1365, %v1368
        %vm1371 = vcmp.eq.f32.partialorder %v1365, 0.0
        %v1372 = vand.u32 %v1365, 2147483648
        %v1373 = vsel %vm1371, %v1372, %v1370
        %v1374 = vrsqrt.pop %v1366
        %v1375 = vmul.f32 %v1366, %v1374
        %vm1376 = vcmp.eq.f32.partialorder %v1366, inf
        %v1377 = vsel %vm1376, %v1366, %v1375
        %vm1378 = vcmp.eq.f32.partialorder %v1366, 0.0
        %v1379 = vand.u32 %v1366, 2147483648
        %v1380 = vsel %vm1378, %v1379, %v1377
        %v1381 = vmul.f32 %v1373, 0.1
        %v1382 = vmul.f32 %v1380, 0.1
        %v1383 = vadd.f32 %v1381, 1e-08
        %v1384 = vadd.f32 %v1382, 1e-08
        %v1385 = vrcp.pop %v1383
        %v1386 = vrcp.pop %v1384
        %v1387 = vmul.f32 %v1383, %v1385
        %v1388 = vmul.f32 %v1384, %v1386
        %v1389 = vsub.f32 2.0, %v1387
        %v1390 = vsub.f32 2.0, %v1388
        %v1391 = vmul.f32 %v1385, %v1389
        %v1392 = vmul.f32 %v1386, %v1390
        %v1393 = vand.u32 2147483647, %v453
        %v1394 = vand.u32 2147483647, %v454
        %v1395 = vmul.f32 %v1393, %v563
        %v1396 = vmul.f32 %v1394, %v564
        %v1397 = vand.u32 2147483647, %v729
        %v1398 = vand.u32 2147483647, %v730
        %v1399 = vmul.f32 %v1397, %v839
        %v1400 = vmul.f32 %v1398, %v840
        %v1401 = vadd.f32 %v1395, %v1399
        %v1402 = vadd.f32 %v1396, %v1400
        %v1403 = vand.u32 2147483647, %v1005
        %v1404 = vand.u32 2147483647, %v1006
        %v1405 = vmul.f32 %v1403, %v1115
        %v1406 = vmul.f32 %v1404, %v1116
        %v1407 = vadd.f32 %v1401, %v1405
        %v1408 = vadd.f32 %v1402, %v1406
        %v1409 = vand.u32 2147483647, %v1281
        %v1410 = vand.u32 2147483647, %v1282
        %v1411 = vmul.f32 %v1409, %v1391
        %v1412 = vmul.f32 %v1410, %v1392
        %v1413 = vadd.f32 %v1407, %v1411
        %v1414 = vadd.f32 %v1408, %v1412
        %v1415 = vmul.f32 %v1413, 0.25
        %v1416 = vmul.f32 %v1414, 0.25
        %v1417 = vsub.f32 0.0, %v1415
        %v1418 = vsub.f32 0.0, %v1416
        %v1419 = vand.u32 2147483647, %v455
        %v1420 = vand.u32 2147483647, %v456
        %v1421 = vmul.f32 %v1419, %v563
        %v1422 = vmul.f32 %v1420, %v564
        %v1423 = vand.u32 2147483647, %v731
        %v1424 = vand.u32 2147483647, %v732
        %v1425 = vmul.f32 %v1423, %v839
        %v1426 = vmul.f32 %v1424, %v840
        %v1427 = vadd.f32 %v1421, %v1425
        %v1428 = vadd.f32 %v1422, %v1426
        %v1429 = vand.u32 2147483647, %v1007
        %v1430 = vand.u32 2147483647, %v1008
        %v1431 = vmul.f32 %v1429, %v1115
        %v1432 = vmul.f32 %v1430, %v1116
        %v1433 = vadd.f32 %v1427, %v1431
        %v1434 = vadd.f32 %v1428, %v1432
        %v1435 = vand.u32 2147483647, %v1283
        %v1436 = vand.u32 2147483647, %v1284
        %v1437 = vmul.f32 %v1435, %v1391
        %v1438 = vmul.f32 %v1436, %v1392
        %v1439 = vadd.f32 %v1433, %v1437
        %v1440 = vadd.f32 %v1434, %v1438
        %v1441 = vmul.f32 %v1439, 0.25
        %v1442 = vmul.f32 %v1440, 0.25
        %v1443 = vsub.f32 0.0, %v1441
        %v1444 = vsub.f32 0.0, %v1442
        %v1445 = vand.u32 2147483647, %v457
        %v1446 = vand.u32 2147483647, %v458
        %v1447 = vmul.f32 %v1445, %v563
        %v1448 = vmul.f32 %v1446, %v564
        %v1449 = vand.u32 2147483647, %v733
        %v1450 = vand.u32 2147483647, %v734
        %v1451 = vmul.f32 %v1449, %v839
        %v1452 = vmul.f32 %v1450, %v840
        %v1453 = vadd.f32 %v1447, %v1451
        %v1454 = vadd.f32 %v1448, %v1452
        %v1455 = vand.u32 2147483647, %v1009
        %v1456 = vand.u32 2147483647, %v1010
        %v1457 = vmul.f32 %v1455, %v1115
        %v1458 = vmul.f32 %v1456, %v1116
        %v1459 = vadd.f32 %v1453, %v1457
        %v1460 = vadd.f32 %v1454, %v1458
        %v1461 = vand.u32 2147483647, %v1285
        %v1462 = vand.u32 2147483647, %v1286
        %v1463 = vmul.f32 %v1461, %v1391
        %v1464 = vmul.f32 %v1462, %v1392
        %v1465 = vadd.f32 %v1459, %v1463
        %v1466 = vadd.f32 %v1460, %v1464
        %v1467 = vmul.f32 %v1465, 0.25
        %v1468 = vmul.f32 %v1466, 0.25
        %v1469 = vsub.f32 0.0, %v1467
        %v1470 = vsub.f32 0.0, %v1468
        %v1471 = vand.u32 2147483647, %v459
        %v1472 = vand.u32 2147483647, %v460
        %v1473 = vmul.f32 %v1471, %v563
        %v1474 = vmul.f32 %v1472, %v564
        %v1475 = vand.u32 2147483647, %v735
        %v1476 = vand.u32 2147483647, %v736
        %v1477 = vmul.f32 %v1475, %v839
        %v1478 = vmul.f32 %v1476, %v840
        %v1479 = vadd.f32 %v1473, %v1477
        %v1480 = vadd.f32 %v1474, %v1478
        %v1481 = vand.u32 2147483647, %v1011
        %v1482 = vand.u32 2147483647, %v1012
        %v1483 = vmul.f32 %v1481, %v1115
        %v1484 = vmul.f32 %v1482, %v1116
        %v1485 = vadd.f32 %v1479, %v1483
        %v1486 = vadd.f32 %v1480, %v1484
        %v1487 = vand.u32 2147483647, %v1287
        %v1488 = vand.u32 2147483647, %v1288
        %v1489 = vmul.f32 %v1487, %v1391
        %v1490 = vmul.f32 %v1488, %v1392
        %v1491 = vadd.f32 %v1485, %v1489
        %v1492 = vadd.f32 %v1486, %v1490
        %v1493 = vmul.f32 %v1491, 0.25
        %v1494 = vmul.f32 %v1492, 0.25
        %v1495 = vsub.f32 0.0, %v1493
        %v1496 = vsub.f32 0.0, %v1494
        %v1497 = vand.u32 2147483647, %v461
        %v1498 = vand.u32 2147483647, %v462
        %v1499 = vmul.f32 %v1497, %v563
        %v1500 = vmul.f32 %v1498, %v564
        %v1501 = vand.u32 2147483647, %v737
        %v1502 = vand.u32 2147483647, %v738
        %v1503 = vmul.f32 %v1501, %v839
        %v1504 = vmul.f32 %v1502, %v840
        %v1505 = vadd.f32 %v1499, %v1503
        %v1506 = vadd.f32 %v1500, %v1504
        %v1507 = vand.u32 2147483647, %v1013
        %v1508 = vand.u32 2147483647, %v1014
        %v1509 = vmul.f32 %v1507, %v1115
        %v1510 = vmul.f32 %v1508, %v1116
        %v1511 = vadd.f32 %v1505, %v1509
        %v1512 = vadd.f32 %v1506, %v1510
        %v1513 = vand.u32 2147483647, %v1289
        %v1514 = vand.u32 2147483647, %v1290
        %v1515 = vmul.f32 %v1513, %v1391
        %v1516 = vmul.f32 %v1514, %v1392
        %v1517 = vadd.f32 %v1511, %v1515
        %v1518 = vadd.f32 %v1512, %v1516
        %v1519 = vmul.f32 %v1517, 0.25
        %v1520 = vmul.f32 %v1518, 0.25
        %v1521 = vsub.f32 0.0, %v1519
        %v1522 = vsub.f32 0.0, %v1520
        %v1523 = vand.u32 2147483647, %v463
        %v1524 = vand.u32 2147483647, %v464
        %v1525 = vmul.f32 %v1523, %v563
        %v1526 = vmul.f32 %v1524, %v564
        %v1527 = vand.u32 2147483647, %v739
        %v1528 = vand.u32 2147483647, %v740
        %v1529 = vmul.f32 %v1527, %v839
        %v1530 = vmul.f32 %v1528, %v840
        %v1531 = vadd.f32 %v1525, %v1529
        %v1532 = vadd.f32 %v1526, %v1530
        %v1533 = vand.u32 2147483647, %v1015
        %v1534 = vand.u32 2147483647, %v1016
        %v1535 = vmul.f32 %v1533, %v1115
        %v1536 = vmul.f32 %v1534, %v1116
        %v1537 = vadd.f32 %v1531, %v1535
        %v1538 = vadd.f32 %v1532, %v1536
        %v1539 = vand.u32 2147483647, %v1291
        %v1540 = vand.u32 2147483647, %v1292
        %v1541 = vmul.f32 %v1539, %v1391
        %v1542 = vmul.f32 %v1540, %v1392
        %v1543 = vadd.f32 %v1537, %v1541
        %v1544 = vadd.f32 %v1538, %v1542
        %v1545 = vmul.f32 %v1543, 0.25
        %v1546 = vmul.f32 %v1544, 0.25
        %v1547 = vsub.f32 0.0, %v1545
        %v1548 = vsub.f32 0.0, %v1546
        %v1549 = vand.u32 2147483647, %v465
        %v1550 = vand.u32 2147483647, %v466
        %v1551 = vmul.f32 %v1549, %v563
        %v1552 = vmul.f32 %v1550, %v564
        %v1553 = vand.u32 2147483647, %v741
        %v1554 = vand.u32 2147483647, %v742
        %v1555 = vmul.f32 %v1553, %v839
        %v1556 = vmul.f32 %v1554, %v840
        %v1557 = vadd.f32 %v1551, %v1555
        %v1558 = vadd.f32 %v1552, %v1556
        %v1559 = vand.u32 2147483647, %v1017
        %v1560 = vand.u32 2147483647, %v1018
        %v1561 = vmul.f32 %v1559, %v1115
        %v1562 = vmul.f32 %v1560, %v1116
        %v1563 = vadd.f32 %v1557, %v1561
        %v1564 = vadd.f32 %v1558, %v1562
        %v1565 = vand.u32 2147483647, %v1293
        %v1566 = vand.u32 2147483647, %v1294
        %v1567 = vmul.f32 %v1565, %v1391
        %v1568 = vmul.f32 %v1566, %v1392
        %v1569 = vadd.f32 %v1563, %v1567
        %v1570 = vadd.f32 %v1564, %v1568
        %v1571 = vmul.f32 %v1569, 0.25
        %v1572 = vmul.f32 %v1570, 0.25
        %v1573 = vsub.f32 0.0, %v1571
        %v1574 = vsub.f32 0.0, %v1572
        %v1575 = vand.u32 2147483647, %v467
        %v1576 = vand.u32 2147483647, %v468
        %v1577 = vmul.f32 %v1575, %v563
        %v1578 = vmul.f32 %v1576, %v564
        %v1579 = vand.u32 2147483647, %v743
        %v1580 = vand.u32 2147483647, %v744
        %v1581 = vmul.f32 %v1579, %v839
        %v1582 = vmul.f32 %v1580, %v840
        %v1583 = vadd.f32 %v1577, %v1581
        %v1584 = vadd.f32 %v1578, %v1582
        %v1585 = vand.u32 2147483647, %v1019
        %v1586 = vand.u32 2147483647, %v1020
        %v1587 = vmul.f32 %v1585, %v1115
        %v1588 = vmul.f32 %v1586, %v1116
        %v1589 = vadd.f32 %v1583, %v1587
        %v1590 = vadd.f32 %v1584, %v1588
        %v1591 = vand.u32 2147483647, %v1295
        %v1592 = vand.u32 2147483647, %v1296
        %v1593 = vmul.f32 %v1591, %v1391
        %v1594 = vmul.f32 %v1592, %v1392
        %v1595 = vadd.f32 %v1589, %v1593
        %v1596 = vadd.f32 %v1590, %v1594
        %v1597 = vmul.f32 %v1595, 0.25
        %v1598 = vmul.f32 %v1596, 0.25
        %v1599 = vsub.f32 0.0, %v1597
        %v1600 = vsub.f32 0.0, %v1598
        %v1601 = vmax.f32 %v1417, %v1443
        %v1602 = vmax.f32 %v1418, %v1444
        %v1603 = vmax.f32 %v1601, %v1469
        %v1604 = vmax.f32 %v1602, %v1470
        %v1605 = vmax.f32 %v1603, %v1495
        %v1606 = vmax.f32 %v1604, %v1496
        %v1607 = vmax.f32 %v1605, %v1521
        %v1608 = vmax.f32 %v1606, %v1522
        %v1609 = vmax.f32 %v1607, %v1547
        %v1610 = vmax.f32 %v1608, %v1548
        %v1611 = vmax.f32 %v1609, %v1573
        %v1612 = vmax.f32 %v1610, %v1574
        %v1613 = vmax.f32 %v1611, %v1599
        %v1614 = vmax.f32 %v1612, %v1600
        %v1615 = vsub.f32 %v1417, %v1613
        %v1616 = vsub.f32 %v1418, %v1614
        %v1617 = vmul.f32 %v1615, 1.442695
        %v1618 = vpow.pop %v1617
        %v1619 = vmul.f32 %v1616, 1.442695
        %v1620 = vpow.pop %v1619
        %v1621 = vsub.f32 %v1443, %v1613
        %v1622 = vsub.f32 %v1444, %v1614
        %v1623 = vmul.f32 %v1621, 1.442695
        %v1624 = vpow.pop %v1623
        %v1625 = vmul.f32 %v1622, 1.442695
        %v1626 = vpow.pop %v1625
        %v1627 = vsub.f32 %v1469, %v1613
        %v1628 = vsub.f32 %v1470, %v1614
        %v1629 = vmul.f32 %v1627, 1.442695
        %v1630 = vpow.pop %v1629
        %v1631 = vmul.f32 %v1628, 1.442695
        %v1632 = vpow.pop %v1631
        %v1633 = vsub.f32 %v1495, %v1613
        %v1634 = vsub.f32 %v1496, %v1614
        %v1635 = vmul.f32 %v1633, 1.442695
        %v1636 = vpow.pop %v1635
        %v1637 = vmul.f32 %v1634, 1.442695
        %v1638 = vpow.pop %v1637
        %v1639 = vsub.f32 %v1521, %v1613
        %v1640 = vsub.f32 %v1522, %v1614
        %v1641 = vmul.f32 %v1639, 1.442695
        %v1642 = vpow.pop %v1641
        %v1643 = vmul.f32 %v1640, 1.442695
        %v1644 = vpow.pop %v1643
        %v1645 = vsub.f32 %v1547, %v1613
        %v1646 = vsub.f32 %v1548, %v1614
        %v1647 = vmul.f32 %v1645, 1.442695
        %v1648 = vpow.pop %v1647
        %v1649 = vmul.f32 %v1646, 1.442695
        %v1650 = vpow.pop %v1649
        %v1651 = vsub.f32 %v1573, %v1613
        %v1652 = vsub.f32 %v1574, %v1614
        %v1653 = vmul.f32 %v1651, 1.442695
        %v1654 = vpow.pop %v1653
        %v1655 = vmul.f32 %v1652, 1.442695
        %v1656 = vpow.pop %v1655
        %v1657 = vsub.f32 %v1599, %v1613
        %v1658 = vsub.f32 %v1600, %v1614
        %v1659 = vmul.f32 %v1657, 1.442695
        %v1660 = vpow.pop %v1659
        %v1661 = vmul.f32 %v1658, 1.442695
        %v1662 = vpow.pop %v1661
        %v1663 = vadd.f32 %v1618, %v1624
        %v1664 = vadd.f32 %v1620, %v1626
        %v1665 = vadd.f32 %v1663, %v1630
        %v1666 = vadd.f32 %v1664, %v1632
        %v1667 = vadd.f32 %v1665, %v1636
        %v1668 = vadd.f32 %v1666, %v1638
        %v1669 = vadd.f32 %v1667, %v1642
        %v1670 = vadd.f32 %v1668, %v1644
        %v1671 = vadd.f32 %v1669, %v1648
        %v1672 = vadd.f32 %v1670, %v1650
        %v1673 = vadd.f32 %v1671, %v1654
        %v1674 = vadd.f32 %v1672, %v1656
        %v1675 = vadd.f32 %v1673, %v1660
        %v1676 = vadd.f32 %v1674, %v1662
        %v1677 = vrcp.pop %v1675
        %v1678 = vrcp.pop %v1676
        %v1679 = vmul.f32 %v1675, %v1677
        %v1680 = vmul.f32 %v1676, %v1678
        %v1681 = vsub.f32 2.0, %v1679
        %v1682 = vsub.f32 2.0, %v1680
        %v1683 = vmul.f32 %v1677, %v1681
        %v1684 = vmul.f32 %v1678, %v1682
        %v1685 = vmul.f32 %v1618, %v1683
        %v1686 = vmul.f32 %v1620, %v1684
        %v1687 = vmul.f32 %v1624, %v1683
        %v1688 = vmul.f32 %v1626, %v1684
        %v1689 = vmul.f32 %v1630, %v1683
        %v1690 = vmul.f32 %v1632, %v1684
        %v1691 = vmul.f32 %v1636, %v1683
        %v1692 = vmul.f32 %v1638, %v1684
        %v1693 = vmul.f32 %v1642, %v1683
        %v1694 = vmul.f32 %v1644, %v1684
        %v1695 = vmul.f32 %v1648, %v1683
        %v1696 = vmul.f32 %v1650, %v1684
        %v1697 = vmul.f32 %v1654, %v1683
        %v1698 = vmul.f32 %v1656, %v1684
        %v1699 = vmul.f32 %v1660, %v1683
        %v1700 = vmul.f32 %v1662, %v1684
        %v1701 = vld [vmem:[%s2] sm:$0xff]
        %v1702 = vld [vmem:[%s2 + $0x8] sm:$0xff]
        %v1703 = vld [vmem:[%s3] sm:$0xff]
        %v1704 = vld [vmem:[%s226] sm:$0xff]
        %v1705 = vld [vmem:[%s226 + $0x8] sm:$0xff]
        %v1706 = vld [vmem:[%s226 + $0x10] sm:$0xff]
        %vm1707 = vcmask 64512
        %v1709 = vsel %vm1707, %v1704, 0
        %v1712 = vsel %vm1707, %v1705, 0
        %v1715 = vsel %vm1707, %v1706, 0
        %1717 = vmatprep.subr.mxu0 0.0
        %1718 = vmatpush1.msra.mxu0 %v1703
        %1719 = vmatprep.subr.mxu0 0.0
        %1720 = vmatpush1.msra.mxu0 0.0
        %1721 = vmatprep.subr.mxu0 0.0
        %1722 = vmatpush1.msra.mxu0 0.0
        %1723 = vmatprep.subr.mxu0 0.0
        %1724 = vmatpush1.msra.mxu0 0.0
        %1725 = vmatprep.subr.mxu0 0.0
        %1726 = vmatpush1.msra.mxu0 0.0
        %1727 = vmatprep.subr.mxu0 0.0
        %1728 = vmatpush1.msra.mxu0 0.0
        %1729 = vmatprep.subr.mxu0 0.0
        %1730 = vmatpush1.msra.mxu0 0.0
        %1731 = vmatprep.subr.mxu0 0.0
        %1732 = vmatpush1.msra.mxu0 0.0
        %1733 = vmatprep.subr.mxu0 0.0
        %1734 = vmatpush1.msra.mxu0 0.0
        %1735 = vmatprep.subr.mxu0 0.0
        %1736 = vmatpush1.msra.mxu0 0.0
        %1737 = vmatprep.subr.mxu0 0.0
        %1738 = vmatpush1.msra.mxu0 0.0
        %1739 = vmatprep.subr.mxu0 0.0
        %1740 = vmatpush1.msra.mxu0 0.0
        %1741 = vmatprep.subr.mxu0 0.0
        %1742 = vmatpush1.msra.mxu0 0.0
        %1743 = vmatprep.subr.mxu0 0.0
        %1744 = vmatpush1.msra.mxu0 0.0
        %1745 = vmatprep.subr.mxu0 0.0
        %1746 = vmatpush1.msra.mxu0 0.0
        %1747 = vmatprep.subr.mxu0 0.0
        %1748 = vmatpush1.msra.mxu0 0.0
        %1749 = vmatprep.subr.mxu0 0.0
        %1750 = vmatpush1.msra.mxu0 0.0
        %1751 = vmatprep.subr.mxu0 0.0
        %1752 = vmatpush1.msra.mxu0 0.0
        %1753 = vmatprep.subr.mxu0 0.0
        %1754 = vmatpush1.msra.mxu0 0.0
        %1755 = vmatprep.subr.mxu0 0.0
        %1756 = vmatpush1.msra.mxu0 0.0
        %1757 = vmatprep.subr.mxu0 0.0
        %1758 = vmatpush1.msra.mxu0 0.0
        %1759 = vmatprep.subr.mxu0 0.0
        %1760 = vmatpush1.msra.mxu0 0.0
        %1761 = vmatprep.subr.mxu0 0.0
        %1762 = vmatpush1.msra.mxu0 0.0
        %1763 = vmatprep.subr.mxu0 0.0
        %1764 = vmatpush1.msra.mxu0 0.0
        %1765 = vmatprep.subr.mxu0 0.0
        %1766 = vmatpush1.msra.mxu0 0.0
        %1767 = vmatprep.subr.mxu0 0.0
        %1768 = vmatpush1.msra.mxu0 0.0
        %1769 = vmatprep.subr.mxu0 0.0
        %1770 = vmatpush1.msra.mxu0 0.0
        %1771 = vmatprep.subr.mxu0 0.0
        %1772 = vmatpush1.msra.mxu0 0.0
        %1773 = vmatprep.subr.mxu0 0.0
        %1774 = vmatpush1.msra.mxu0 0.0
        %1775 = vmatprep.subr.mxu0 0.0
        %1776 = vmatpush1.msra.mxu0 0.0
        %1777 = vmatprep.subr.mxu0 0.0
        %1778 = vmatpush1.msra.mxu0 0.0
        %1779 = vmatprep.subr.mxu0 0.0
        %1780 = vmatpush1.msra.mxu0 0.0
        %1781 = vmatprep.mubr.f32.mxu0 0.0
        %1782 = vmatmul.mubr.f32.gmra.mrb[0].mxu0 %v1709
        %v1783 = vpop.f32.mrb[0].mxu0
        %v1784 = vadd.f32 0.0, %v1783
        %v1785 = vpop.f32.mrb[0].mxu0
        %1786 = vmatprep.mubr.f32.mxu0 0.0
        %1787 = vmatmul.mubr.f32.gmra.mrb[0].mxu0 %v1712
        %v1788 = vpop.f32.mrb[0].mxu0
        %v1789 = vadd.f32 0.0, %v1788
        %v1790 = vpop.f32.mrb[0].mxu0
        %1791 = vmatprep.mubr.f32.mxu0 0.0
        %1792 = vmatmul.mubr.f32.gmra.mrb[0].mxu0 %v1715
        %v1793 = vpop.f32.mrb[0].mxu0
        %v1794 = vadd.f32 0.0, %v1793
        %v1795 = vpop.f32.mrb[0].mxu0
        %1796 = vdwg.mxu0
        %v1798 = vsel %vm1707, %v1701, 0
        %v1801 = vsel %vm1707, %v1702, 0
        %1803 = vmatprep.subr.mxu0 0.0
        %1804 = vmatpush1.msra.mxu0 %v1784
        %1805 = vmatprep.subr.mxu0 0.0
        %1806 = vmatpush1.msra.mxu0 0.0
        %1807 = vmatprep.subr.mxu0 0.0
        %1808 = vmatpush1.msra.mxu0 0.0
        %1809 = vmatprep.subr.mxu0 0.0
        %1810 = vmatpush1.msra.mxu0 0.0
        %1811 = vmatprep.subr.mxu0 0.0
        %1812 = vmatpush1.msra.mxu0 0.0
        %1813 = vmatprep.subr.mxu0 0.0
        %1814 = vmatpush1.msra.mxu0 0.0
        %1815 = vmatprep.subr.mxu0 0.0
        %1816 = vmatpush1.msra.mxu0 0.0
        %1817 = vmatprep.subr.mxu0 0.0
        %1818 = vmatpush1.msra.mxu0 0.0
        %1819 = vmatprep.subr.mxu0 0.0
        %1820 = vmatpush1.msra.mxu0 0.0
        %1821 = vmatprep.subr.mxu0 0.0
        %1822 = vmatpush1.msra.mxu0 0.0
        %1823 = vmatprep.subr.mxu0 0.0
        %1824 = vmatpush1.msra.mxu0 0.0
        %1825 = vmatprep.subr.mxu0 0.0
        %1826 = vmatpush1.msra.mxu0 0.0
        %1827 = vmatprep.subr.mxu0 0.0
        %1828 = vmatpush1.msra.mxu0 0.0
        %1829 = vmatprep.subr.mxu0 0.0
        %1830 = vmatpush1.msra.mxu0 0.0
        %1831 = vmatprep.subr.mxu0 0.0
        %1832 = vmatpush1.msra.mxu0 0.0
        %1833 = vmatprep.subr.mxu0 0.0
        %1834 = vmatpush1.msra.mxu0 0.0
        %1835 = vmatprep.subr.mxu0 0.0
        %1836 = vmatpush1.msra.mxu0 0.0
        %1837 = vmatprep.subr.mxu0 0.0
        %1838 = vmatpush1.msra.mxu0 0.0
        %1839 = vmatprep.subr.mxu0 0.0
        %1840 = vmatpush1.msra.mxu0 0.0
        %1841 = vmatprep.subr.mxu0 0.0
        %1842 = vmatpush1.msra.mxu0 0.0
        %1843 = vmatprep.subr.mxu0 0.0
        %1844 = vmatpush1.msra.mxu0 0.0
        %1845 = vmatprep.subr.mxu0 0.0
        %1846 = vmatpush1.msra.mxu0 0.0
        %1847 = vmatprep.subr.mxu0 0.0
        %1848 = vmatpush1.msra.mxu0 0.0
        %1849 = vmatprep.subr.mxu0 0.0
        %1850 = vmatpush1.msra.mxu0 0.0
        %1851 = vmatprep.subr.mxu0 0.0
        %1852 = vmatpush1.msra.mxu0 0.0
        %1853 = vmatprep.subr.mxu0 0.0
        %1854 = vmatpush1.msra.mxu0 0.0
        %1855 = vmatprep.subr.mxu0 0.0
        %1856 = vmatpush1.msra.mxu0 0.0
        %1857 = vmatprep.subr.mxu0 0.0
        %1858 = vmatpush1.msra.mxu0 0.0
        %1859 = vmatprep.subr.mxu0 0.0
        %1860 = vmatpush1.msra.mxu0 0.0
        %1861 = vmatprep.subr.mxu0 0.0
        %1862 = vmatpush1.msra.mxu0 0.0
        %1863 = vmatprep.subr.mxu0 0.0
        %1864 = vmatpush1.msra.mxu0 0.0
        %1865 = vmatprep.subr.mxu0 0.0
        %1866 = vmatpush1.msra.mxu0 0.0
        %1867 = vmatprep.mubr.f32.mxu0 0.0
        %1868 = vmatmul.mubr.f32.gmra.mrb[0].mxu0 %v1798
        %v1869 = vpop.f32.mrb[0].mxu0
        %v1870 = vadd.f32 0.0, %v1869
        %v1871 = vpop.f32.mrb[0].mxu0
        %1872 = vmatprep.mubr.f32.mxu0 0.0
        %1873 = vmatmul.mubr.f32.gmra.mrb[0].mxu0 %v1801
        %v1874 = vpop.f32.mrb[0].mxu0
        %v1875 = vadd.f32 0.0, %v1874
        %v1876 = vpop.f32.mrb[0].mxu0
        %1877 = vdwg.mxu0
        %1878 = vmatprep.subr.mxu0 0.0
        %1879 = vmatpush1.msra.mxu0 %v1789
        %1880 = vmatprep.subr.mxu0 0.0
        %1881 = vmatpush1.msra.mxu0 0.0
        %1882 = vmatprep.subr.mxu0 0.0
        %1883 = vmatpush1.msra.mxu0 0.0
        %1884 = vmatprep.subr.mxu0 0.0
        %1885 = vmatpush1.msra.mxu0 0.0
        %1886 = vmatprep.subr.mxu0 0.0
        %1887 = vmatpush1.msra.mxu0 0.0
        %1888 = vmatprep.subr.mxu0 0.0
        %1889 = vmatpush1.msra.mxu0 0.0
        %1890 = vmatprep.subr.mxu0 0.0
        %1891 = vmatpush1.msra.mxu0 0.0
        %1892 = vmatprep.subr.mxu0 0.0
        %1893 = vmatpush1.msra.mxu0 0.0
        %1894 = vmatprep.subr.mxu0 0.0
        %1895 = vmatpush1.msra.mxu0 0.0
        %1896 = vmatprep.subr.mxu0 0.0
        %1897 = vmatpush1.msra.mxu0 0.0
        %1898 = vmatprep.subr.mxu0 0.0
        %1899 = vmatpush1.msra.mxu0 0.0
        %1900 = vmatprep.subr.mxu0 0.0
        %1901 = vmatpush1.msra.mxu0 0.0
        %1902 = vmatprep.subr.mxu0 0.0
        %1903 = vmatpush1.msra.mxu0 0.0
        %1904 = vmatprep.subr.mxu0 0.0
        %1905 = vmatpush1.msra.mxu0 0.0
        %1906 = vmatprep.subr.mxu0 0.0
        %1907 = vmatpush1.msra.mxu0 0.0
        %1908 = vmatprep.subr.mxu0 0.0
        %1909 = vmatpush1.msra.mxu0 0.0
        %1910 = vmatprep.subr.mxu0 0.0
        %1911 = vmatpush1.msra.mxu0 0.0
        %1912 = vmatprep.subr.mxu0 0.0
        %1913 = vmatpush1.msra.mxu0 0.0
        %1914 = vmatprep.subr.mxu0 0.0
        %1915 = vmatpush1.msra.mxu0 0.0
        %1916 = vmatprep.subr.mxu0 0.0
        %1917 = vmatpush1.msra.mxu0 0.0
        %1918 = vmatprep.subr.mxu0 0.0
        %1919 = vmatpush1.msra.mxu0 0.0
        %1920 = vmatprep.subr.mxu0 0.0
        %1921 = vmatpush1.msra.mxu0 0.0
        %1922 = vmatprep.subr.mxu0 0.0
        %1923 = vmatpush1.msra.mxu0 0.0
        %1924 = vmatprep.subr.mxu0 0.0
        %1925 = vmatpush1.msra.mxu0 0.0
        %1926 = vmatprep.subr.mxu0 0.0
        %1927 = vmatpush1.msra.mxu0 0.0
        %1928 = vmatprep.subr.mxu0 0.0
        %1929 = vmatpush1.msra.mxu0 0.0
        %1930 = vmatprep.subr.mxu0 0.0
        %1931 = vmatpush1.msra.mxu0 0.0
        %1932 = vmatprep.subr.mxu0 0.0
        %1933 = vmatpush1.msra.mxu0 0.0
        %1934 = vmatprep.subr.mxu0 0.0
        %1935 = vmatpush1.msra.mxu0 0.0
        %1936 = vmatprep.subr.mxu0 0.0
        %1937 = vmatpush1.msra.mxu0 0.0
        %1938 = vmatprep.subr.mxu0 0.0
        %1939 = vmatpush1.msra.mxu0 0.0
        %1940 = vmatprep.subr.mxu0 0.0
        %1941 = vmatpush1.msra.mxu0 0.0
        %1942 = vmatprep.mubr.f32.mxu0 0.0
        %1943 = vmatmul.mubr.f32.gmra.mrb[0].mxu0 %v1798
        %v1944 = vpop.f32.mrb[0].mxu0
        %v1945 = vadd.f32 0.0, %v1944
        %v1946 = vpop.f32.mrb[0].mxu0
        %1947 = vmatprep.mubr.f32.mxu0 0.0
        %1948 = vmatmul.mubr.f32.gmra.mrb[0].mxu0 %v1801
        %v1949 = vpop.f32.mrb[0].mxu0
        %v1950 = vadd.f32 0.0, %v1949
        %v1951 = vpop.f32.mrb[0].mxu0
        %1952 = vdwg.mxu0
        %1953 = vmatprep.subr.mxu0 0.0
        %1954 = vmatpush1.msra.mxu0 %v1794
        %1955 = vmatprep.subr.mxu0 0.0
        %1956 = vmatpush1.msra.mxu0 0.0
        %1957 = vmatprep.subr.mxu0 0.0
        %1958 = vmatpush1.msra.mxu0 0.0
        %1959 = vmatprep.subr.mxu0 0.0
        %1960 = vmatpush1.msra.mxu0 0.0
        %1961 = vmatprep.subr.mxu0 0.0
        %1962 = vmatpush1.msra.mxu0 0.0
        %1963 = vmatprep.subr.mxu0 0.0
        %1964 = vmatpush1.msra.mxu0 0.0
        %1965 = vmatprep.subr.mxu0 0.0
        %1966 = vmatpush1.msra.mxu0 0.0
        %1967 = vmatprep.subr.mxu0 0.0
        %1968 = vmatpush1.msra.mxu0 0.0
        %1969 = vmatprep.subr.mxu0 0.0
        %1970 = vmatpush1.msra.mxu0 0.0
        %1971 = vmatprep.subr.mxu0 0.0
        %1972 = vmatpush1.msra.mxu0 0.0
        %1973 = vmatprep.subr.mxu0 0.0
        %1974 = vmatpush1.msra.mxu0 0.0
        %1975 = vmatprep.subr.mxu0 0.0
        %1976 = vmatpush1.msra.mxu0 0.0
        %1977 = vmatprep.subr.mxu0 0.0
        %1978 = vmatpush1.msra.mxu0 0.0
        %1979 = vmatprep.subr.mxu0 0.0
        %1980 = vmatpush1.msra.mxu0 0.0
        %1981 = vmatprep.subr.mxu0 0.0
        %1982 = vmatpush1.msra.mxu0 0.0
        %1983 = vmatprep.subr.mxu0 0.0
        %1984 = vmatpush1.msra.mxu0 0.0
        %1985 = vmatprep.subr.mxu0 0.0
        %1986 = vmatpush1.msra.mxu0 0.0
        %1987 = vmatprep.subr.mxu0 0.0
        %1988 = vmatpush1.msra.mxu0 0.0
        %1989 = vmatprep.subr.mxu0 0.0
        %1990 = vmatpush1.msra.mxu0 0.0
        %1991 = vmatprep.subr.mxu0 0.0
        %1992 = vmatpush1.msra.mxu0 0.0
        %1993 = vmatprep.subr.mxu0 0.0
        %1994 = vmatpush1.msra.mxu0 0.0
        %1995 = vmatprep.subr.mxu0 0.0
        %1996 = vmatpush1.msra.mxu0 0.0
        %1997 = vmatprep.subr.mxu0 0.0
        %1998 = vmatpush1.msra.mxu0 0.0
        %1999 = vmatprep.subr.mxu0 0.0
        %2000 = vmatpush1.msra.mxu0 0.0
        %2001 = vmatprep.subr.mxu0 0.0
        %2002 = vmatpush1.msra.mxu0 0.0
        %2003 = vmatprep.subr.mxu0 0.0
        %2004 = vmatpush1.msra.mxu0 0.0
        %2005 = vmatprep.subr.mxu0 0.0
        %2006 = vmatpush1.msra.mxu0 0.0
        %2007 = vmatprep.subr.mxu0 0.0
        %2008 = vmatpush1.msra.mxu0 0.0
        %2009 = vmatprep.subr.mxu0 0.0
        %2010 = vmatpush1.msra.mxu0 0.0
        %2011 = vmatprep.subr.mxu0 0.0
        %2012 = vmatpush1.msra.mxu0 0.0
        %2013 = vmatprep.subr.mxu0 0.0
        %2014 = vmatpush1.msra.mxu0 0.0
        %2015 = vmatprep.subr.mxu0 0.0
        %2016 = vmatpush1.msra.mxu0 0.0
        %2017 = vmatprep.mubr.f32.mxu0 0.0
        %2018 = vmatmul.mubr.f32.gmra.mrb[0].mxu0 %v1798
        %v2019 = vpop.f32.mrb[0].mxu0
        %v2020 = vadd.f32 0.0, %v2019
        %v2021 = vpop.f32.mrb[0].mxu0
        %2022 = vmatprep.mubr.f32.mxu0 0.0
        %2023 = vmatmul.mubr.f32.gmra.mrb[0].mxu0 %v1801
        %v2024 = vpop.f32.mrb[0].mxu0
        %v2025 = vadd.f32 0.0, %v2024
        %v2026 = vpop.f32.mrb[0].mxu0
        %2027 = vdwg.mxu0
        %v2028 = vrot.slane %v1870, 7
        %v2029 = vrot.slane %v1875, 7
        %v2030 = vsel %vm263, %v2028, %v2029
        %v2031 = vsel %vm263, %v2029, %v2028
        %v2032 = vlaneseq
        %v2033 = vshrl.u32 %v2032, 7
        %v2034 = vsub.s32 0, %v2033
        %v2035 = vrot.slane %v1870, %v2034
        %v2036 = vsel %vm281, %v2035, %v2031
        %v2037 = vsel %vm282, %v2035, %v2030
        %v2038 = vrot.slane %v1870, 1
        %v2039 = vrot.slane %v1875, 1
        %v2040 = vsel %vm291, %v2038, %v2039
        %v2041 = vsel %vm291, %v2039, %v2038
        %v2042 = vlaneseq
        %v2043 = vshrl.u32 %v2042, 7
        %v2044 = vsub.s32 7, %v2043
        %v2045 = vrot.slane %v1875, %v2044
        %v2046 = vsel %vm296, %v2045, %v2040
        %v2047 = vsel %vm297, %v2045, %v2041
        %2048 = vrot.lane.b32.xlu0 %v2036, 16
        %v2049 = vpop.permute.xlu0 %2048
        %v2050 = vsel %vm304, %v2049, %v2036
        %2051 = vrot.lane.b32.xlu0 %v2037, 16
        %v2052 = vpop.permute.xlu0 %2051
        %v2053 = vsel %vm304, %v2052, %v2037
        %2054 = vrot.lane.b32.xlu0 %v2050, 16
        %v2055 = vpop.permute.xlu0 %2054
        %2056 = vrot.lane.b32.xlu0 %v2053, 16
        %v2057 = vpop.permute.xlu0 %2056
        %v2058 = vsel %vm304, %v2055, %v2036
        %v2059 = vsel %vm304, %v2057, %v2037
        %2061 = vset.pattern.permute.xlu0 0
        %2062 = vperm.xlu0 %2061, %v2036
        %v2063 = vpop.permute.xlu0 %2062
        %2066 = vset.pattern.permute.xlu0 0
        %2067 = vperm.xlu0 %2066, %v2037
        %v2068 = vpop.permute.xlu0 %2067
        %2072 = vrot.lane.b32.xlu0 %v2058, 113
        %v2073 = vpop.permute.xlu0 %2072
        %2074 = vrot.lane.b32.xlu0 %v2059, 113
        %v2075 = vpop.permute.xlu0 %2074
        %v2078 = vsel %vm318, %v2063, %v2073
        %v2079 = vsel %vm318, %v2068, %v2075
        %2080 = vset.pattern.permute.xlu0 15
        %2081 = vperm.xlu0 %2080, %v2036
        %v2082 = vpop.permute.xlu0 %2081
        %2084 = vset.pattern.permute.xlu0 15
        %2085 = vperm.xlu0 %2084, %v2037
        %v2086 = vpop.permute.xlu0 %2085
        %2088 = vrot.lane.b32.xlu0 %v2058, 127
        %v2089 = vpop.permute.xlu0 %2088
        %2090 = vrot.lane.b32.xlu0 %v2059, 127
        %v2091 = vpop.permute.xlu0 %2090
        %v2094 = vsel %vm340, %v2082, %v2089
        %v2095 = vsel %vm340, %v2086, %v2091
        %2096 = vrot.lane.b32.xlu0 %v1870, 16
        %v2097 = vpop.permute.xlu0 %2096
        %v2098 = vsel %vm304, %v2097, %v1870
        %2099 = vrot.lane.b32.xlu0 %v1875, 16
        %v2100 = vpop.permute.xlu0 %2099
        %v2101 = vsel %vm304, %v2100, %v1875
        %2102 = vrot.lane.b32.xlu0 %v2098, 16
        %v2103 = vpop.permute.xlu0 %2102
        %2104 = vrot.lane.b32.xlu0 %v2101, 16
        %v2105 = vpop.permute.xlu0 %2104
        %v2106 = vsel %vm304, %v2103, %v1870
        %v2107 = vsel %vm304, %v2105, %v1875
        %2109 = vset.pattern.permute.xlu0 0
        %2110 = vperm.xlu0 %2109, %v1870
        %v2111 = vpop.permute.xlu0 %2110
        %2114 = vset.pattern.permute.xlu0 0
        %2115 = vperm.xlu0 %2114, %v1875
        %v2116 = vpop.permute.xlu0 %2115
        %2120 = vrot.lane.b32.xlu0 %v2106, 113
        %v2121 = vpop.permute.xlu0 %2120
        %2122 = vrot.lane.b32.xlu0 %v2107, 113
        %v2123 = vpop.permute.xlu0 %2122
        %v2126 = vsel %vm318, %v2111, %v2121
        %v2127 = vsel %vm318, %v2116, %v2123
        %2128 = vset.pattern.permute.xlu0 15
        %2129 = vperm.xlu0 %2128, %v1870
        %v2130 = vpop.permute.xlu0 %2129
        %2132 = vset.pattern.permute.xlu0 15
        %2133 = vperm.xlu0 %2132, %v1875
        %v2134 = vpop.permute.xlu0 %2133
        %2136 = vrot.lane.b32.xlu0 %v2106, 127
        %v2137 = vpop.permute.xlu0 %2136
        %2138 = vrot.lane.b32.xlu0 %v2107, 127
        %v2139 = vpop.permute.xlu0 %2138
        %v2142 = vsel %vm340, %v2130, %v2137
        %v2143 = vsel %vm340, %v2134, %v2139
        %2144 = vrot.lane.b32.xlu0 %v2046, 16
        %v2145 = vpop.permute.xlu0 %2144
        %v2146 = vsel %vm304, %v2145, %v2046
        %2147 = vrot.lane.b32.xlu0 %v2047, 16
        %v2148 = vpop.permute.xlu0 %2147
        %v2149 = vsel %vm304, %v2148, %v2047
        %2150 = vrot.lane.b32.xlu0 %v2146, 16
        %v2151 = vpop.permute.xlu0 %2150
        %2152 = vrot.lane.b32.xlu0 %v2149, 16
        %v2153 = vpop.permute.xlu0 %2152
        %v2154 = vsel %vm304, %v2151, %v2046
        %v2155 = vsel %vm304, %v2153, %v2047
        %2157 = vset.pattern.permute.xlu0 0
        %2158 = vperm.xlu0 %2157, %v2046
        %v2159 = vpop.permute.xlu0 %2158
        %2162 = vset.pattern.permute.xlu0 0
        %2163 = vperm.xlu0 %2162, %v2047
        %v2164 = vpop.permute.xlu0 %2163
        %2168 = vrot.lane.b32.xlu0 %v2154, 113
        %v2169 = vpop.permute.xlu0 %2168
        %2170 = vrot.lane.b32.xlu0 %v2155, 113
        %v2171 = vpop.permute.xlu0 %2170
        %v2174 = vsel %vm318, %v2159, %v2169
        %v2175 = vsel %vm318, %v2164, %v2171
        %2176 = vset.pattern.permute.xlu0 15
        %2177 = vperm.xlu0 %2176, %v2046
        %v2178 = vpop.permute.xlu0 %2177
        %2180 = vset.pattern.permute.xlu0 15
        %2181 = vperm.xlu0 %2180, %v2047
        %v2182 = vpop.permute.xlu0 %2181
        %2184 = vrot.lane.b32.xlu0 %v2154, 127
        %v2185 = vpop.permute.xlu0 %2184
        %2186 = vrot.lane.b32.xlu0 %v2155, 127
        %v2187 = vpop.permute.xlu0 %2186
        %v2190 = vsel %vm340, %v2178, %v2185
        %v2191 = vsel %vm340, %v2182, %v2187
        %v2192 = vmul.f32 %v2078, %v1685
        %v2193 = vmul.f32 %v2079, %v1686
        %v2194 = vmul.f32 %v2036, %v1687
        %v2195 = vmul.f32 %v2037, %v1688
        %v2196 = vadd.f32 %v2192, %v2194
        %v2197 = vadd.f32 %v2193, %v2195
        %v2198 = vmul.f32 %v2094, %v1689
        %v2199 = vmul.f32 %v2095, %v1690
        %v2200 = vadd.f32 %v2196, %v2198
        %v2201 = vadd.f32 %v2197, %v2199
        %v2202 = vmul.f32 %v2126, %v1691
        %v2203 = vmul.f32 %v2127, %v1692
        %v2204 = vadd.f32 %v2200, %v2202
        %v2205 = vadd.f32 %v2201, %v2203
        %v2206 = vmul.f32 %v2142, %v1693
        %v2207 = vmul.f32 %v2143, %v1694
        %v2208 = vadd.f32 %v2204, %v2206
        %v2209 = vadd.f32 %v2205, %v2207
        %v2210 = vmul.f32 %v2174, %v1695
        %v2211 = vmul.f32 %v2175, %v1696
        %v2212 = vadd.f32 %v2208, %v2210
        %v2213 = vadd.f32 %v2209, %v2211
        %v2214 = vmul.f32 %v2046, %v1697
        %v2215 = vmul.f32 %v2047, %v1698
        %v2216 = vadd.f32 %v2212, %v2214
        %v2217 = vadd.f32 %v2213, %v2215
        %v2218 = vmul.f32 %v2190, %v1699
        %v2219 = vmul.f32 %v2191, %v1700
        %v2220 = vadd.f32 %v2216, %v2218
        %v2221 = vadd.f32 %v2217, %v2219
        %v2222 = vrot.slane %v1945, 7
        %v2223 = vrot.slane %v1950, 7
        %v2224 = vsel %vm263, %v2222, %v2223
        %v2225 = vsel %vm263, %v2223, %v2222
        %v2226 = vlaneseq
        %v2227 = vshrl.u32 %v2226, 7
        %v2228 = vsub.s32 0, %v2227
        %v2229 = vrot.slane %v1945, %v2228
        %v2230 = vsel %vm281, %v2229, %v2225
        %v2231 = vsel %vm282, %v2229, %v2224
        %v2232 = vrot.slane %v1945, 1
        %v2233 = vrot.slane %v1950, 1
        %v2234 = vsel %vm291, %v2232, %v2233
        %v2235 = vsel %vm291, %v2233, %v2232
        %v2236 = vlaneseq
        %v2237 = vshrl.u32 %v2236, 7
        %v2238 = vsub.s32 7, %v2237
        %v2239 = vrot.slane %v1950, %v2238
        %v2240 = vsel %vm296, %v2239, %v2234
        %v2241 = vsel %vm297, %v2239, %v2235
        %2242 = vrot.lane.b32.xlu0 %v2230, 16
        %v2243 = vpop.permute.xlu0 %2242
        %v2244 = vsel %vm304, %v2243, %v2230
        %2245 = vrot.lane.b32.xlu0 %v2231, 16
        %v2246 = vpop.permute.xlu0 %2245
        %v2247 = vsel %vm304, %v2246, %v2231
        %2248 = vrot.lane.b32.xlu0 %v2244, 16
        %v2249 = vpop.permute.xlu0 %2248
        %2250 = vrot.lane.b32.xlu0 %v2247, 16
        %v2251 = vpop.permute.xlu0 %2250
        %v2252 = vsel %vm304, %v2249, %v2230
        %v2253 = vsel %vm304, %v2251, %v2231
        %2255 = vset.pattern.permute.xlu0 0
        %2256 = vperm.xlu0 %2255, %v2230
        %v2257 = vpop.permute.xlu0 %2256
        %2260 = vset.pattern.permute.xlu0 0
        %2261 = vperm.xlu0 %2260, %v2231
        %v2262 = vpop.permute.xlu0 %2261
        %2266 = vrot.lane.b32.xlu0 %v2252, 113
        %v2267 = vpop.permute.xlu0 %2266
        %2268 = vrot.lane.b32.xlu0 %v2253, 113
        %v2269 = vpop.permute.xlu0 %2268
        %v2272 = vsel %vm318, %v2257, %v2267
        %v2273 = vsel %vm318, %v2262, %v2269
        %2274 = vset.pattern.permute.xlu0 15
        %2275 = vperm.xlu0 %2274, %v2230
        %v2276 = vpop.permute.xlu0 %2275
        %2278 = vset.pattern.permute.xlu0 15
        %2279 = vperm.xlu0 %2278, %v2231
        %v2280 = vpop.permute.xlu0 %2279
        %2282 = vrot.lane.b32.xlu0 %v2252, 127
        %v2283 = vpop.permute.xlu0 %2282
        %2284 = vrot.lane.b32.xlu0 %v2253, 127
        %v2285 = vpop.permute.xlu0 %2284
        %v2288 = vsel %vm340, %v2276, %v2283
        %v2289 = vsel %vm340, %v2280, %v2285
        %2290 = vrot.lane.b32.xlu0 %v1945, 16
        %v2291 = vpop.permute.xlu0 %2290
        %v2292 = vsel %vm304, %v2291, %v1945
        %2293 = vrot.lane.b32.xlu0 %v1950, 16
        %v2294 = vpop.permute.xlu0 %2293
        %v2295 = vsel %vm304, %v2294, %v1950
        %2296 = vrot.lane.b32.xlu0 %v2292, 16
        %v2297 = vpop.permute.xlu0 %2296
        %2298 = vrot.lane.b32.xlu0 %v2295, 16
        %v2299 = vpop.permute.xlu0 %2298
        %v2300 = vsel %vm304, %v2297, %v1945
        %v2301 = vsel %vm304, %v2299, %v1950
        %2303 = vset.pattern.permute.xlu0 0
        %2304 = vperm.xlu0 %2303, %v1945
        %v2305 = vpop.permute.xlu0 %2304
        %2308 = vset.pattern.permute.xlu0 0
        %2309 = vperm.xlu0 %2308, %v1950
        %v2310 = vpop.permute.xlu0 %2309
        %2314 = vrot.lane.b32.xlu0 %v2300, 113
        %v2315 = vpop.permute.xlu0 %2314
        %2316 = vrot.lane.b32.xlu0 %v2301, 113
        %v2317 = vpop.permute.xlu0 %2316
        %v2320 = vsel %vm318, %v2305, %v2315
        %v2321 = vsel %vm318, %v2310, %v2317
        %2322 = vset.pattern.permute.xlu0 15
        %2323 = vperm.xlu0 %2322, %v1945
        %v2324 = vpop.permute.xlu0 %2323
        %2326 = vset.pattern.permute.xlu0 15
        %2327 = vperm.xlu0 %2326, %v1950
        %v2328 = vpop.permute.xlu0 %2327
        %2330 = vrot.lane.b32.xlu0 %v2300, 127
        %v2331 = vpop.permute.xlu0 %2330
        %2332 = vrot.lane.b32.xlu0 %v2301, 127
        %v2333 = vpop.permute.xlu0 %2332
        %v2336 = vsel %vm340, %v2324, %v2331
        %v2337 = vsel %vm340, %v2328, %v2333
        %2338 = vrot.lane.b32.xlu0 %v2240, 16
        %v2339 = vpop.permute.xlu0 %2338
        %v2340 = vsel %vm304, %v2339, %v2240
        %2341 = vrot.lane.b32.xlu0 %v2241, 16
        %v2342 = vpop.permute.xlu0 %2341
        %v2343 = vsel %vm304, %v2342, %v2241
        %2344 = vrot.lane.b32.xlu0 %v2340, 16
        %v2345 = vpop.permute.xlu0 %2344
        %2346 = vrot.lane.b32.xlu0 %v2343, 16
        %v2347 = vpop.permute.xlu0 %2346
        %v2348 = vsel %vm304, %v2345, %v2240
        %v2349 = vsel %vm304, %v2347, %v2241
        %2351 = vset.pattern.permute.xlu0 0
        %2352 = vperm.xlu0 %2351, %v2240
        %v2353 = vpop.permute.xlu0 %2352
        %2356 = vset.pattern.permute.xlu0 0
        %2357 = vperm.xlu0 %2356, %v2241
        %v2358 = vpop.permute.xlu0 %2357
        %2362 = vrot.lane.b32.xlu0 %v2348, 113
        %v2363 = vpop.permute.xlu0 %2362
        %2364 = vrot.lane.b32.xlu0 %v2349, 113
        %v2365 = vpop.permute.xlu0 %2364
        %v2368 = vsel %vm318, %v2353, %v2363
        %v2369 = vsel %vm318, %v2358, %v2365
        %2370 = vset.pattern.permute.xlu0 15
        %2371 = vperm.xlu0 %2370, %v2240
        %v2372 = vpop.permute.xlu0 %2371
        %2374 = vset.pattern.permute.xlu0 15
        %2375 = vperm.xlu0 %2374, %v2241
        %v2376 = vpop.permute.xlu0 %2375
        %2378 = vrot.lane.b32.xlu0 %v2348, 127
        %v2379 = vpop.permute.xlu0 %2378
        %2380 = vrot.lane.b32.xlu0 %v2349, 127
        %v2381 = vpop.permute.xlu0 %2380
        %v2384 = vsel %vm340, %v2372, %v2379
        %v2385 = vsel %vm340, %v2376, %v2381
        %v2386 = vmul.f32 %v2272, %v1685
        %v2387 = vmul.f32 %v2273, %v1686
        %v2388 = vmul.f32 %v2230, %v1687
        %v2389 = vmul.f32 %v2231, %v1688
        %v2390 = vadd.f32 %v2386, %v2388
        %v2391 = vadd.f32 %v2387, %v2389
        %v2392 = vmul.f32 %v2288, %v1689
        %v2393 = vmul.f32 %v2289, %v1690
        %v2394 = vadd.f32 %v2390, %v2392
        %v2395 = vadd.f32 %v2391, %v2393
        %v2396 = vmul.f32 %v2320, %v1691
        %v2397 = vmul.f32 %v2321, %v1692
        %v2398 = vadd.f32 %v2394, %v2396
        %v2399 = vadd.f32 %v2395, %v2397
        %v2400 = vmul.f32 %v2336, %v1693
        %v2401 = vmul.f32 %v2337, %v1694
        %v2402 = vadd.f32 %v2398, %v2400
        %v2403 = vadd.f32 %v2399, %v2401
        %v2404 = vmul.f32 %v2368, %v1695
        %v2405 = vmul.f32 %v2369, %v1696
        %v2406 = vadd.f32 %v2402, %v2404
        %v2407 = vadd.f32 %v2403, %v2405
        %v2408 = vmul.f32 %v2240, %v1697
        %v2409 = vmul.f32 %v2241, %v1698
        %v2410 = vadd.f32 %v2406, %v2408
        %v2411 = vadd.f32 %v2407, %v2409
        %v2412 = vmul.f32 %v2384, %v1699
        %v2413 = vmul.f32 %v2385, %v1700
        %v2414 = vadd.f32 %v2410, %v2412
        %v2415 = vadd.f32 %v2411, %v2413
        %v2416 = vrot.slane %v2020, 7
        %v2417 = vrot.slane %v2025, 7
        %v2418 = vsel %vm263, %v2416, %v2417
        %v2419 = vsel %vm263, %v2417, %v2416
        %v2420 = vlaneseq
        %v2421 = vshrl.u32 %v2420, 7
        %v2422 = vsub.s32 0, %v2421
        %v2423 = vrot.slane %v2020, %v2422
        %v2424 = vsel %vm281, %v2423, %v2419
        %v2425 = vsel %vm282, %v2423, %v2418
        %v2426 = vrot.slane %v2020, 1
        %v2427 = vrot.slane %v2025, 1
        %v2428 = vsel %vm291, %v2426, %v2427
        %v2429 = vsel %vm291, %v2427, %v2426
        %v2430 = vlaneseq
        %v2431 = vshrl.u32 %v2430, 7
        %v2432 = vsub.s32 7, %v2431
        %v2433 = vrot.slane %v2025, %v2432
        %v2434 = vsel %vm296, %v2433, %v2428
        %v2435 = vsel %vm297, %v2433, %v2429
        %2436 = vrot.lane.b32.xlu0 %v2424, 16
        %v2437 = vpop.permute.xlu0 %2436
        %v2438 = vsel %vm304, %v2437, %v2424
        %2439 = vrot.lane.b32.xlu0 %v2425, 16
        %v2440 = vpop.permute.xlu0 %2439
        %v2441 = vsel %vm304, %v2440, %v2425
        %2442 = vrot.lane.b32.xlu0 %v2438, 16
        %v2443 = vpop.permute.xlu0 %2442
        %2444 = vrot.lane.b32.xlu0 %v2441, 16
        %v2445 = vpop.permute.xlu0 %2444
        %v2446 = vsel %vm304, %v2443, %v2424
        %v2447 = vsel %vm304, %v2445, %v2425
        %2449 = vset.pattern.permute.xlu0 0
        %2450 = vperm.xlu0 %2449, %v2424
        %v2451 = vpop.permute.xlu0 %2450
        %2454 = vset.pattern.permute.xlu0 0
        %2455 = vperm.xlu0 %2454, %v2425
        %v2456 = vpop.permute.xlu0 %2455
        %2460 = vrot.lane.b32.xlu0 %v2446, 113
        %v2461 = vpop.permute.xlu0 %2460
        %2462 = vrot.lane.b32.xlu0 %v2447, 113
        %v2463 = vpop.permute.xlu0 %2462
        %v2466 = vsel %vm318, %v2451, %v2461
        %v2467 = vsel %vm318, %v2456, %v2463
        %2468 = vset.pattern.permute.xlu0 15
        %2469 = vperm.xlu0 %2468, %v2424
        %v2470 = vpop.permute.xlu0 %2469
        %2472 = vset.pattern.permute.xlu0 15
        %2473 = vperm.xlu0 %2472, %v2425
        %v2474 = vpop.permute.xlu0 %2473
        %2476 = vrot.lane.b32.xlu0 %v2446, 127
        %v2477 = vpop.permute.xlu0 %2476
        %2478 = vrot.lane.b32.xlu0 %v2447, 127
        %v2479 = vpop.permute.xlu0 %2478
        %v2482 = vsel %vm340, %v2470, %v2477
        %v2483 = vsel %vm340, %v2474, %v2479
        %2484 = vrot.lane.b32.xlu0 %v2020, 16
        %v2485 = vpop.permute.xlu0 %2484
        %v2486 = vsel %vm304, %v2485, %v2020
        %2487 = vrot.lane.b32.xlu0 %v2025, 16
        %v2488 = vpop.permute.xlu0 %2487
        %v2489 = vsel %vm304, %v2488, %v2025
        %2490 = vrot.lane.b32.xlu0 %v2486, 16
        %v2491 = vpop.permute.xlu0 %2490
        %2492 = vrot.lane.b32.xlu0 %v2489, 16
        %v2493 = vpop.permute.xlu0 %2492
        %v2494 = vsel %vm304, %v2491, %v2020
        %v2495 = vsel %vm304, %v2493, %v2025
        %2497 = vset.pattern.permute.xlu0 0
        %2498 = vperm.xlu0 %2497, %v2020
        %v2499 = vpop.permute.xlu0 %2498
        %2502 = vset.pattern.permute.xlu0 0
        %2503 = vperm.xlu0 %2502, %v2025
        %v2504 = vpop.permute.xlu0 %2503
        %2508 = vrot.lane.b32.xlu0 %v2494, 113
        %v2509 = vpop.permute.xlu0 %2508
        %2510 = vrot.lane.b32.xlu0 %v2495, 113
        %v2511 = vpop.permute.xlu0 %2510
        %v2514 = vsel %vm318, %v2499, %v2509
        %v2515 = vsel %vm318, %v2504, %v2511
        %2516 = vset.pattern.permute.xlu0 15
        %2517 = vperm.xlu0 %2516, %v2020
        %v2518 = vpop.permute.xlu0 %2517
        %2520 = vset.pattern.permute.xlu0 15
        %2521 = vperm.xlu0 %2520, %v2025
        %v2522 = vpop.permute.xlu0 %2521
        %2524 = vrot.lane.b32.xlu0 %v2494, 127
        %v2525 = vpop.permute.xlu0 %2524
        %2526 = vrot.lane.b32.xlu0 %v2495, 127
        %v2527 = vpop.permute.xlu0 %2526
        %v2530 = vsel %vm340, %v2518, %v2525
        %v2531 = vsel %vm340, %v2522, %v2527
        %2532 = vrot.lane.b32.xlu0 %v2434, 16
        %v2533 = vpop.permute.xlu0 %2532
        %v2534 = vsel %vm304, %v2533, %v2434
        %2535 = vrot.lane.b32.xlu0 %v2435, 16
        %v2536 = vpop.permute.xlu0 %2535
        %v2537 = vsel %vm304, %v2536, %v2435
        %2538 = vrot.lane.b32.xlu0 %v2534, 16
        %v2539 = vpop.permute.xlu0 %2538
        %2540 = vrot.lane.b32.xlu0 %v2537, 16
        %v2541 = vpop.permute.xlu0 %2540
        %v2542 = vsel %vm304, %v2539, %v2434
        %v2543 = vsel %vm304, %v2541, %v2435
        %2545 = vset.pattern.permute.xlu0 0
        %2546 = vperm.xlu0 %2545, %v2434
        %v2547 = vpop.permute.xlu0 %2546
        %2550 = vset.pattern.permute.xlu0 0
        %2551 = vperm.xlu0 %2550, %v2435
        %v2552 = vpop.permute.xlu0 %2551
        %2556 = vrot.lane.b32.xlu0 %v2542, 113
        %v2557 = vpop.permute.xlu0 %2556
        %2558 = vrot.lane.b32.xlu0 %v2543, 113
        %v2559 = vpop.permute.xlu0 %2558
        %v2562 = vsel %vm318, %v2547, %v2557
        %v2563 = vsel %vm318, %v2552, %v2559
        %2564 = vset.pattern.permute.xlu0 15
        %2565 = vperm.xlu0 %2564, %v2434
        %v2566 = vpop.permute.xlu0 %2565
        %2568 = vset.pattern.permute.xlu0 15
        %2569 = vperm.xlu0 %2568, %v2435
        %v2570 = vpop.permute.xlu0 %2569
        %2572 = vrot.lane.b32.xlu0 %v2542, 127
        %v2573 = vpop.permute.xlu0 %2572
        %2574 = vrot.lane.b32.xlu0 %v2543, 127
        %v2575 = vpop.permute.xlu0 %2574
        %v2578 = vsel %vm340, %v2566, %v2573
        %v2579 = vsel %vm340, %v2570, %v2575
        %v2580 = vmul.f32 %v2466, %v1685
        %v2581 = vmul.f32 %v2467, %v1686
        %v2582 = vmul.f32 %v2424, %v1687
        %v2583 = vmul.f32 %v2425, %v1688
        %v2584 = vadd.f32 %v2580, %v2582
        %v2585 = vadd.f32 %v2581, %v2583
        %v2586 = vmul.f32 %v2482, %v1689
        %v2587 = vmul.f32 %v2483, %v1690
        %v2588 = vadd.f32 %v2584, %v2586
        %v2589 = vadd.f32 %v2585, %v2587
        %v2590 = vmul.f32 %v2514, %v1691
        %v2591 = vmul.f32 %v2515, %v1692
        %v2592 = vadd.f32 %v2588, %v2590
        %v2593 = vadd.f32 %v2589, %v2591
        %v2594 = vmul.f32 %v2530, %v1693
        %v2595 = vmul.f32 %v2531, %v1694
        %v2596 = vadd.f32 %v2592, %v2594
        %v2597 = vadd.f32 %v2593, %v2595
        %v2598 = vmul.f32 %v2562, %v1695
        %v2599 = vmul.f32 %v2563, %v1696
        %v2600 = vadd.f32 %v2596, %v2598
        %v2601 = vadd.f32 %v2597, %v2599
        %v2602 = vmul.f32 %v2434, %v1697
        %v2603 = vmul.f32 %v2435, %v1698
        %v2604 = vadd.f32 %v2600, %v2602
        %v2605 = vadd.f32 %v2601, %v2603
        %v2606 = vmul.f32 %v2578, %v1699
        %v2607 = vmul.f32 %v2579, %v1700
        %v2608 = vadd.f32 %v2604, %v2606
        %v2609 = vadd.f32 %v2605, %v2607
        %vm2610 = vcmask 130048
        %2611 = vst.msk [vmem:[%s255] sm:$0xff] %vm2610, %v2220
        %2612 = vst.msk [vmem:[%s255 + $0x8] sm:$0xff] %vm2610, %v2221
        %s2613 = scalar_lea.vmem %s255, 16 [#allocation7]
        %2614 = vst.msk [vmem:[%s2613] sm:$0xff] %vm2610, %v2414
        %2615 = vst.msk [vmem:[%s2613 + $0x8] sm:$0xff] %vm2610, %v2415
        %s2616 = scalar_lea.vmem %s255, 32 [#allocation7]
        %2617 = vst.msk [vmem:[%s2616] sm:$0xff] %vm2610, %v2608
        %2618 = vst.msk [vmem:[%s2616 + $0x8] sm:$0xff] %vm2610, %v2609
        %s2619 = sand.u32 %s126, 1
        %s2620 = scalar_lea.sflag [#allocation4], %s2619
        %s2621 = sand.u32 %s126, 1
        %s2622 = smul.addr %s2621, 48
        %s2623 = scalar_lea.vmem [#allocation7], %s2622
        // Predicated region
        $region45: #{tpu_custom_call.1} parent=35 // pred_check
          %p2624 = pneg %p136
        $region46: #{tpu_custom_call.1} parent=35 // pred_check_branch
          %2626 = sbr.rel (%p2624) target = $region48
        $region47: #{tpu_custom_call.1} parent=35 // pred_region
          %s2628 = ssub.s32 768, 768
          %2629 = vsyncadd %s2620, %s2628
          %s2630 = smul.addr %s24, 6
          %s2631 = smul.addr %s2630, 128
          %s2632 = scalar_lea.hbm %s4, %s2631
          %s2633 = sshll.u32 %s2623, 4
          %s2634 = int_to_ptr.vmem [resolvable:$true] %s2633
          %2639 = dma.vmem_to_hbm [thread:$0]  %s2634, 768, %s2632, %s2620, 128, 128, 8
        $region48: #{tpu_custom_call.1} parent=35 // pred_fallthru
          _
      $region36: #{tpu_custom_call.1} parent=5 // pred_fallthru
        _
      %p2640 = scmp.le.s32.totalorder 2, %s19
      // Predicated region
      $region49: #{tpu_custom_call.1} parent=5 // pred_check
        %p2641 = pneg %p2640
      $region50: #{tpu_custom_call.1} parent=5 // pred_check_branch
        %2643 = sbr.rel (%p2641) target = $region52
      $region51: #{tpu_custom_call.1} parent=5 // pred_region
        %s2644 = ssub.s32 %s19, 2
        // Predicated region
        $region53: #{tpu_custom_call.1} parent=51 // pred_check
          %p2645 = pneg %p142
        $region54: #{tpu_custom_call.1} parent=51 // pred_check_branch
          %2647 = sbr.rel (%p2645) target = $region56
        $region55: #{tpu_custom_call.1} parent=51 // pred_region
          %s2648 = sand.u32 %s127, 1
          %s2649 = scalar_lea.sflag [#allocation4], %s2648
          %s2650 = sand.u32 %s127, 1
          %s2651 = smul.addr %s2650, 48
          %s2652 = scalar_lea.vmem [#allocation7], %s2651
          %2653 = dma.done %s2649, 768
        $region56: #{tpu_custom_call.1} parent=51 // pred_fallthru
          _
      $region52: #{tpu_custom_call.1} parent=5 // pred_fallthru
        _
    $region6: #{tpu_custom_call.1} parent=1 // loop_footer
      %s23 = sadd.s32 1, %s19
    $region7: #{tpu_custom_call.1} parent=1 // loop_footer_branch
      %18 = sbr.rel target = $region3
    $region8: #{tpu_custom_call.1} parent=1 // loop_exit
      _
    %2654 = vsyncpa [#allocation3], 1
    %s2655 = scalar_lea.sflag [#allocation3], 1
    %2656 = vsyncpa %s2655, 1
    %2657 = vsyncpa [#allocation6], 1
    %s2658 = scalar_lea.sflag [#allocation6], 1
    %2659 = vsyncpa %s2658, 1
    %2660 = vsyncpa [#allocation4], 1
    %s2661 = scalar_lea.sflag [#allocation4], 1
    %2662 = vsyncpa %s2661, 1

</llo_original>
